<compile_context>
chip_gen: v5e
topology: v5e:2x2
jax: 0.10.0
libtpu: 0.0.40
codegen_flags: <defaults>
</compile_context>

<pallas_src>
import functools
import math

import jax
import jax.numpy as jnp
from jax.experimental import pallas as pl
from jax.experimental.pallas import tpu as pltpu

HIDDEN = (1024, 512, 512, 512)
LANE = 128
BF16_SUBLANE = 16      # bf16 vreg sublane tile -> pad batch to a multiple of 16
TM_MAX = 256           # batch tile: full MXU M-occupancy on v6e/v7x, fine on v5e


# ----------------------------------------------------------------------------
# Fused 5-layer MLP kernel.  Parameters are whole-array VMEM blocks (resident
# across the batch grid); x / out are TM-row batch tiles.
#   refs = (w1, s1, b1, ..., w5, s5, b5, o_ref)
# ----------------------------------------------------------------------------
def _actor_mlp_kernel(x_ref, *refs):
    o_ref = refs[-1]
    params = refs[:-1]
    n_layers = len(params) // 3

    h = x_ref[...].astype(jnp.bfloat16)                    # bf16 LHS for the MXU
    for i in range(n_layers):
        w_ref, s_ref, b_ref = params[3 * i:3 * i + 3]
        y = jnp.dot(h, w_ref[...].astype(jnp.bfloat16),    # int8->bf16 is exact
                    preferred_element_type=jnp.float32)    # f32 MXU accumulation
        y = y * s_ref[...] + b_ref[...]                     # dequant + bias (f32 VPU)
        if i < n_layers - 1:
            h = jnp.maximum(y, 0.0).astype(jnp.bfloat16)    # carry bf16 activations
        else:
            o_ref[...] = y                                  # lane-dense f32 store


# ----------------------------------------------------------------------------
# Parameter init: xavier_normal_ with tanh gain (5/3), zero bias — matches the
# PyTorch xavier_init() helper.
# ----------------------------------------------------------------------------
def init_actor_params(key, state_dim, action_dim):
    gain = 5.0 / 3.0  # nn.init.calculate_gain('tanh')
    dims = (state_dim,) + HIDDEN + (action_dim,)
    params = []
    for i in range(len(dims) - 1):
        fan_in, fan_out = dims[i], dims[i + 1]
        key, wk = jax.random.split(key)
        std = gain * math.sqrt(2.0 / (fan_in + fan_out))
        # stored as (in, out) == transpose of PyTorch's (out, in) weight
        w = std * jax.random.normal(wk, (fan_in, fan_out), dtype=jnp.float32)
        b = jnp.zeros((fan_out,), dtype=jnp.float32)
        params.append((w, b))
    return params


def pack_params(params, *, int8_weights=True):
    """Kernel-ready params: flat [w, scale, b] per layer.

    Weights are (in, out).  int8_weights=True stores them as int8 with a
    per-output-channel f32 scale (symmetric, amax/127); False keeps bf16
    weights with unit scales.  The final (action) layer is zero-padded to a
    multiple of 128 output lanes (lane-dense store; ~60 KB extra, accepted)."""
    packed = []
    last = len(params) - 1
    for i, (w, b) in enumerate(params):
        if i == last:
            n = w.shape[1]
            n_pad = pl.cdiv(n, LANE) * LANE
            w = jnp.pad(w, ((0, 0), (0, n_pad - n)))
            b = jnp.pad(b, (0, n_pad - n))
        if int8_weights:
            amax = jnp.max(jnp.abs(w), axis=0, keepdims=True)          # (1, out)
            scale = jnp.where(amax > 0.0, amax / 127.0, 1.0)
            w_k = jnp.clip(jnp.round(w / scale), -127, 127).astype(jnp.int8)
        else:
            scale = jnp.ones((1, w.shape[1]), jnp.float32)
            w_k = w.astype(jnp.bfloat16)
        packed.append(w_k)
        packed.append(scale.astype(jnp.float32))
        packed.append(b.reshape(1, -1).astype(jnp.float32))
    return packed


@functools.partial(jax.jit, static_argnames=("action_dim",))
def actor_forward(packed, s, *, action_dim):
    m, state_dim = s.shape
    n_pad = packed[-1].shape[1]              # action dim padded to 128 lanes

    # Batch tiling: pad to the bf16 sublane tile (16); if larger than TM_MAX,
    # tile the batch so VMEM use stays bounded and v7x can shard across TCs.
    m_pad = pl.cdiv(m, BF16_SUBLANE) * BF16_SUBLANE
    if m_pad <= TM_MAX:
        tm = m_pad
    else:
        tm = TM_MAX
        m_pad = pl.cdiv(m_pad, tm) * tm
    grid = (m_pad // tm,)

    x = jnp.pad(s.astype(jnp.float32), ((0, m_pad - m), (0, 0)))

    in_specs = [pl.BlockSpec((tm, state_dim), lambda i: (i, 0))]
    for p in packed:                          # params: constant block -> resident
        in_specs.append(pl.BlockSpec(p.shape, lambda i: (0, 0)))
    out_specs = pl.BlockSpec((tm, n_pad), lambda i: (i, 0))

    # Advisory cost + VMEM sizing (scoped defaults: 16 MiB v5e / 32 MiB v6e+v7x).
    param_bytes = sum(int(p.size) * p.dtype.itemsize for p in packed)
    dims = (state_dim,) + HIDDEN + (n_pad,)
    flops = 2 * m_pad * sum(a * b for a, b in zip(dims[:-1], dims[1:]))
    bytes_accessed = param_bytes + m_pad * state_dim * 4 + m_pad * n_pad * 4
    vmem_limit = min(param_bytes
                     + 2 * tm * (state_dim + n_pad) * 4    # double-buffered x/out
                     + 4 * tm * max(HIDDEN) * 4            # live f32 intermediates
                     + (8 << 20),                          # headroom
                     64 << 20)

    out = pl.pallas_call(
        _actor_mlp_kernel,
        grid=grid,
        out_shape=jax.ShapeDtypeStruct((m_pad, n_pad), jnp.float32),
        in_specs=in_specs,
        out_specs=out_specs,
        compiler_params=pltpu.CompilerParams(
            dimension_semantics=("parallel",),
            vmem_limit_bytes=int(vmem_limit)),
        cost_estimate=pl.CostEstimate(
            flops=int(flops), transcendentals=0,
            bytes_accessed=int(bytes_accessed)),
    )(x, *packed)

    return out[:m, :action_dim]


if __name__ == "__main__":
    key = jax.random.PRNGKey(0)
    batch = 2
    state_dim = 32
    action_dim = 8

    pkey, xkey = jax.random.split(key)
    params = init_actor_params(pkey, state_dim, action_dim)
    packed = pack_params(params)             # int8 weights + per-channel scales
    s = jax.random.normal(xkey, (batch, state_dim), dtype=jnp.float32)

    out = actor_forward(packed, s, action_dim=action_dim)
    jax.block_until_ready(out)
    assert out.shape == (batch, action_dim), out.shape

    # Pure-JAX reference with identical math (int8-dequant weights, bf16 LHS,
    # f32 accumulation, per-channel scale + bias epilogue).
    ref = s.astype(jnp.float32)
    n_layers = len(packed) // 3
    for i in range(n_layers):
        w_q, scale, b = packed[3 * i:3 * i + 3]
        y = jnp.dot(ref.astype(jnp.bfloat16), w_q.astype(jnp.bfloat16),
                    preferred_element_type=jnp.float32) * scale + b
        ref = jnp.maximum(y, 0.0).astype(jnp.bfloat16) if i < n_layers - 1 else y
    ref = ref[:, :action_dim]
    assert jnp.allclose(out, ref, atol=2e-3, rtol=2e-3), (
        float(jnp.max(jnp.abs(out - ref))))

    print("KERNEL_OK")
</pallas_src>

<mosaic_0001>
module attributes {stable_mosaic.version = 11 : i64} {
  func.func @_actor_mlp_kernel(%arg0: i32, %arg1: memref<16x32xf32, #tpu.memory_space<vmem>>, %arg2: memref<32x1024xi8, #tpu.memory_space<vmem>>, %arg3: memref<1x1024xf32, #tpu.memory_space<vmem>>, %arg4: memref<1x1024xf32, #tpu.memory_space<vmem>>, %arg5: memref<1024x512xi8, #tpu.memory_space<vmem>>, %arg6: memref<1x512xf32, #tpu.memory_space<vmem>>, %arg7: memref<1x512xf32, #tpu.memory_space<vmem>>, %arg8: memref<512x512xi8, #tpu.memory_space<vmem>>, %arg9: memref<1x512xf32, #tpu.memory_space<vmem>>, %arg10: memref<1x512xf32, #tpu.memory_space<vmem>>, %arg11: memref<512x512xi8, #tpu.memory_space<vmem>>, %arg12: memref<1x512xf32, #tpu.memory_space<vmem>>, %arg13: memref<1x512xf32, #tpu.memory_space<vmem>>, %arg14: memref<512x128xi8, #tpu.memory_space<vmem>>, %arg15: memref<1x128xf32, #tpu.memory_space<vmem>>, %arg16: memref<1x128xf32, #tpu.memory_space<vmem>>, %arg17: memref<16x128xf32, #tpu.memory_space<vmem>>) attributes {dimension_semantics = [#tpu.dimension_semantics<parallel>], iteration_bounds = array<i64: 1>, scalar_prefetch = 0 : i64, scratch_operands = 0 : i64, tpu.core_type = #tpu.core_type<tc>, window_params = [{transform_indices = @transform_0, window_bounds = array<i64: 16, 32>}, {pipeline_mode = #tpu.pipeline_mode<synchronous>, transform_indices = @transform_1, window_bounds = array<i64: 32, 1024>}, {pipeline_mode = #tpu.pipeline_mode<synchronous>, transform_indices = @transform_2, window_bounds = array<i64: 1, 1024>}, {pipeline_mode = #tpu.pipeline_mode<synchronous>, transform_indices = @transform_3, window_bounds = array<i64: 1, 1024>}, {pipeline_mode = #tpu.pipeline_mode<synchronous>, transform_indices = @transform_4, window_bounds = array<i64: 1024, 512>}, {pipeline_mode = #tpu.pipeline_mode<synchronous>, transform_indices = @transform_5, window_bounds = array<i64: 1, 512>}, {pipeline_mode = #tpu.pipeline_mode<synchronous>, transform_indices = @transform_6, window_bounds = array<i64: 1, 512>}, {pipeline_mode = #tpu.pipeline_mode<synchronous>, transform_indices = @transform_7, window_bounds = array<i64: 512, 512>}, {pipeline_mode = #tpu.pipeline_mode<synchronous>, transform_indices = @transform_8, window_bounds = array<i64: 1, 512>}, {pipeline_mode = #tpu.pipeline_mode<synchronous>, transform_indices = @transform_9, window_bounds = array<i64: 1, 512>}, {pipeline_mode = #tpu.pipeline_mode<synchronous>, transform_indices = @transform_10, window_bounds = array<i64: 512, 512>}, {pipeline_mode = #tpu.pipeline_mode<synchronous>, transform_indices = @transform_11, window_bounds = array<i64: 1, 512>}, {pipeline_mode = #tpu.pipeline_mode<synchronous>, transform_indices = @transform_12, window_bounds = array<i64: 1, 512>}, {pipeline_mode = #tpu.pipeline_mode<synchronous>, transform_indices = @transform_13, window_bounds = array<i64: 512, 128>}, {pipeline_mode = #tpu.pipeline_mode<synchronous>, transform_indices = @transform_14, window_bounds = array<i64: 1, 128>}, {pipeline_mode = #tpu.pipeline_mode<synchronous>, transform_indices = @transform_15, window_bounds = array<i64: 1, 128>}, {transform_indices = @transform_16, window_bounds = array<i64: 16, 128>}]} {
    %c0 = arith.constant 0 : index
    %c0_0 = arith.constant 0 : index
    %0 = vector.load %arg1[%c0, %c0_0] : memref<16x32xf32, #tpu.memory_space<vmem>>, vector<16x32xf32>
    %1 = arith.truncf %0 : vector<16x32xf32> to vector<16x32xbf16>
    %c0_1 = arith.constant 0 : index
    %c0_2 = arith.constant 0 : index
    %2 = vector.load %arg2[%c0_1, %c0_2] : memref<32x1024xi8, #tpu.memory_space<vmem>>, vector<32x1024xi8>
    %3 = arith.sitofp %2 : vector<32x1024xi8> to vector<32x1024xbf16>
    %cst = arith.constant dense<0.000000e+00> : vector<16x1024xf32>
    %4 = tpu.matmul %1, %3, %cst {dimension_numbers = #tpu.dot_dimension_numbers<[1], [0], [0], [1], [0, 0, 1, 1], [], []>} : vector<16x32xbf16>, vector<32x1024xbf16>, vector<16x1024xf32> -> vector<16x1024xf32>
    %c0_3 = arith.constant 0 : index
    %c0_4 = arith.constant 0 : index
    %5 = vector.load %arg3[%c0_3, %c0_4] : memref<1x1024xf32, #tpu.memory_space<vmem>>, vector<1x1024xf32>
    %6 = vector.broadcast %5 : vector<1x1024xf32> to vector<16x1024xf32>
    %7 = arith.mulf %4, %6 : vector<16x1024xf32>
    %c0_5 = arith.constant 0 : index
    %c0_6 = arith.constant 0 : index
    %8 = vector.load %arg4[%c0_5, %c0_6] : memref<1x1024xf32, #tpu.memory_space<vmem>>, vector<1x1024xf32>
    %9 = vector.broadcast %8 : vector<1x1024xf32> to vector<16x1024xf32>
    %10 = arith.addf %7, %9 : vector<16x1024xf32>
    %cst_7 = arith.constant 0.000000e+00 : f32
    %11 = vector.broadcast %cst_7 : f32 to vector<16x1024xf32>
    %12 = arith.maximumf %10, %11 : vector<16x1024xf32>
    %13 = arith.truncf %12 : vector<16x1024xf32> to vector<16x1024xbf16>
    %c0_8 = arith.constant 0 : index
    %c0_9 = arith.constant 0 : index
    %14 = vector.load %arg5[%c0_8, %c0_9] : memref<1024x512xi8, #tpu.memory_space<vmem>>, vector<1024x512xi8>
    %15 = arith.sitofp %14 : vector<1024x512xi8> to vector<1024x512xbf16>
    %cst_10 = arith.constant dense<0.000000e+00> : vector<16x512xf32>
    %16 = tpu.matmul %13, %15, %cst_10 {dimension_numbers = #tpu.dot_dimension_numbers<[1], [0], [0], [1], [0, 0, 1, 1], [], []>} : vector<16x1024xbf16>, vector<1024x512xbf16>, vector<16x512xf32> -> vector<16x512xf32>
    %c0_11 = arith.constant 0 : index
    %c0_12 = arith.constant 0 : index
    %17 = vector.load %arg6[%c0_11, %c0_12] : memref<1x512xf32, #tpu.memory_space<vmem>>, vector<1x512xf32>
    %18 = vector.broadcast %17 : vector<1x512xf32> to vector<16x512xf32>
    %19 = arith.mulf %16, %18 : vector<16x512xf32>
    %c0_13 = arith.constant 0 : index
    %c0_14 = arith.constant 0 : index
    %20 = vector.load %arg7[%c0_13, %c0_14] : memref<1x512xf32, #tpu.memory_space<vmem>>, vector<1x512xf32>
    %21 = vector.broadcast %20 : vector<1x512xf32> to vector<16x512xf32>
    %22 = arith.addf %19, %21 : vector<16x512xf32>
    %cst_15 = arith.constant 0.000000e+00 : f32
    %23 = vector.broadcast %cst_15 : f32 to vector<16x512xf32>
    %24 = arith.maximumf %22, %23 : vector<16x512xf32>
    %25 = arith.truncf %24 : vector<16x512xf32> to vector<16x512xbf16>
    %c0_16 = arith.constant 0 : index
    %c0_17 = arith.constant 0 : index
    %26 = vector.load %arg8[%c0_16, %c0_17] : memref<512x512xi8, #tpu.memory_space<vmem>>, vector<512x512xi8>
    %27 = arith.sitofp %26 : vector<512x512xi8> to vector<512x512xbf16>
    %cst_18 = arith.constant dense<0.000000e+00> : vector<16x512xf32>
    %28 = tpu.matmul %25, %27, %cst_18 {dimension_numbers = #tpu.dot_dimension_numbers<[1], [0], [0], [1], [0, 0, 1, 1], [], []>} : vector<16x512xbf16>, vector<512x512xbf16>, vector<16x512xf32> -> vector<16x512xf32>
    %c0_19 = arith.constant 0 : index
    %c0_20 = arith.constant 0 : index
    %29 = vector.load %arg9[%c0_19, %c0_20] : memref<1x512xf32, #tpu.memory_space<vmem>>, vector<1x512xf32>
    %30 = vector.broadcast %29 : vector<1x512xf32> to vector<16x512xf32>
    %31 = arith.mulf %28, %30 : vector<16x512xf32>
    %c0_21 = arith.constant 0 : index
    %c0_22 = arith.constant 0 : index
    %32 = vector.load %arg10[%c0_21, %c0_22] : memref<1x512xf32, #tpu.memory_space<vmem>>, vector<1x512xf32>
    %33 = vector.broadcast %32 : vector<1x512xf32> to vector<16x512xf32>
    %34 = arith.addf %31, %33 : vector<16x512xf32>
    %cst_23 = arith.constant 0.000000e+00 : f32
    %35 = vector.broadcast %cst_23 : f32 to vector<16x512xf32>
    %36 = arith.maximumf %34, %35 : vector<16x512xf32>
    %37 = arith.truncf %36 : vector<16x512xf32> to vector<16x512xbf16>
    %c0_24 = arith.constant 0 : index
    %c0_25 = arith.constant 0 : index
    %38 = vector.load %arg11[%c0_24, %c0_25] : memref<512x512xi8, #tpu.memory_space<vmem>>, vector<512x512xi8>
    %39 = arith.sitofp %38 : vector<512x512xi8> to vector<512x512xbf16>
    %cst_26 = arith.constant dense<0.000000e+00> : vector<16x512xf32>
    %40 = tpu.matmul %37, %39, %cst_26 {dimension_numbers = #tpu.dot_dimension_numbers<[1], [0], [0], [1], [0, 0, 1, 1], [], []>} : vector<16x512xbf16>, vector<512x512xbf16>, vector<16x512xf32> -> vector<16x512xf32>
    %c0_27 = arith.constant 0 : index
    %c0_28 = arith.constant 0 : index
    %41 = vector.load %arg12[%c0_27, %c0_28] : memref<1x512xf32, #tpu.memory_space<vmem>>, vector<1x512xf32>
    %42 = vector.broadcast %41 : vector<1x512xf32> to vector<16x512xf32>
    %43 = arith.mulf %40, %42 : vector<16x512xf32>
    %c0_29 = arith.constant 0 : index
    %c0_30 = arith.constant 0 : index
    %44 = vector.load %arg13[%c0_29, %c0_30] : memref<1x512xf32, #tpu.memory_space<vmem>>, vector<1x512xf32>
    %45 = vector.broadcast %44 : vector<1x512xf32> to vector<16x512xf32>
    %46 = arith.addf %43, %45 : vector<16x512xf32>
    %cst_31 = arith.constant 0.000000e+00 : f32
    %47 = vector.broadcast %cst_31 : f32 to vector<16x512xf32>
    %48 = arith.maximumf %46, %47 : vector<16x512xf32>
    %49 = arith.truncf %48 : vector<16x512xf32> to vector<16x512xbf16>
    %c0_32 = arith.constant 0 : index
    %c0_33 = arith.constant 0 : index
    %50 = vector.load %arg14[%c0_32, %c0_33] : memref<512x128xi8, #tpu.memory_space<vmem>>, vector<512x128xi8>
    %51 = arith.sitofp %50 : vector<512x128xi8> to vector<512x128xbf16>
    %cst_34 = arith.constant dense<0.000000e+00> : vector<16x128xf32>
    %52 = tpu.matmul %49, %51, %cst_34 {dimension_numbers = #tpu.dot_dimension_numbers<[1], [0], [0], [1], [0, 0, 1, 1], [], []>} : vector<16x512xbf16>, vector<512x128xbf16>, vector<16x128xf32> -> vector<16x128xf32>
    %c0_35 = arith.constant 0 : index
    %c0_36 = arith.constant 0 : index
    %53 = vector.load %arg15[%c0_35, %c0_36] : memref<1x128xf32, #tpu.memory_space<vmem>>, vector<1x128xf32>
    %54 = vector.broadcast %53 : vector<1x128xf32> to vector<16x128xf32>
    %55 = arith.mulf %52, %54 : vector<16x128xf32>
    %c0_37 = arith.constant 0 : index
    %c0_38 = arith.constant 0 : index
    %56 = vector.load %arg16[%c0_37, %c0_38] : memref<1x128xf32, #tpu.memory_space<vmem>>, vector<1x128xf32>
    %57 = vector.broadcast %56 : vector<1x128xf32> to vector<16x128xf32>
    %58 = arith.addf %55, %57 : vector<16x128xf32>
    %c0_39 = arith.constant 0 : index
    %c0_40 = arith.constant 0 : index
    %59 = vector.load %arg17[%c0_39, %c0_40] : memref<16x128xf32, #tpu.memory_space<vmem>>, vector<16x128xf32>
    tpu.vector_store %arg17[%c0_39, %c0_40], %58 {strides = array<i32>} : memref<16x128xf32, #tpu.memory_space<vmem>>, vector<16x128xf32>,
    return
  }
  func.func @transform_0(%arg0: i32) -> (i32, i32) {
    %c0_i32 = arith.constant 0 : i32
    %c0_i32_0 = arith.constant 0 : i32
    return %arg0, %c0_i32 : i32, i32
  }
  func.func @transform_1(%arg0: i32) -> (i32, i32) {
    %c0_i32 = arith.constant 0 : i32
    %c0_i32_0 = arith.constant 0 : i32
    %c0_i32_1 = arith.constant 0 : i32
    return %c0_i32, %c0_i32_0 : i32, i32
  }
  func.func @transform_2(%arg0: i32) -> (i32, i32) {
    %c0_i32 = arith.constant 0 : i32
    %c0_i32_0 = arith.constant 0 : i32
    %c0_i32_1 = arith.constant 0 : i32
    return %c0_i32, %c0_i32_0 : i32, i32
  }
  func.func @transform_3(%arg0: i32) -> (i32, i32) {
    %c0_i32 = arith.constant 0 : i32
    %c0_i32_0 = arith.constant 0 : i32
    %c0_i32_1 = arith.constant 0 : i32
    return %c0_i32, %c0_i32_0 : i32, i32
  }
  func.func @transform_4(%arg0: i32) -> (i32, i32) {
    %c0_i32 = arith.constant 0 : i32
    %c0_i32_0 = arith.constant 0 : i32
    %c0_i32_1 = arith.constant 0 : i32
    return %c0_i32, %c0_i32_0 : i32, i32
  }
  func.func @transform_5(%arg0: i32) -> (i32, i32) {
    %c0_i32 = arith.constant 0 : i32
    %c0_i32_0 = arith.constant 0 : i32
    %c0_i32_1 = arith.constant 0 : i32
    return %c0_i32, %c0_i32_0 : i32, i32
  }
  func.func @transform_6(%arg0: i32) -> (i32, i32) {
    %c0_i32 = arith.constant 0 : i32
    %c0_i32_0 = arith.constant 0 : i32
    %c0_i32_1 = arith.constant 0 : i32
    return %c0_i32, %c0_i32_0 : i32, i32
  }
  func.func @transform_7(%arg0: i32) -> (i32, i32) {
    %c0_i32 = arith.constant 0 : i32
    %c0_i32_0 = arith.constant 0 : i32
    %c0_i32_1 = arith.constant 0 : i32
    return %c0_i32, %c0_i32_0 : i32, i32
  }
  func.func @transform_8(%arg0: i32) -> (i32, i32) {
    %c0_i32 = arith.constant 0 : i32
    %c0_i32_0 = arith.constant 0 : i32
    %c0_i32_1 = arith.constant 0 : i32
    return %c0_i32, %c0_i32_0 : i32, i32
  }
  func.func @transform_9(%arg0: i32) -> (i32, i32) {
    %c0_i32 = arith.constant 0 : i32
    %c0_i32_0 = arith.constant 0 : i32
    %c0_i32_1 = arith.constant 0 : i32
    return %c0_i32, %c0_i32_0 : i32, i32
  }
  func.func @transform_10(%arg0: i32) -> (i32, i32) {
    %c0_i32 = arith.constant 0 : i32
    %c0_i32_0 = arith.constant 0 : i32
    %c0_i32_1 = arith.constant 0 : i32
    return %c0_i32, %c0_i32_0 : i32, i32
  }
  func.func @transform_11(%arg0: i32) -> (i32, i32) {
    %c0_i32 = arith.constant 0 : i32
    %c0_i32_0 = arith.constant 0 : i32
    %c0_i32_1 = arith.constant 0 : i32
    return %c0_i32, %c0_i32_0 : i32, i32
  }
  func.func @transform_12(%arg0: i32) -> (i32, i32) {
    %c0_i32 = arith.constant 0 : i32
    %c0_i32_0 = arith.constant 0 : i32
    %c0_i32_1 = arith.constant 0 : i32
    return %c0_i32, %c0_i32_0 : i32, i32
  }
  func.func @transform_13(%arg0: i32) -> (i32, i32) {
    %c0_i32 = arith.constant 0 : i32
    %c0_i32_0 = arith.constant 0 : i32
    %c0_i32_1 = arith.constant 0 : i32
    return %c0_i32, %c0_i32_0 : i32, i32
  }
  func.func @transform_14(%arg0: i32) -> (i32, i32) {
    %c0_i32 = arith.constant 0 : i32
    %c0_i32_0 = arith.constant 0 : i32
    %c0_i32_1 = arith.constant 0 : i32
    return %c0_i32, %c0_i32_0 : i32, i32
  }
  func.func @transform_15(%arg0: i32) -> (i32, i32) {
    %c0_i32 = arith.constant 0 : i32
    %c0_i32_0 = arith.constant 0 : i32
    %c0_i32_1 = arith.constant 0 : i32
    return %c0_i32, %c0_i32_0 : i32, i32
  }
  func.func @transform_16(%arg0: i32) -> (i32, i32) {
    %c0_i32 = arith.constant 0 : i32
    %c0_i32_0 = arith.constant 0 : i32
    return %arg0, %c0_i32 : i32, i32
  }
}

</mosaic_0001>

<llo_original>
// kernel: actor_forward.1
$region0: #{actor_forward.1}
  #allocation0 [shape = 'u32[]', space=smem, size = 0x4, offset = 0x4, fixed_abs, tag = 'smem constant byte address 0x4 - core index']
  #allocation1 [shape = 'u32[72,128]{1,0:T(1,128)}', space=vmem, size = 0x9000, scoped, tag = 'internal scratch']
  %s0 = inlined_call_operand.vmem [shape: f32[16,32], index: 0, kind: input, shape index: {}]
  %s1 = inlined_call_operand.hbm [shape: s8[32,1024], index: 1, kind: input, shape index: {}]
  %s2 = inlined_call_operand.vmem [shape: f32[1,1024], index: 2, kind: input, shape index: {}]
  %s3 = inlined_call_operand.vmem [shape: f32[1,1024], index: 3, kind: input, shape index: {}]
  %s4 = inlined_call_operand.hbm [shape: s8[1024,512], index: 4, kind: input, shape index: {}]
  %s5 = inlined_call_operand.vmem [shape: f32[1,512], index: 5, kind: input, shape index: {}]
  %s6 = inlined_call_operand.hbm [shape: f32[1,512], index: 6, kind: input, shape index: {}]
  %s7 = inlined_call_operand.hbm [shape: s8[512,512], index: 7, kind: input, shape index: {}]
  %s8 = inlined_call_operand.vmem [shape: f32[1,512], index: 8, kind: input, shape index: {}]
  %s9 = inlined_call_operand.hbm [shape: f32[1,512], index: 9, kind: input, shape index: {}]
  %s10 = inlined_call_operand.hbm [shape: s8[512,512], index: 10, kind: input, shape index: {}]
  %s11 = inlined_call_operand.vmem [shape: f32[1,512], index: 11, kind: input, shape index: {}]
  %s12 = inlined_call_operand.hbm [shape: f32[1,512], index: 12, kind: input, shape index: {}]
  %s13 = inlined_call_operand.hbm [shape: s8[512,128], index: 13, kind: input, shape index: {}]
  %s14 = inlined_call_operand.vmem [shape: f32[1,128], index: 14, kind: input, shape index: {}]
  %s15 = inlined_call_operand.vmem [shape: f32[1,128], index: 15, kind: input, shape index: {}]
  %s16 = inlined_call_operand.vmem [shape: f32[16,128], index: 16, kind: output, shape index: {}]
  %s17 = sld [smem:[#allocation0]]
  $region106: #{actor_forward.1} parent=0
    _
  %s19 = ssub.s32 1, %s17
  %s20 = scalar_select 0, %s19, %s17
  $region1: #{actor_forward.1} parent=0
    #allocation2 [shape = 'u8[32768]{0}', space=vmem, size = 0x8000, scoped, tag = 'input window, operand 1, single buffered']
    #allocation3 [shape = 's32[1]{0}', space=sflag, size = 0x4, scoped, tag = 'scoped memory for actor_forward.1']
    #allocation4 [shape = 'u8[524288]{0}', space=vmem, size = 0x80000, scoped, tag = 'input window, operand 4, single buffered']
    #allocation5 [shape = 's32[1]{0}', space=sflag, size = 0x4, scoped, tag = 'scoped memory for actor_forward.1']
    #allocation6 [shape = 'u8[2048]{0}', space=vmem, size = 0x800, scoped, tag = 'input window, operand 6, single buffered']
    #allocation7 [shape = 'u8[262144]{0}', space=vmem, size = 0x40000, scoped, tag = 'input window, operand 7, single buffered']
    #allocation8 [shape = 's32[1]{0}', space=sflag, size = 0x4, scoped, tag = 'scoped memory for actor_forward.1']
    #allocation9 [shape = 'u8[2048]{0}', space=vmem, size = 0x800, scoped, tag = 'input window, operand 9, single buffered']
    #allocation10 [shape = 'u8[262144]{0}', space=vmem, size = 0x40000, scoped, tag = 'input window, operand 10, single buffered']
    #allocation11 [shape = 's32[1]{0}', space=sflag, size = 0x4, scoped, tag = 'scoped memory for actor_forward.1']
    #allocation12 [shape = 'u8[2048]{0}', space=vmem, size = 0x800, scoped, tag = 'input window, operand 12, single buffered']
    #allocation13 [shape = 'u8[65536]{0}', space=vmem, size = 0x10000, scoped, tag = 'input window, operand 13, single buffered']
    #allocation14 [shape = 's32[1]{0}', space=sflag, size = 0x4, scoped, tag = 'scoped memory for actor_forward.1']
    %21 = vsyncpa [#allocation3], 0
    %22 = vsyncpa [#allocation5], 0
    %23 = vsyncpa [#allocation8], 0
    %24 = vsyncpa [#allocation11], 0
    %25 = vsyncpa [#allocation14], 0
    // Predicated region
    $region2: #{actor_forward.1} parent=1 // pred_check
      _
    $region3: #{actor_forward.1} parent=1 // pred_check_branch
      %27 = sbr.rel (0) target = $region5
    $region4: #{actor_forward.1} parent=1 // pred_region
      _
    $region5: #{actor_forward.1} parent=1 // pred_fallthru
      _
    // Predicated region
    $region6: #{actor_forward.1} parent=1 // pred_check
      _
    $region7: #{actor_forward.1} parent=1 // pred_check_branch
      %29 = sbr.rel (0) target = $region9
    $region8: #{actor_forward.1} parent=1 // pred_region
      %31 = vsyncadd [#allocation3], 0
      %s33 = sshll.u32 %s1, 4
      %s34 = int_to_ptr.hbm [resolvable:$true] %s33
      %s35 = sshll.u32 [#allocation2], 4
      %s36 = int_to_ptr.vmem [resolvable:$true] %s35
      %38 = dma.hbm_to_vmem [thread:$0]  %s34, 1024, %s36, [#allocation3]
    $region9: #{actor_forward.1} parent=1 // pred_fallthru
      _
    // Predicated region
    $region10: #{actor_forward.1} parent=1 // pred_check
      _
    $region11: #{actor_forward.1} parent=1 // pred_check_branch
      %40 = sbr.rel (0) target = $region13
    $region12: #{actor_forward.1} parent=1 // pred_region
      _
    $region13: #{actor_forward.1} parent=1 // pred_fallthru
      _
    // Predicated region
    $region14: #{actor_forward.1} parent=1 // pred_check
      _
    $region15: #{actor_forward.1} parent=1 // pred_check_branch
      %42 = sbr.rel (0) target = $region17
    $region16: #{actor_forward.1} parent=1 // pred_region
      _
    $region17: #{actor_forward.1} parent=1 // pred_fallthru
      _
    // Predicated region
    $region18: #{actor_forward.1} parent=1 // pred_check
      _
    $region19: #{actor_forward.1} parent=1 // pred_check_branch
      %44 = sbr.rel (0) target = $region21
    $region20: #{actor_forward.1} parent=1 // pred_region
      %46 = vsyncadd [#allocation5], 0
      %s47 = sshll.u32 %s4, 4
      %s48 = int_to_ptr.hbm [resolvable:$true] %s47
      %s49 = sshll.u32 [#allocation4], 4
      %s50 = int_to_ptr.vmem [resolvable:$true] %s49
      %55 = dma.hbm_to_vmem [thread:$0]  %s48, 16384, %s50, [#allocation5], 512, 512, 32
    $region21: #{actor_forward.1} parent=1 // pred_fallthru
      _
    // Predicated region
    $region22: #{actor_forward.1} parent=1 // pred_check
      _
    $region23: #{actor_forward.1} parent=1 // pred_check_branch
      %57 = sbr.rel (0) target = $region25
    $region24: #{actor_forward.1} parent=1 // pred_region
      _
    $region25: #{actor_forward.1} parent=1 // pred_fallthru
      _
    // Predicated region
    $region26: #{actor_forward.1} parent=1 // pred_check
      _
    $region27: #{actor_forward.1} parent=1 // pred_check_branch
      %59 = sbr.rel (0) target = $region29
    $region28: #{actor_forward.1} parent=1 // pred_region
      %61 = vsyncadd [#allocation5], 0
      %s63 = sshll.u32 %s6, 4
      %s64 = int_to_ptr.hbm [resolvable:$true] %s63
      %s65 = sshll.u32 [#allocation6], 4
      %s66 = int_to_ptr.vmem [resolvable:$true] %s65
      %68 = dma.hbm_to_vmem [thread:$0]  %s64, 64, %s66, [#allocation5]
    $region29: #{actor_forward.1} parent=1 // pred_fallthru
      _
    // Predicated region
    $region30: #{actor_forward.1} parent=1 // pred_check
      _
    $region31: #{actor_forward.1} parent=1 // pred_check_branch
      %70 = sbr.rel (0) target = $region33
    $region32: #{actor_forward.1} parent=1 // pred_region
      %72 = vsyncadd [#allocation8], 0
      %s73 = sshll.u32 %s7, 4
      %s74 = int_to_ptr.hbm [resolvable:$true] %s73
      %s75 = sshll.u32 [#allocation7], 4
      %s76 = int_to_ptr.vmem [resolvable:$true] %s75
      %81 = dma.hbm_to_vmem [thread:$0]  %s74, 8192, %s76, [#allocation8], 512, 512, 32
    $region33: #{actor_forward.1} parent=1 // pred_fallthru
      _
    // Predicated region
    $region34: #{actor_forward.1} parent=1 // pred_check
      _
    $region35: #{actor_forward.1} parent=1 // pred_check_branch
      %83 = sbr.rel (0) target = $region37
    $region36: #{actor_forward.1} parent=1 // pred_region
      _
    $region37: #{actor_forward.1} parent=1 // pred_fallthru
      _
    // Predicated region
    $region38: #{actor_forward.1} parent=1 // pred_check
      _
    $region39: #{actor_forward.1} parent=1 // pred_check_branch
      %85 = sbr.rel (0) target = $region41
    $region40: #{actor_forward.1} parent=1 // pred_region
      %87 = vsyncadd [#allocation8], 0
      %s89 = sshll.u32 %s9, 4
      %s90 = int_to_ptr.hbm [resolvable:$true] %s89
      %s91 = sshll.u32 [#allocation9], 4
      %s92 = int_to_ptr.vmem [resolvable:$true] %s91
      %94 = dma.hbm_to_vmem [thread:$0]  %s90, 64, %s92, [#allocation8]
    $region41: #{actor_forward.1} parent=1 // pred_fallthru
      _
    // Predicated region
    $region42: #{actor_forward.1} parent=1 // pred_check
      _
    $region43: #{actor_forward.1} parent=1 // pred_check_branch
      %96 = sbr.rel (0) target = $region45
    $region44: #{actor_forward.1} parent=1 // pred_region
      %98 = vsyncadd [#allocation11], 0
      %s99 = sshll.u32 %s10, 4
      %s100 = int_to_ptr.hbm [resolvable:$true] %s99
      %s101 = sshll.u32 [#allocation10], 4
      %s102 = int_to_ptr.vmem [resolvable:$true] %s101
      %107 = dma.hbm_to_vmem [thread:$0]  %s100, 8192, %s102, [#allocation11], 512, 512, 32
    $region45: #{actor_forward.1} parent=1 // pred_fallthru
      _
    // Predicated region
    $region46: #{actor_forward.1} parent=1 // pred_check
      _
    $region47: #{actor_forward.1} parent=1 // pred_check_branch
      %109 = sbr.rel (0) target = $region49
    $region48: #{actor_forward.1} parent=1 // pred_region
      _
    $region49: #{actor_forward.1} parent=1 // pred_fallthru
      _
    // Predicated region
    $region50: #{actor_forward.1} parent=1 // pred_check
      _
    $region51: #{actor_forward.1} parent=1 // pred_check_branch
      %111 = sbr.rel (0) target = $region53
    $region52: #{actor_forward.1} parent=1 // pred_region
      %113 = vsyncadd [#allocation11], 0
      %s115 = sshll.u32 %s12, 4
      %s116 = int_to_ptr.hbm [resolvable:$true] %s115
      %s117 = sshll.u32 [#allocation12], 4
      %s118 = int_to_ptr.vmem [resolvable:$true] %s117
      %120 = dma.hbm_to_vmem [thread:$0]  %s116, 64, %s118, [#allocation11]
    $region53: #{actor_forward.1} parent=1 // pred_fallthru
      _
    // Predicated region
    $region54: #{actor_forward.1} parent=1 // pred_check
      _
    $region55: #{actor_forward.1} parent=1 // pred_check_branch
      %122 = sbr.rel (0) target = $region57
    $region56: #{actor_forward.1} parent=1 // pred_region
      %124 = vsyncadd [#allocation14], 0
      %s125 = sshll.u32 %s13, 4
      %s126 = int_to_ptr.hbm [resolvable:$true] %s125
      %s127 = sshll.u32 [#allocation13], 4
      %s128 = int_to_ptr.vmem [resolvable:$true] %s127
      %133 = dma.hbm_to_vmem [thread:$0]  %s126, 2048, %s128, [#allocation14], 128, 128, 8
    $region57: #{actor_forward.1} parent=1 // pred_fallthru
      _
    // Predicated region
    $region58: #{actor_forward.1} parent=1 // pred_check
      _
    $region59: #{actor_forward.1} parent=1 // pred_check_branch
      %135 = sbr.rel (0) target = $region61
    $region60: #{actor_forward.1} parent=1 // pred_region
      _
    $region61: #{actor_forward.1} parent=1 // pred_fallthru
      _
    // Predicated region
    $region62: #{actor_forward.1} parent=1 // pred_check
      _
    $region63: #{actor_forward.1} parent=1 // pred_check_branch
      %137 = sbr.rel (0) target = $region65
    $region64: #{actor_forward.1} parent=1 // pred_region
      _
    $region65: #{actor_forward.1} parent=1 // pred_fallthru
      _
    // Predicated region
    $region66: #{actor_forward.1} parent=1 // pred_check
      _
    $region67: #{actor_forward.1} parent=1 // pred_check_branch
      %139 = sbr.rel (0) target = $region69
    $region68: #{actor_forward.1} parent=1 // pred_region
      %141 = dma.done [#allocation3], 1024
    $region69: #{actor_forward.1} parent=1 // pred_fallthru
      _
    // Predicated region
    $region70: #{actor_forward.1} parent=1 // pred_check
      _
    $region71: #{actor_forward.1} parent=1 // pred_check_branch
      %143 = sbr.rel (0) target = $region73
    $region72: #{actor_forward.1} parent=1 // pred_region
      %145 = dma.done [#allocation5], 16384
    $region73: #{actor_forward.1} parent=1 // pred_fallthru
      _
    // Predicated region
    $region74: #{actor_forward.1} parent=1 // pred_check
      _
    $region75: #{actor_forward.1} parent=1 // pred_check_branch
      %147 = sbr.rel (0) target = $region77
    $region76: #{actor_forward.1} parent=1 // pred_region
      %149 = dma.done [#allocation5], 64
    $region77: #{actor_forward.1} parent=1 // pred_fallthru
      _
    // Predicated region
    $region78: #{actor_forward.1} parent=1 // pred_check
      _
    $region79: #{actor_forward.1} parent=1 // pred_check_branch
      %151 = sbr.rel (0) target = $region81
    $region80: #{actor_forward.1} parent=1 // pred_region
      %153 = dma.done [#allocation8], 8192
    $region81: #{actor_forward.1} parent=1 // pred_fallthru
      _
    // Predicated region
    $region82: #{actor_forward.1} parent=1 // pred_check
      _
    $region83: #{actor_forward.1} parent=1 // pred_check_branch
      %155 = sbr.rel (0) target = $region85
    $region84: #{actor_forward.1} parent=1 // pred_region
      %157 = dma.done [#allocation8], 64
    $region85: #{actor_forward.1} parent=1 // pred_fallthru
      _
    // Predicated region
    $region86: #{actor_forward.1} parent=1 // pred_check
      _
    $region87: #{actor_forward.1} parent=1 // pred_check_branch
      %159 = sbr.rel (0) target = $region89
    $region88: #{actor_forward.1} parent=1 // pred_region
      %161 = dma.done [#allocation11], 8192
    $region89: #{actor_forward.1} parent=1 // pred_fallthru
      _
    // Predicated region
    $region90: #{actor_forward.1} parent=1 // pred_check
      _
    $region91: #{actor_forward.1} parent=1 // pred_check_branch
      %163 = sbr.rel (0) target = $region93
    $region92: #{actor_forward.1} parent=1 // pred_region
      %165 = dma.done [#allocation11], 64
    $region93: #{actor_forward.1} parent=1 // pred_fallthru
      _
    // Predicated region
    $region94: #{actor_forward.1} parent=1 // pred_check
      _
    $region95: #{actor_forward.1} parent=1 // pred_check_branch
      %167 = sbr.rel (0) target = $region97
    $region96: #{actor_forward.1} parent=1 // pred_region
      %169 = dma.done [#allocation14], 2048
    $region97: #{actor_forward.1} parent=1 // pred_fallthru
      _
    %v171 = vld [vmem:[%s0] sm:$0xff]
    %v172 = vld [vmem:[%s0 + $0x8] sm:$0xff]
    %v173 = vpack.c.bf16 %v172, %v171
    %v174 = vld [vmem:[#allocation2] sm:$0xff]
    %v175 = vld [vmem:[#allocation2 + $0x8] sm:$0xff]
    %v176 = vld [vmem:[#allocation2 + $0x10] sm:$0xff]
    %v177 = vld [vmem:[#allocation2 + $0x18] sm:$0xff]
    %v178 = vld [vmem:[#allocation2 + $0x20] sm:$0xff]
    %v179 = vld [vmem:[#allocation2 + $0x28] sm:$0xff]
    %v180 = vld [vmem:[#allocation2 + $0x30] sm:$0xff]
    %v181 = vld [vmem:[#allocation2 + $0x38] sm:$0xff]
    %v182 = vunpack.c.0.s8 %v174
    %v183 = vunpack.c.0.s8 %v175
    %v184 = vunpack.c.0.s8 %v176
    %v185 = vunpack.c.0.s8 %v177
    %v186 = vunpack.c.0.s8 %v178
    %v187 = vunpack.c.0.s8 %v179
    %v188 = vunpack.c.0.s8 %v180
    %v189 = vunpack.c.0.s8 %v181
    %v190 = vunpack.c.1.s8 %v174
    %v191 = vunpack.c.1.s8 %v175
    %v192 = vunpack.c.1.s8 %v176
    %v193 = vunpack.c.1.s8 %v177
    %v194 = vunpack.c.1.s8 %v178
    %v195 = vunpack.c.1.s8 %v179
    %v196 = vunpack.c.1.s8 %v180
    %v197 = vunpack.c.1.s8 %v181
    %v198 = vunpack.c.2.s8 %v174
    %v199 = vunpack.c.2.s8 %v175
    %v200 = vunpack.c.2.s8 %v176
    %v201 = vunpack.c.2.s8 %v177
    %v202 = vunpack.c.2.s8 %v178
    %v203 = vunpack.c.2.s8 %v179
    %v204 = vunpack.c.2.s8 %v180
    %v205 = vunpack.c.2.s8 %v181
    %v206 = vunpack.c.3.s8 %v174
    %v207 = vunpack.c.3.s8 %v175
    %v208 = vunpack.c.3.s8 %v176
    %v209 = vunpack.c.3.s8 %v177
    %v210 = vunpack.c.3.s8 %v178
    %v211 = vunpack.c.3.s8 %v179
    %v212 = vunpack.c.3.s8 %v180
    %v213 = vunpack.c.3.s8 %v181
    %v214 = vcvt.s32.f32 %v182
    %v215 = vcvt.s32.f32 %v183
    %v216 = vcvt.s32.f32 %v184
    %v217 = vcvt.s32.f32 %v185
    %v218 = vcvt.s32.f32 %v186
    %v219 = vcvt.s32.f32 %v187
    %v220 = vcvt.s32.f32 %v188
    %v221 = vcvt.s32.f32 %v189
    %v222 = vcvt.s32.f32 %v190
    %v223 = vcvt.s32.f32 %v191
    %v224 = vcvt.s32.f32 %v192
    %v225 = vcvt.s32.f32 %v193
    %v226 = vcvt.s32.f32 %v194
    %v227 = vcvt.s32.f32 %v195
    %v228 = vcvt.s32.f32 %v196
    %v229 = vcvt.s32.f32 %v197
    %v230 = vcvt.s32.f32 %v198
    %v231 = vcvt.s32.f32 %v199
    %v232 = vcvt.s32.f32 %v200
    %v233 = vcvt.s32.f32 %v201
    %v234 = vcvt.s32.f32 %v202
    %v235 = vcvt.s32.f32 %v203
    %v236 = vcvt.s32.f32 %v204
    %v237 = vcvt.s32.f32 %v205
    %v238 = vcvt.s32.f32 %v206
    %v239 = vcvt.s32.f32 %v207
    %v240 = vcvt.s32.f32 %v208
    %v241 = vcvt.s32.f32 %v209
    %v242 = vcvt.s32.f32 %v210
    %v243 = vcvt.s32.f32 %v211
    %v244 = vcvt.s32.f32 %v212
    %v245 = vcvt.s32.f32 %v213
    %v246 = vpack.c.bf16 %v222, %v214
    %v247 = vpack.c.bf16 %v223, %v215
    %v248 = vpack.c.bf16 %v224, %v216
    %v249 = vpack.c.bf16 %v225, %v217
    %v250 = vpack.c.bf16 %v226, %v218
    %v251 = vpack.c.bf16 %v227, %v219
    %v252 = vpack.c.bf16 %v228, %v220
    %v253 = vpack.c.bf16 %v229, %v221
    %v254 = vpack.c.bf16 %v238, %v230
    %v255 = vpack.c.bf16 %v239, %v231
    %v256 = vpack.c.bf16 %v240, %v232
    %v257 = vpack.c.bf16 %v241, %v233
    %v258 = vpack.c.bf16 %v242, %v234
    %v259 = vpack.c.bf16 %v243, %v235
    %v260 = vpack.c.bf16 %v244, %v236
    %v261 = vpack.c.bf16 %v245, %v237
    %vm262 = vcmask 261120
    %v264 = vsel %vm262, %v173, 0
    %266 = vmatpush.bf16.msra.mxu0 0
    %267 = vmatpush.bf16.msra.mxu0 0
    %268 = vmatpush.bf16.msra.mxu0 0
    %269 = vmatpush.bf16.msra.mxu0 0
    %270 = vmatpush.bf16.msra.mxu0 0
    %271 = vmatpush.bf16.msra.mxu0 0
    %272 = vmatpush.bf16.msra.mxu0 %v254
    %273 = vmatpush.bf16.msra.mxu0 %v246
    %274 = vmatmul.bf16.gmra.mxu0 %v264
    %v275 = vpop.f32.mrf.mxu0
    %v276 = vadd.f32 0.0, %v275
    %v277 = vpop.f32.mrf.mxu0
    %v278 = vadd.f32 0.0, %v277
    %279 = vdwg.mxu0
    %280 = vmatpush.bf16.msra.mxu0 0
    %281 = vmatpush.bf16.msra.mxu0 0
    %282 = vmatpush.bf16.msra.mxu0 0
    %283 = vmatpush.bf16.msra.mxu0 0
    %284 = vmatpush.bf16.msra.mxu0 0
    %285 = vmatpush.bf16.msra.mxu0 0
    %286 = vmatpush.bf16.msra.mxu0 %v255
    %287 = vmatpush.bf16.msra.mxu0 %v247
    %288 = vmatmul.bf16.gmra.mxu0 %v264
    %v289 = vpop.f32.mrf.mxu0
    %v290 = vadd.f32 0.0, %v289
    %v291 = vpop.f32.mrf.mxu0
    %v292 = vadd.f32 0.0, %v291
    %293 = vdwg.mxu0
    %294 = vmatpush.bf16.msra.mxu0 0
    %295 = vmatpush.bf16.msra.mxu0 0
    %296 = vmatpush.bf16.msra.mxu0 0
    %297 = vmatpush.bf16.msra.mxu0 0
    %298 = vmatpush.bf16.msra.mxu0 0
    %299 = vmatpush.bf16.msra.mxu0 0
    %300 = vmatpush.bf16.msra.mxu0 %v256
    %301 = vmatpush.bf16.msra.mxu0 %v248
    %302 = vmatmul.bf16.gmra.mxu0 %v264
    %v303 = vpop.f32.mrf.mxu0
    %v304 = vadd.f32 0.0, %v303
    %v305 = vpop.f32.mrf.mxu0
    %v306 = vadd.f32 0.0, %v305
    %307 = vdwg.mxu0
    %308 = vmatpush.bf16.msra.mxu0 0
    %309 = vmatpush.bf16.msra.mxu0 0
    %310 = vmatpush.bf16.msra.mxu0 0
    %311 = vmatpush.bf16.msra.mxu0 0
    %312 = vmatpush.bf16.msra.mxu0 0
    %313 = vmatpush.bf16.msra.mxu0 0
    %314 = vmatpush.bf16.msra.mxu0 %v257
    %315 = vmatpush.bf16.msra.mxu0 %v249
    %316 = vmatmul.bf16.gmra.mxu0 %v264
    %v317 = vpop.f32.mrf.mxu0
    %v318 = vadd.f32 0.0, %v317
    %v319 = vpop.f32.mrf.mxu0
    %v320 = vadd.f32 0.0, %v319
    %321 = vdwg.mxu0
    %322 = vmatpush.bf16.msra.mxu0 0
    %323 = vmatpush.bf16.msra.mxu0 0
    %324 = vmatpush.bf16.msra.mxu0 0
    %325 = vmatpush.bf16.msra.mxu0 0
    %326 = vmatpush.bf16.msra.mxu0 0
    %327 = vmatpush.bf16.msra.mxu0 0
    %328 = vmatpush.bf16.msra.mxu0 %v258
    %329 = vmatpush.bf16.msra.mxu0 %v250
    %330 = vmatmul.bf16.gmra.mxu0 %v264
    %v331 = vpop.f32.mrf.mxu0
    %v332 = vadd.f32 0.0, %v331
    %v333 = vpop.f32.mrf.mxu0
    %v334 = vadd.f32 0.0, %v333
    %335 = vdwg.mxu0
    %336 = vmatpush.bf16.msra.mxu0 0
    %337 = vmatpush.bf16.msra.mxu0 0
    %338 = vmatpush.bf16.msra.mxu0 0
    %339 = vmatpush.bf16.msra.mxu0 0
    %340 = vmatpush.bf16.msra.mxu0 0
    %341 = vmatpush.bf16.msra.mxu0 0
    %342 = vmatpush.bf16.msra.mxu0 %v259
    %343 = vmatpush.bf16.msra.mxu0 %v251
    %344 = vmatmul.bf16.gmra.mxu0 %v264
    %v345 = vpop.f32.mrf.mxu0
    %v346 = vadd.f32 0.0, %v345
    %v347 = vpop.f32.mrf.mxu0
    %v348 = vadd.f32 0.0, %v347
    %349 = vdwg.mxu0
    %350 = vmatpush.bf16.msra.mxu0 0
    %351 = vmatpush.bf16.msra.mxu0 0
    %352 = vmatpush.bf16.msra.mxu0 0
    %353 = vmatpush.bf16.msra.mxu0 0
    %354 = vmatpush.bf16.msra.mxu0 0
    %355 = vmatpush.bf16.msra.mxu0 0
    %356 = vmatpush.bf16.msra.mxu0 %v260
    %357 = vmatpush.bf16.msra.mxu0 %v252
    %358 = vmatmul.bf16.gmra.mxu0 %v264
    %v359 = vpop.f32.mrf.mxu0
    %v360 = vadd.f32 0.0, %v359
    %v361 = vpop.f32.mrf.mxu0
    %v362 = vadd.f32 0.0, %v361
    %363 = vdwg.mxu0
    %364 = vmatpush.bf16.msra.mxu0 0
    %365 = vmatpush.bf16.msra.mxu0 0
    %366 = vmatpush.bf16.msra.mxu0 0
    %367 = vmatpush.bf16.msra.mxu0 0
    %368 = vmatpush.bf16.msra.mxu0 0
    %369 = vmatpush.bf16.msra.mxu0 0
    %370 = vmatpush.bf16.msra.mxu0 %v261
    %371 = vmatpush.bf16.msra.mxu0 %v253
    %372 = vmatmul.bf16.gmra.mxu0 %v264
    %v373 = vpop.f32.mrf.mxu0
    %v374 = vadd.f32 0.0, %v373
    %v375 = vpop.f32.mrf.mxu0
    %v376 = vadd.f32 0.0, %v375
    %377 = vdwg.mxu0
    %v378 = vld [vmem:[%s2] sm:$0xff]
    %v380 = vperm.slane %v378, 0
    %v381 = vperm.slane %v378, 1
    %v382 = vperm.slane %v378, 2
    %v383 = vperm.slane %v378, 3
    %v384 = vperm.slane %v378, 4
    %v385 = vperm.slane %v378, 5
    %v386 = vperm.slane %v378, 6
    %v387 = vperm.slane %v378, 7
    %v396 = vmul.f32 %v276, %v380
    %v397 = vmul.f32 %v290, %v381
    %v398 = vmul.f32 %v304, %v382
    %v399 = vmul.f32 %v318, %v383
    %v400 = vmul.f32 %v332, %v384
    %v401 = vmul.f32 %v346, %v385
    %v402 = vmul.f32 %v360, %v386
    %v403 = vmul.f32 %v374, %v387
    %v404 = vmul.f32 %v278, %v380
    %v405 = vmul.f32 %v292, %v381
    %v406 = vmul.f32 %v306, %v382
    %v407 = vmul.f32 %v320, %v383
    %v408 = vmul.f32 %v334, %v384
    %v409 = vmul.f32 %v348, %v385
    %v410 = vmul.f32 %v362, %v386
    %v411 = vmul.f32 %v376, %v387
    %v412 = vld [vmem:[%s3] sm:$0xff]
    %v414 = vperm.slane %v412, 0
    %v415 = vperm.slane %v412, 1
    %v416 = vperm.slane %v412, 2
    %v417 = vperm.slane %v412, 3
    %v418 = vperm.slane %v412, 4
    %v419 = vperm.slane %v412, 5
    %v420 = vperm.slane %v412, 6
    %v421 = vperm.slane %v412, 7
    %v430 = vadd.f32 %v396, %v414
    %v431 = vadd.f32 %v397, %v415
    %v432 = vadd.f32 %v398, %v416
    %v433 = vadd.f32 %v399, %v417
    %v434 = vadd.f32 %v400, %v418
    %v435 = vadd.f32 %v401, %v419
    %v436 = vadd.f32 %v402, %v420
    %v437 = vadd.f32 %v403, %v421
    %v438 = vadd.f32 %v404, %v414
    %v439 = vadd.f32 %v405, %v415
    %v440 = vadd.f32 %v406, %v416
    %v441 = vadd.f32 %v407, %v417
    %v442 = vadd.f32 %v408, %v418
    %v443 = vadd.f32 %v409, %v419
    %v444 = vadd.f32 %v410, %v420
    %v445 = vadd.f32 %v411, %v421
    %v446 = vmax.f32 %v430, 0.0
    %v447 = vmax.f32 %v431, 0.0
    %v448 = vmax.f32 %v432, 0.0
    %v449 = vmax.f32 %v433, 0.0
    %v450 = vmax.f32 %v434, 0.0
    %v451 = vmax.f32 %v435, 0.0
    %v452 = vmax.f32 %v436, 0.0
    %v453 = vmax.f32 %v437, 0.0
    %v454 = vmax.f32 %v438, 0.0
    %v455 = vmax.f32 %v439, 0.0
    %v456 = vmax.f32 %v440, 0.0
    %v457 = vmax.f32 %v441, 0.0
    %v458 = vmax.f32 %v442, 0.0
    %v459 = vmax.f32 %v443, 0.0
    %v460 = vmax.f32 %v444, 0.0
    %v461 = vmax.f32 %v445, 0.0
    %v462 = vpack.c.bf16 %v454, %v446
    %v463 = vpack.c.bf16 %v455, %v447
    %v464 = vpack.c.bf16 %v456, %v448
    %v465 = vpack.c.bf16 %v457, %v449
    %v466 = vpack.c.bf16 %v458, %v450
    %v467 = vpack.c.bf16 %v459, %v451
    %v468 = vpack.c.bf16 %v460, %v452
    %v469 = vpack.c.bf16 %v461, %v453
    %v470 = vld [vmem:[#allocation4] sm:$0xff]
    %v471 = vld [vmem:[#allocation4 + $0x8] sm:$0xff]
    %v472 = vld [vmem:[#allocation4 + $0x10] sm:$0xff]
    %v473 = vld [vmem:[#allocation4 + $0x18] sm:$0xff]
    %v474 = vld [vmem:[#allocation4 + $0x20] sm:$0xff]
    %v475 = vld [vmem:[#allocation4 + $0x28] sm:$0xff]
    %v476 = vld [vmem:[#allocation4 + $0x30] sm:$0xff]
    %v477 = vld [vmem:[#allocation4 + $0x38] sm:$0xff]
    %v478 = vld [vmem:[#allocation4 + $0x40] sm:$0xff]
    %v479 = vld [vmem:[#allocation4 + $0x48] sm:$0xff]
    %v480 = vld [vmem:[#allocation4 + $0x50] sm:$0xff]
    %v481 = vld [vmem:[#allocation4 + $0x58] sm:$0xff]
    %v482 = vld [vmem:[#allocation4 + $0x60] sm:$0xff]
    %v483 = vld [vmem:[#allocation4 + $0x68] sm:$0xff]
    %v484 = vld [vmem:[#allocation4 + $0x70] sm:$0xff]
    %v485 = vld [vmem:[#allocation4 + $0x78] sm:$0xff]
    %v486 = vld [vmem:[#allocation4 + $0x80] sm:$0xff]
    %v487 = vld [vmem:[#allocation4 + $0x88] sm:$0xff]
    %v488 = vld [vmem:[#allocation4 + $0x90] sm:$0xff]
    %v489 = vld [vmem:[#allocation4 + $0x98] sm:$0xff]
    %v490 = vld [vmem:[#allocation4 + $0xa0] sm:$0xff]
    %v491 = vld [vmem:[#allocation4 + $0xa8] sm:$0xff]
    %v492 = vld [vmem:[#allocation4 + $0xb0] sm:$0xff]
    %v493 = vld [vmem:[#allocation4 + $0xb8] sm:$0xff]
    %v494 = vld [vmem:[#allocation4 + $0xc0] sm:$0xff]
    %v495 = vld [vmem:[#allocation4 + $0xc8] sm:$0xff]
    %v496 = vld [vmem:[#allocation4 + $0xd0] sm:$0xff]
    %v497 = vld [vmem:[#allocation4 + $0xd8] sm:$0xff]
    %v498 = vld [vmem:[#allocation4 + $0xe0] sm:$0xff]
    %v499 = vld [vmem:[#allocation4 + $0xe8] sm:$0xff]
    %v500 = vld [vmem:[#allocation4 + $0xf0] sm:$0xff]
    %v501 = vld [vmem:[#allocation4 + $0xf8] sm:$0xff]
    %v502 = vld [vmem:[#allocation4 + $0x100] sm:$0xff]
    %v503 = vld [vmem:[#allocation4 + $0x108] sm:$0xff]
    %v504 = vld [vmem:[#allocation4 + $0x110] sm:$0xff]
    %v505 = vld [vmem:[#allocation4 + $0x118] sm:$0xff]
    %v506 = vld [vmem:[#allocation4 + $0x120] sm:$0xff]
    %v507 = vld [vmem:[#allocation4 + $0x128] sm:$0xff]
    %v508 = vld [vmem:[#allocation4 + $0x130] sm:$0xff]
    %v509 = vld [vmem:[#allocation4 + $0x138] sm:$0xff]
    %v510 = vld [vmem:[#allocation4 + $0x140] sm:$0xff]
    %v511 = vld [vmem:[#allocation4 + $0x148] sm:$0xff]
    %v512 = vld [vmem:[#allocation4 + $0x150] sm:$0xff]
    %v513 = vld [vmem:[#allocation4 + $0x158] sm:$0xff]
    %v514 = vld [vmem:[#allocation4 + $0x160] sm:$0xff]
    %v515 = vld [vmem:[#allocation4 + $0x168] sm:$0xff]
    %v516 = vld [vmem:[#allocation4 + $0x170] sm:$0xff]
    %v517 = vld [vmem:[#allocation4 + $0x178] sm:$0xff]
    %v518 = vld [vmem:[#allocation4 + $0x180] sm:$0xff]
    %v519 = vld [vmem:[#allocation4 + $0x188] sm:$0xff]
    %v520 = vld [vmem:[#allocation4 + $0x190] sm:$0xff]
    %v521 = vld [vmem:[#allocation4 + $0x198] sm:$0xff]
    %v522 = vld [vmem:[#allocation4 + $0x1a0] sm:$0xff]
    %v523 = vld [vmem:[#allocation4 + $0x1a8] sm:$0xff]
    %v524 = vld [vmem:[#allocation4 + $0x1b0] sm:$0xff]
    %v525 = vld [vmem:[#allocation4 + $0x1b8] sm:$0xff]
    %v526 = vld [vmem:[#allocation4 + $0x1c0] sm:$0xff]
    %v527 = vld [vmem:[#allocation4 + $0x1c8] sm:$0xff]
    %v528 = vld [vmem:[#allocation4 + $0x1d0] sm:$0xff]
    %v529 = vld [vmem:[#allocation4 + $0x1d8] sm:$0xff]
    %v530 = vld [vmem:[#allocation4 + $0x1e0] sm:$0xff]
    %v531 = vld [vmem:[#allocation4 + $0x1e8] sm:$0xff]
    %v532 = vld [vmem:[#allocation4 + $0x1f0] sm:$0xff]
    %v533 = vld [vmem:[#allocation4 + $0x1f8] sm:$0xff]
    %v534 = vld [vmem:[#allocation4 + $0x200] sm:$0xff]
    %v535 = vld [vmem:[#allocation4 + $0x208] sm:$0xff]
    %v536 = vld [vmem:[#allocation4 + $0x210] sm:$0xff]
    %v537 = vld [vmem:[#allocation4 + $0x218] sm:$0xff]
    %v538 = vld [vmem:[#allocation4 + $0x220] sm:$0xff]
    %v539 = vld [vmem:[#allocation4 + $0x228] sm:$0xff]
    %v540 = vld [vmem:[#allocation4 + $0x230] sm:$0xff]
    %v541 = vld [vmem:[#allocation4 + $0x238] sm:$0xff]
    %v542 = vld [vmem:[#allocation4 + $0x240] sm:$0xff]
    %v543 = vld [vmem:[#allocation4 + $0x248] sm:$0xff]
    %v544 = vld [vmem:[#allocation4 + $0x250] sm:$0xff]
    %v545 = vld [vmem:[#allocation4 + $0x258] sm:$0xff]
    %v546 = vld [vmem:[#allocation4 + $0x260] sm:$0xff]
    %v547 = vld [vmem:[#allocation4 + $0x268] sm:$0xff]
    %v548 = vld [vmem:[#allocation4 + $0x270] sm:$0xff]
    %v549 = vld [vmem:[#allocation4 + $0x278] sm:$0xff]
    %v550 = vld [vmem:[#allocation4 + $0x280] sm:$0xff]
    %v551 = vld [vmem:[#allocation4 + $0x288] sm:$0xff]
    %v552 = vld [vmem:[#allocation4 + $0x290] sm:$0xff]
    %v553 = vld [vmem:[#allocation4 + $0x298] sm:$0xff]
    %v554 = vld [vmem:[#allocation4 + $0x2a0] sm:$0xff]
    %v555 = vld [vmem:[#allocation4 + $0x2a8] sm:$0xff]
    %v556 = vld [vmem:[#allocation4 + $0x2b0] sm:$0xff]
    %v557 = vld [vmem:[#allocation4 + $0x2b8] sm:$0xff]
    %v558 = vld [vmem:[#allocation4 + $0x2c0] sm:$0xff]
    %v559 = vld [vmem:[#allocation4 + $0x2c8] sm:$0xff]
    %v560 = vld [vmem:[#allocation4 + $0x2d0] sm:$0xff]
    %v561 = vld [vmem:[#allocation4 + $0x2d8] sm:$0xff]
    %v562 = vld [vmem:[#allocation4 + $0x2e0] sm:$0xff]
    %v563 = vld [vmem:[#allocation4 + $0x2e8] sm:$0xff]
    %v564 = vld [vmem:[#allocation4 + $0x2f0] sm:$0xff]
    %v565 = vld [vmem:[#allocation4 + $0x2f8] sm:$0xff]
    %v566 = vld [vmem:[#allocation4 + $0x300] sm:$0xff]
    %v567 = vld [vmem:[#allocation4 + $0x308] sm:$0xff]
    %v568 = vld [vmem:[#allocation4 + $0x310] sm:$0xff]
    %v569 = vld [vmem:[#allocation4 + $0x318] sm:$0xff]
    %v570 = vld [vmem:[#allocation4 + $0x320] sm:$0xff]
    %v571 = vld [vmem:[#allocation4 + $0x328] sm:$0xff]
    %v572 = vld [vmem:[#allocation4 + $0x330] sm:$0xff]
    %v573 = vld [vmem:[#allocation4 + $0x338] sm:$0xff]
    %v574 = vld [vmem:[#allocation4 + $0x340] sm:$0xff]
    %v575 = vld [vmem:[#allocation4 + $0x348] sm:$0xff]
    %v576 = vld [vmem:[#allocation4 + $0x350] sm:$0xff]
    %v577 = vld [vmem:[#allocation4 + $0x358] sm:$0xff]
    %v578 = vld [vmem:[#allocation4 + $0x360] sm:$0xff]
    %v579 = vld [vmem:[#allocation4 + $0x368] sm:$0xff]
    %v580 = vld [vmem:[#allocation4 + $0x370] sm:$0xff]
    %v581 = vld [vmem:[#allocation4 + $0x378] sm:$0xff]
    %v582 = vld [vmem:[#allocation4 + $0x380] sm:$0xff]
    %v583 = vld [vmem:[#allocation4 + $0x388] sm:$0xff]
    %v584 = vld [vmem:[#allocation4 + $0x390] sm:$0xff]
    %v585 = vld [vmem:[#allocation4 + $0x398] sm:$0xff]
    %v586 = vld [vmem:[#allocation4 + $0x3a0] sm:$0xff]
    %v587 = vld [vmem:[#allocation4 + $0x3a8] sm:$0xff]
    %v588 = vld [vmem:[#allocation4 + $0x3b0] sm:$0xff]
    %v589 = vld [vmem:[#allocation4 + $0x3b8] sm:$0xff]
    %v590 = vld [vmem:[#allocation4 + $0x3c0] sm:$0xff]
    %v591 = vld [vmem:[#allocation4 + $0x3c8] sm:$0xff]
    %v592 = vld [vmem:[#allocation4 + $0x3d0] sm:$0xff]
    %v593 = vld [vmem:[#allocation4 + $0x3d8] sm:$0xff]
    %v594 = vld [vmem:[#allocation4 + $0x3e0] sm:$0xff]
    %v595 = vld [vmem:[#allocation4 + $0x3e8] sm:$0xff]
    %v596 = vld [vmem:[#allocation4 + $0x3f0] sm:$0xff]
    %v597 = vld [vmem:[#allocation4 + $0x3f8] sm:$0xff]
    %v598 = vunpack.c.0.s8 %v470
    %v599 = vunpack.c.0.s8 %v471
    %v600 = vunpack.c.0.s8 %v472
    %v601 = vunpack.c.0.s8 %v473
    %v602 = vunpack.c.1.s8 %v470
    %v603 = vunpack.c.1.s8 %v471
    %v604 = vunpack.c.1.s8 %v472
    %v605 = vunpack.c.1.s8 %v473
    %v606 = vunpack.c.2.s8 %v470
    %v607 = vunpack.c.2.s8 %v471
    %v608 = vunpack.c.2.s8 %v472
    %v609 = vunpack.c.2.s8 %v473
    %v610 = vunpack.c.3.s8 %v470
    %v611 = vunpack.c.3.s8 %v471
    %v612 = vunpack.c.3.s8 %v472
    %v613 = vunpack.c.3.s8 %v473
    %v614 = vunpack.c.0.s8 %v474
    %v615 = vunpack.c.0.s8 %v475
    %v616 = vunpack.c.0.s8 %v476
    %v617 = vunpack.c.0.s8 %v477
    %v618 = vunpack.c.1.s8 %v474
    %v619 = vunpack.c.1.s8 %v475
    %v620 = vunpack.c.1.s8 %v476
    %v621 = vunpack.c.1.s8 %v477
    %v622 = vunpack.c.2.s8 %v474
    %v623 = vunpack.c.2.s8 %v475
    %v624 = vunpack.c.2.s8 %v476
    %v625 = vunpack.c.2.s8 %v477
    %v626 = vunpack.c.3.s8 %v474
    %v627 = vunpack.c.3.s8 %v475
    %v628 = vunpack.c.3.s8 %v476
    %v629 = vunpack.c.3.s8 %v477
    %v630 = vunpack.c.0.s8 %v478
    %v631 = vunpack.c.0.s8 %v479
    %v632 = vunpack.c.0.s8 %v480
    %v633 = vunpack.c.0.s8 %v481
    %v634 = vunpack.c.1.s8 %v478
    %v635 = vunpack.c.1.s8 %v479
    %v636 = vunpack.c.1.s8 %v480
    %v637 = vunpack.c.1.s8 %v481
    %v638 = vunpack.c.2.s8 %v478
    %v639 = vunpack.c.2.s8 %v479
    %v640 = vunpack.c.2.s8 %v480
    %v641 = vunpack.c.2.s8 %v481
    %v642 = vunpack.c.3.s8 %v478
    %v643 = vunpack.c.3.s8 %v479
    %v644 = vunpack.c.3.s8 %v480
    %v645 = vunpack.c.3.s8 %v481
    %v646 = vunpack.c.0.s8 %v482
    %v647 = vunpack.c.0.s8 %v483
    %v648 = vunpack.c.0.s8 %v484
    %v649 = vunpack.c.0.s8 %v485
    %v650 = vunpack.c.1.s8 %v482
    %v651 = vunpack.c.1.s8 %v483
    %v652 = vunpack.c.1.s8 %v484
    %v653 = vunpack.c.1.s8 %v485
    %v654 = vunpack.c.2.s8 %v482
    %v655 = vunpack.c.2.s8 %v483
    %v656 = vunpack.c.2.s8 %v484
    %v657 = vunpack.c.2.s8 %v485
    %v658 = vunpack.c.3.s8 %v482
    %v659 = vunpack.c.3.s8 %v483
    %v660 = vunpack.c.3.s8 %v484
    %v661 = vunpack.c.3.s8 %v485
    %v662 = vunpack.c.0.s8 %v486
    %v663 = vunpack.c.0.s8 %v487
    %v664 = vunpack.c.0.s8 %v488
    %v665 = vunpack.c.0.s8 %v489
    %v666 = vunpack.c.1.s8 %v486
    %v667 = vunpack.c.1.s8 %v487
    %v668 = vunpack.c.1.s8 %v488
    %v669 = vunpack.c.1.s8 %v489
    %v670 = vunpack.c.2.s8 %v486
    %v671 = vunpack.c.2.s8 %v487
    %v672 = vunpack.c.2.s8 %v488
    %v673 = vunpack.c.2.s8 %v489
    %v674 = vunpack.c.3.s8 %v486
    %v675 = vunpack.c.3.s8 %v487
    %v676 = vunpack.c.3.s8 %v488
    %v677 = vunpack.c.3.s8 %v489
    %v678 = vunpack.c.0.s8 %v490
    %v679 = vunpack.c.0.s8 %v491
    %v680 = vunpack.c.0.s8 %v492
    %v681 = vunpack.c.0.s8 %v493
    %v682 = vunpack.c.1.s8 %v490
    %v683 = vunpack.c.1.s8 %v491
    %v684 = vunpack.c.1.s8 %v492
    %v685 = vunpack.c.1.s8 %v493
    %v686 = vunpack.c.2.s8 %v490
    %v687 = vunpack.c.2.s8 %v491
    %v688 = vunpack.c.2.s8 %v492
    %v689 = vunpack.c.2.s8 %v493
    %v690 = vunpack.c.3.s8 %v490
    %v691 = vunpack.c.3.s8 %v491
    %v692 = vunpack.c.3.s8 %v492
    %v693 = vunpack.c.3.s8 %v493
    %v694 = vunpack.c.0.s8 %v494
    %v695 = vunpack.c.0.s8 %v495
    %v696 = vunpack.c.0.s8 %v496
    %v697 = vunpack.c.0.s8 %v497
    %v698 = vunpack.c.1.s8 %v494
    %v699 = vunpack.c.1.s8 %v495
    %v700 = vunpack.c.1.s8 %v496
    %v701 = vunpack.c.1.s8 %v497
    %v702 = vunpack.c.2.s8 %v494
    %v703 = vunpack.c.2.s8 %v495
    %v704 = vunpack.c.2.s8 %v496
    %v705 = vunpack.c.2.s8 %v497
    %v706 = vunpack.c.3.s8 %v494
    %v707 = vunpack.c.3.s8 %v495
    %v708 = vunpack.c.3.s8 %v496
    %v709 = vunpack.c.3.s8 %v497
    %v710 = vunpack.c.0.s8 %v498
    %v711 = vunpack.c.0.s8 %v499
    %v712 = vunpack.c.0.s8 %v500
    %v713 = vunpack.c.0.s8 %v501
    %v714 = vunpack.c.1.s8 %v498
    %v715 = vunpack.c.1.s8 %v499
    %v716 = vunpack.c.1.s8 %v500
    %v717 = vunpack.c.1.s8 %v501
    %v718 = vunpack.c.2.s8 %v498
    %v719 = vunpack.c.2.s8 %v499
    %v720 = vunpack.c.2.s8 %v500
    %v721 = vunpack.c.2.s8 %v501
    %v722 = vunpack.c.3.s8 %v498
    %v723 = vunpack.c.3.s8 %v499
    %v724 = vunpack.c.3.s8 %v500
    %v725 = vunpack.c.3.s8 %v501
    %v726 = vunpack.c.0.s8 %v502
    %v727 = vunpack.c.0.s8 %v503
    %v728 = vunpack.c.0.s8 %v504
    %v729 = vunpack.c.0.s8 %v505
    %v730 = vunpack.c.1.s8 %v502
    %v731 = vunpack.c.1.s8 %v503
    %v732 = vunpack.c.1.s8 %v504
    %v733 = vunpack.c.1.s8 %v505
    %v734 = vunpack.c.2.s8 %v502
    %v735 = vunpack.c.2.s8 %v503
    %v736 = vunpack.c.2.s8 %v504
    %v737 = vunpack.c.2.s8 %v505
    %v738 = vunpack.c.3.s8 %v502
    %v739 = vunpack.c.3.s8 %v503
    %v740 = vunpack.c.3.s8 %v504
    %v741 = vunpack.c.3.s8 %v505
    %v742 = vunpack.c.0.s8 %v506
    %v743 = vunpack.c.0.s8 %v507
    %v744 = vunpack.c.0.s8 %v508
    %v745 = vunpack.c.0.s8 %v509
    %v746 = vunpack.c.1.s8 %v506
    %v747 = vunpack.c.1.s8 %v507
    %v748 = vunpack.c.1.s8 %v508
    %v749 = vunpack.c.1.s8 %v509
    %v750 = vunpack.c.2.s8 %v506
    %v751 = vunpack.c.2.s8 %v507
    %v752 = vunpack.c.2.s8 %v508
    %v753 = vunpack.c.2.s8 %v509
    %v754 = vunpack.c.3.s8 %v506
    %v755 = vunpack.c.3.s8 %v507
    %v756 = vunpack.c.3.s8 %v508
    %v757 = vunpack.c.3.s8 %v509
    %v758 = vunpack.c.0.s8 %v510
    %v759 = vunpack.c.0.s8 %v511
    %v760 = vunpack.c.0.s8 %v512
    %v761 = vunpack.c.0.s8 %v513
    %v762 = vunpack.c.1.s8 %v510
    %v763 = vunpack.c.1.s8 %v511
    %v764 = vunpack.c.1.s8 %v512
    %v765 = vunpack.c.1.s8 %v513
    %v766 = vunpack.c.2.s8 %v510
    %v767 = vunpack.c.2.s8 %v511
    %v768 = vunpack.c.2.s8 %v512
    %v769 = vunpack.c.2.s8 %v513
    %v770 = vunpack.c.3.s8 %v510
    %v771 = vunpack.c.3.s8 %v511
    %v772 = vunpack.c.3.s8 %v512
    %v773 = vunpack.c.3.s8 %v513
    %v774 = vunpack.c.0.s8 %v514
    %v775 = vunpack.c.0.s8 %v515
    %v776 = vunpack.c.0.s8 %v516
    %v777 = vunpack.c.0.s8 %v517
    %v778 = vunpack.c.1.s8 %v514
    %v779 = vunpack.c.1.s8 %v515
    %v780 = vunpack.c.1.s8 %v516
    %v781 = vunpack.c.1.s8 %v517
    %v782 = vunpack.c.2.s8 %v514
    %v783 = vunpack.c.2.s8 %v515
    %v784 = vunpack.c.2.s8 %v516
    %v785 = vunpack.c.2.s8 %v517
    %v786 = vunpack.c.3.s8 %v514
    %v787 = vunpack.c.3.s8 %v515
    %v788 = vunpack.c.3.s8 %v516
    %v789 = vunpack.c.3.s8 %v517
    %v790 = vunpack.c.0.s8 %v518
    %v791 = vunpack.c.0.s8 %v519
    %v792 = vunpack.c.0.s8 %v520
    %v793 = vunpack.c.0.s8 %v521
    %v794 = vunpack.c.1.s8 %v518
    %v795 = vunpack.c.1.s8 %v519
    %v796 = vunpack.c.1.s8 %v520
    %v797 = vunpack.c.1.s8 %v521
    %v798 = vunpack.c.2.s8 %v518
    %v799 = vunpack.c.2.s8 %v519
    %v800 = vunpack.c.2.s8 %v520
    %v801 = vunpack.c.2.s8 %v521
    %v802 = vunpack.c.3.s8 %v518
    %v803 = vunpack.c.3.s8 %v519
    %v804 = vunpack.c.3.s8 %v520
    %v805 = vunpack.c.3.s8 %v521
    %v806 = vunpack.c.0.s8 %v522
    %v807 = vunpack.c.0.s8 %v523
    %v808 = vunpack.c.0.s8 %v524
    %v809 = vunpack.c.0.s8 %v525
    %v810 = vunpack.c.1.s8 %v522
    %v811 = vunpack.c.1.s8 %v523
    %v812 = vunpack.c.1.s8 %v524
    %v813 = vunpack.c.1.s8 %v525
    %v814 = vunpack.c.2.s8 %v522
    %v815 = vunpack.c.2.s8 %v523
    %v816 = vunpack.c.2.s8 %v524
    %v817 = vunpack.c.2.s8 %v525
    %v818 = vunpack.c.3.s8 %v522
    %v819 = vunpack.c.3.s8 %v523
    %v820 = vunpack.c.3.s8 %v524
    %v821 = vunpack.c.3.s8 %v525
    %v822 = vunpack.c.0.s8 %v526
    %v823 = vunpack.c.0.s8 %v527
    %v824 = vunpack.c.0.s8 %v528
    %v825 = vunpack.c.0.s8 %v529
    %v826 = vunpack.c.1.s8 %v526
    %v827 = vunpack.c.1.s8 %v527
    %v828 = vunpack.c.1.s8 %v528
    %v829 = vunpack.c.1.s8 %v529
    %v830 = vunpack.c.2.s8 %v526
    %v831 = vunpack.c.2.s8 %v527
    %v832 = vunpack.c.2.s8 %v528
    %v833 = vunpack.c.2.s8 %v529
    %v834 = vunpack.c.3.s8 %v526
    %v835 = vunpack.c.3.s8 %v527
    %v836 = vunpack.c.3.s8 %v528
    %v837 = vunpack.c.3.s8 %v529
    %v838 = vunpack.c.0.s8 %v530
    %v839 = vunpack.c.0.s8 %v531
    %v840 = vunpack.c.0.s8 %v532
    %v841 = vunpack.c.0.s8 %v533
    %v842 = vunpack.c.1.s8 %v530
    %v843 = vunpack.c.1.s8 %v531
    %v844 = vunpack.c.1.s8 %v532
    %v845 = vunpack.c.1.s8 %v533
    %v846 = vunpack.c.2.s8 %v530
    %v847 = vunpack.c.2.s8 %v531
    %v848 = vunpack.c.2.s8 %v532
    %v849 = vunpack.c.2.s8 %v533
    %v850 = vunpack.c.3.s8 %v530
    %v851 = vunpack.c.3.s8 %v531
    %v852 = vunpack.c.3.s8 %v532
    %v853 = vunpack.c.3.s8 %v533
    %v854 = vunpack.c.0.s8 %v534
    %v855 = vunpack.c.0.s8 %v535
    %v856 = vunpack.c.0.s8 %v536
    %v857 = vunpack.c.0.s8 %v537
    %v858 = vunpack.c.1.s8 %v534
    %v859 = vunpack.c.1.s8 %v535
    %v860 = vunpack.c.1.s8 %v536
    %v861 = vunpack.c.1.s8 %v537
    %v862 = vunpack.c.2.s8 %v534
    %v863 = vunpack.c.2.s8 %v535
    %v864 = vunpack.c.2.s8 %v536
    %v865 = vunpack.c.2.s8 %v537
    %v866 = vunpack.c.3.s8 %v534
    %v867 = vunpack.c.3.s8 %v535
    %v868 = vunpack.c.3.s8 %v536
    %v869 = vunpack.c.3.s8 %v537
    %v870 = vunpack.c.0.s8 %v538
    %v871 = vunpack.c.0.s8 %v539
    %v872 = vunpack.c.0.s8 %v540
    %v873 = vunpack.c.0.s8 %v541
    %v874 = vunpack.c.1.s8 %v538
    %v875 = vunpack.c.1.s8 %v539
    %v876 = vunpack.c.1.s8 %v540
    %v877 = vunpack.c.1.s8 %v541
    %v878 = vunpack.c.2.s8 %v538
    %v879 = vunpack.c.2.s8 %v539
    %v880 = vunpack.c.2.s8 %v540
    %v881 = vunpack.c.2.s8 %v541
    %v882 = vunpack.c.3.s8 %v538
    %v883 = vunpack.c.3.s8 %v539
    %v884 = vunpack.c.3.s8 %v540
    %v885 = vunpack.c.3.s8 %v541
    %v886 = vunpack.c.0.s8 %v542
    %v887 = vunpack.c.0.s8 %v543
    %v888 = vunpack.c.0.s8 %v544
    %v889 = vunpack.c.0.s8 %v545
    %v890 = vunpack.c.1.s8 %v542
    %v891 = vunpack.c.1.s8 %v543
    %v892 = vunpack.c.1.s8 %v544
    %v893 = vunpack.c.1.s8 %v545
    %v894 = vunpack.c.2.s8 %v542
    %v895 = vunpack.c.2.s8 %v543
    %v896 = vunpack.c.2.s8 %v544
    %v897 = vunpack.c.2.s8 %v545
    %v898 = vunpack.c.3.s8 %v542
    %v899 = vunpack.c.3.s8 %v543
    %v900 = vunpack.c.3.s8 %v544
    %v901 = vunpack.c.3.s8 %v545
    %v902 = vunpack.c.0.s8 %v546
    %v903 = vunpack.c.0.s8 %v547
    %v904 = vunpack.c.0.s8 %v548
    %v905 = vunpack.c.0.s8 %v549
    %v906 = vunpack.c.1.s8 %v546
    %v907 = vunpack.c.1.s8 %v547
    %v908 = vunpack.c.1.s8 %v548
    %v909 = vunpack.c.1.s8 %v549
    %v910 = vunpack.c.2.s8 %v546
    %v911 = vunpack.c.2.s8 %v547
    %v912 = vunpack.c.2.s8 %v548
    %v913 = vunpack.c.2.s8 %v549
    %v914 = vunpack.c.3.s8 %v546
    %v915 = vunpack.c.3.s8 %v547
    %v916 = vunpack.c.3.s8 %v548
    %v917 = vunpack.c.3.s8 %v549
    %v918 = vunpack.c.0.s8 %v550
    %v919 = vunpack.c.0.s8 %v551
    %v920 = vunpack.c.0.s8 %v552
    %v921 = vunpack.c.0.s8 %v553
    %v922 = vunpack.c.1.s8 %v550
    %v923 = vunpack.c.1.s8 %v551
    %v924 = vunpack.c.1.s8 %v552
    %v925 = vunpack.c.1.s8 %v553
    %v926 = vunpack.c.2.s8 %v550
    %v927 = vunpack.c.2.s8 %v551
    %v928 = vunpack.c.2.s8 %v552
    %v929 = vunpack.c.2.s8 %v553
    %v930 = vunpack.c.3.s8 %v550
    %v931 = vunpack.c.3.s8 %v551
    %v932 = vunpack.c.3.s8 %v552
    %v933 = vunpack.c.3.s8 %v553
    %v934 = vunpack.c.0.s8 %v554
    %v935 = vunpack.c.0.s8 %v555
    %v936 = vunpack.c.0.s8 %v556
    %v937 = vunpack.c.0.s8 %v557
    %v938 = vunpack.c.1.s8 %v554
    %v939 = vunpack.c.1.s8 %v555
    %v940 = vunpack.c.1.s8 %v556
    %v941 = vunpack.c.1.s8 %v557
    %v942 = vunpack.c.2.s8 %v554
    %v943 = vunpack.c.2.s8 %v555
    %v944 = vunpack.c.2.s8 %v556
    %v945 = vunpack.c.2.s8 %v557
    %v946 = vunpack.c.3.s8 %v554
    %v947 = vunpack.c.3.s8 %v555
    %v948 = vunpack.c.3.s8 %v556
    %v949 = vunpack.c.3.s8 %v557
    %v950 = vunpack.c.0.s8 %v558
    %v951 = vunpack.c.0.s8 %v559
    %v952 = vunpack.c.0.s8 %v560
    %v953 = vunpack.c.0.s8 %v561
    %v954 = vunpack.c.1.s8 %v558
    %v955 = vunpack.c.1.s8 %v559
    %v956 = vunpack.c.1.s8 %v560
    %v957 = vunpack.c.1.s8 %v561
    %v958 = vunpack.c.2.s8 %v558
    %v959 = vunpack.c.2.s8 %v559
    %v960 = vunpack.c.2.s8 %v560
    %v961 = vunpack.c.2.s8 %v561
    %v962 = vunpack.c.3.s8 %v558
    %v963 = vunpack.c.3.s8 %v559
    %v964 = vunpack.c.3.s8 %v560
    %v965 = vunpack.c.3.s8 %v561
    %v966 = vunpack.c.0.s8 %v562
    %v967 = vunpack.c.0.s8 %v563
    %v968 = vunpack.c.0.s8 %v564
    %v969 = vunpack.c.0.s8 %v565
    %v970 = vunpack.c.1.s8 %v562
    %v971 = vunpack.c.1.s8 %v563
    %v972 = vunpack.c.1.s8 %v564
    %v973 = vunpack.c.1.s8 %v565
    %v974 = vunpack.c.2.s8 %v562
    %v975 = vunpack.c.2.s8 %v563
    %v976 = vunpack.c.2.s8 %v564
    %v977 = vunpack.c.2.s8 %v565
    %v978 = vunpack.c.3.s8 %v562
    %v979 = vunpack.c.3.s8 %v563
    %v980 = vunpack.c.3.s8 %v564
    %v981 = vunpack.c.3.s8 %v565
    %v982 = vunpack.c.0.s8 %v566
    %v983 = vunpack.c.0.s8 %v567
    %v984 = vunpack.c.0.s8 %v568
    %v985 = vunpack.c.0.s8 %v569
    %v986 = vunpack.c.1.s8 %v566
    %v987 = vunpack.c.1.s8 %v567
    %v988 = vunpack.c.1.s8 %v568
    %v989 = vunpack.c.1.s8 %v569
    %v990 = vunpack.c.2.s8 %v566
    %v991 = vunpack.c.2.s8 %v567
    %v992 = vunpack.c.2.s8 %v568
    %v993 = vunpack.c.2.s8 %v569
    %v994 = vunpack.c.3.s8 %v566
    %v995 = vunpack.c.3.s8 %v567
    %v996 = vunpack.c.3.s8 %v568
    %v997 = vunpack.c.3.s8 %v569
    %v998 = vunpack.c.0.s8 %v570
    %v999 = vunpack.c.0.s8 %v571
    %v1000 = vunpack.c.0.s8 %v572
    %v1001 = vunpack.c.0.s8 %v573
    %v1002 = vunpack.c.1.s8 %v570
    %v1003 = vunpack.c.1.s8 %v571
    %v1004 = vunpack.c.1.s8 %v572
    %v1005 = vunpack.c.1.s8 %v573
    %v1006 = vunpack.c.2.s8 %v570
    %v1007 = vunpack.c.2.s8 %v571
    %v1008 = vunpack.c.2.s8 %v572
    %v1009 = vunpack.c.2.s8 %v573
    %v1010 = vunpack.c.3.s8 %v570
    %v1011 = vunpack.c.3.s8 %v571
    %v1012 = vunpack.c.3.s8 %v572
    %v1013 = vunpack.c.3.s8 %v573
    %v1014 = vunpack.c.0.s8 %v574
    %v1015 = vunpack.c.0.s8 %v575
    %v1016 = vunpack.c.0.s8 %v576
    %v1017 = vunpack.c.0.s8 %v577
    %v1018 = vunpack.c.1.s8 %v574
    %v1019 = vunpack.c.1.s8 %v575
    %v1020 = vunpack.c.1.s8 %v576
    %v1021 = vunpack.c.1.s8 %v577
    %v1022 = vunpack.c.2.s8 %v574
    %v1023 = vunpack.c.2.s8 %v575
    %v1024 = vunpack.c.2.s8 %v576
    %v1025 = vunpack.c.2.s8 %v577
    %v1026 = vunpack.c.3.s8 %v574
    %v1027 = vunpack.c.3.s8 %v575
    %v1028 = vunpack.c.3.s8 %v576
    %v1029 = vunpack.c.3.s8 %v577
    %v1030 = vunpack.c.0.s8 %v578
    %v1031 = vunpack.c.0.s8 %v579
    %v1032 = vunpack.c.0.s8 %v580
    %v1033 = vunpack.c.0.s8 %v581
    %v1034 = vunpack.c.1.s8 %v578
    %v1035 = vunpack.c.1.s8 %v579
    %v1036 = vunpack.c.1.s8 %v580
    %v1037 = vunpack.c.1.s8 %v581
    %v1038 = vunpack.c.2.s8 %v578
    %v1039 = vunpack.c.2.s8 %v579
    %v1040 = vunpack.c.2.s8 %v580
    %v1041 = vunpack.c.2.s8 %v581
    %v1042 = vunpack.c.3.s8 %v578
    %v1043 = vunpack.c.3.s8 %v579
    %v1044 = vunpack.c.3.s8 %v580
    %v1045 = vunpack.c.3.s8 %v581
    %v1046 = vunpack.c.0.s8 %v582
    %v1047 = vunpack.c.0.s8 %v583
    %v1048 = vunpack.c.0.s8 %v584
    %v1049 = vunpack.c.0.s8 %v585
    %v1050 = vunpack.c.1.s8 %v582
    %v1051 = vunpack.c.1.s8 %v583
    %v1052 = vunpack.c.1.s8 %v584
    %v1053 = vunpack.c.1.s8 %v585
    %v1054 = vunpack.c.2.s8 %v582
    %v1055 = vunpack.c.2.s8 %v583
    %v1056 = vunpack.c.2.s8 %v584
    %v1057 = vunpack.c.2.s8 %v585
    %v1058 = vunpack.c.3.s8 %v582
    %v1059 = vunpack.c.3.s8 %v583
    %v1060 = vunpack.c.3.s8 %v584
    %v1061 = vunpack.c.3.s8 %v585
    %v1062 = vunpack.c.0.s8 %v586
    %v1063 = vunpack.c.0.s8 %v587
    %v1064 = vunpack.c.0.s8 %v588
    %v1065 = vunpack.c.0.s8 %v589
    %v1066 = vunpack.c.1.s8 %v586
    %v1067 = vunpack.c.1.s8 %v587
    %v1068 = vunpack.c.1.s8 %v588
    %v1069 = vunpack.c.1.s8 %v589
    %v1070 = vunpack.c.2.s8 %v586
    %v1071 = vunpack.c.2.s8 %v587
    %v1072 = vunpack.c.2.s8 %v588
    %v1073 = vunpack.c.2.s8 %v589
    %v1074 = vunpack.c.3.s8 %v586
    %v1075 = vunpack.c.3.s8 %v587
    %v1076 = vunpack.c.3.s8 %v588
    %v1077 = vunpack.c.3.s8 %v589
    %v1078 = vunpack.c.0.s8 %v590
    %v1079 = vunpack.c.0.s8 %v591
    %v1080 = vunpack.c.0.s8 %v592
    %v1081 = vunpack.c.0.s8 %v593
    %v1082 = vunpack.c.1.s8 %v590
    %v1083 = vunpack.c.1.s8 %v591
    %v1084 = vunpack.c.1.s8 %v592
    %v1085 = vunpack.c.1.s8 %v593
    %v1086 = vunpack.c.2.s8 %v590
    %v1087 = vunpack.c.2.s8 %v591
    %v1088 = vunpack.c.2.s8 %v592
    %v1089 = vunpack.c.2.s8 %v593
    %v1090 = vunpack.c.3.s8 %v590
    %v1091 = vunpack.c.3.s8 %v591
    %v1092 = vunpack.c.3.s8 %v592
    %v1093 = vunpack.c.3.s8 %v593
    %v1094 = vunpack.c.0.s8 %v594
    %v1095 = vunpack.c.0.s8 %v595
    %v1096 = vunpack.c.0.s8 %v596
    %v1097 = vunpack.c.0.s8 %v597
    %v1098 = vunpack.c.1.s8 %v594
    %v1099 = vunpack.c.1.s8 %v595
    %v1100 = vunpack.c.1.s8 %v596
    %v1101 = vunpack.c.1.s8 %v597
    %v1102 = vunpack.c.2.s8 %v594
    %v1103 = vunpack.c.2.s8 %v595
    %v1104 = vunpack.c.2.s8 %v596
    %v1105 = vunpack.c.2.s8 %v597
    %v1106 = vunpack.c.3.s8 %v594
    %v1107 = vunpack.c.3.s8 %v595
    %v1108 = vunpack.c.3.s8 %v596
    %v1109 = vunpack.c.3.s8 %v597
    %v1110 = vcvt.s32.f32 %v598
    %v1111 = vcvt.s32.f32 %v599
    %v1112 = vcvt.s32.f32 %v600
    %v1113 = vcvt.s32.f32 %v601
    %v1114 = vcvt.s32.f32 %v602
    %v1115 = vcvt.s32.f32 %v603
    %v1116 = vcvt.s32.f32 %v604
    %v1117 = vcvt.s32.f32 %v605
    %v1118 = vcvt.s32.f32 %v606
    %v1119 = vcvt.s32.f32 %v607
    %v1120 = vcvt.s32.f32 %v608
    %v1121 = vcvt.s32.f32 %v609
    %v1122 = vcvt.s32.f32 %v610
    %v1123 = vcvt.s32.f32 %v611
    %v1124 = vcvt.s32.f32 %v612
    %v1125 = vcvt.s32.f32 %v613
    %v1126 = vcvt.s32.f32 %v614
    %v1127 = vcvt.s32.f32 %v615
    %v1128 = vcvt.s32.f32 %v616
    %v1129 = vcvt.s32.f32 %v617
    %v1130 = vcvt.s32.f32 %v618
    %v1131 = vcvt.s32.f32 %v619
    %v1132 = vcvt.s32.f32 %v620
    %v1133 = vcvt.s32.f32 %v621
    %v1134 = vcvt.s32.f32 %v622
    %v1135 = vcvt.s32.f32 %v623
    %v1136 = vcvt.s32.f32 %v624
    %v1137 = vcvt.s32.f32 %v625
    %v1138 = vcvt.s32.f32 %v626
    %v1139 = vcvt.s32.f32 %v627
    %v1140 = vcvt.s32.f32 %v628
    %v1141 = vcvt.s32.f32 %v629
    %v1142 = vcvt.s32.f32 %v630
    %v1143 = vcvt.s32.f32 %v631
    %v1144 = vcvt.s32.f32 %v632
    %v1145 = vcvt.s32.f32 %v633
    %v1146 = vcvt.s32.f32 %v634
    %v1147 = vcvt.s32.f32 %v635
    %v1148 = vcvt.s32.f32 %v636
    %v1149 = vcvt.s32.f32 %v637
    %v1150 = vcvt.s32.f32 %v638
    %v1151 = vcvt.s32.f32 %v639
    %v1152 = vcvt.s32.f32 %v640
    %v1153 = vcvt.s32.f32 %v641
    %v1154 = vcvt.s32.f32 %v642
    %v1155 = vcvt.s32.f32 %v643
    %v1156 = vcvt.s32.f32 %v644
    %v1157 = vcvt.s32.f32 %v645
    %v1158 = vcvt.s32.f32 %v646
    %v1159 = vcvt.s32.f32 %v647
    %v1160 = vcvt.s32.f32 %v648
    %v1161 = vcvt.s32.f32 %v649
    %v1162 = vcvt.s32.f32 %v650
    %v1163 = vcvt.s32.f32 %v651
    %v1164 = vcvt.s32.f32 %v652
    %v1165 = vcvt.s32.f32 %v653
    %v1166 = vcvt.s32.f32 %v654
    %v1167 = vcvt.s32.f32 %v655
    %v1168 = vcvt.s32.f32 %v656
    %v1169 = vcvt.s32.f32 %v657
    %v1170 = vcvt.s32.f32 %v658
    %v1171 = vcvt.s32.f32 %v659
    %v1172 = vcvt.s32.f32 %v660
    %v1173 = vcvt.s32.f32 %v661
    %v1174 = vcvt.s32.f32 %v662
    %v1175 = vcvt.s32.f32 %v663
    %v1176 = vcvt.s32.f32 %v664
    %v1177 = vcvt.s32.f32 %v665
    %v1178 = vcvt.s32.f32 %v666
    %v1179 = vcvt.s32.f32 %v667
    %v1180 = vcvt.s32.f32 %v668
    %v1181 = vcvt.s32.f32 %v669
    %v1182 = vcvt.s32.f32 %v670
    %v1183 = vcvt.s32.f32 %v671
    %v1184 = vcvt.s32.f32 %v672
    %v1185 = vcvt.s32.f32 %v673
    %v1186 = vcvt.s32.f32 %v674
    %v1187 = vcvt.s32.f32 %v675
    %v1188 = vcvt.s32.f32 %v676
    %v1189 = vcvt.s32.f32 %v677
    %v1190 = vcvt.s32.f32 %v678
    %v1191 = vcvt.s32.f32 %v679
    %v1192 = vcvt.s32.f32 %v680
    %v1193 = vcvt.s32.f32 %v681
    %v1194 = vcvt.s32.f32 %v682
    %v1195 = vcvt.s32.f32 %v683
    %v1196 = vcvt.s32.f32 %v684
    %v1197 = vcvt.s32.f32 %v685
    %v1198 = vcvt.s32.f32 %v686
    %v1199 = vcvt.s32.f32 %v687
    %v1200 = vcvt.s32.f32 %v688
    %v1201 = vcvt.s32.f32 %v689
    %v1202 = vcvt.s32.f32 %v690
    %v1203 = vcvt.s32.f32 %v691
    %v1204 = vcvt.s32.f32 %v692
    %v1205 = vcvt.s32.f32 %v693
    %v1206 = vcvt.s32.f32 %v694
    %v1207 = vcvt.s32.f32 %v695
    %v1208 = vcvt.s32.f32 %v696
    %v1209 = vcvt.s32.f32 %v697
    %v1210 = vcvt.s32.f32 %v698
    %v1211 = vcvt.s32.f32 %v699
    %v1212 = vcvt.s32.f32 %v700
    %v1213 = vcvt.s32.f32 %v701
    %v1214 = vcvt.s32.f32 %v702
    %v1215 = vcvt.s32.f32 %v703
    %v1216 = vcvt.s32.f32 %v704
    %v1217 = vcvt.s32.f32 %v705
    %v1218 = vcvt.s32.f32 %v706
    %v1219 = vcvt.s32.f32 %v707
    %v1220 = vcvt.s32.f32 %v708
    %v1221 = vcvt.s32.f32 %v709
    %v1222 = vcvt.s32.f32 %v710
    %v1223 = vcvt.s32.f32 %v711
    %v1224 = vcvt.s32.f32 %v712
    %v1225 = vcvt.s32.f32 %v713
    %v1226 = vcvt.s32.f32 %v714
    %v1227 = vcvt.s32.f32 %v715
    %v1228 = vcvt.s32.f32 %v716
    %v1229 = vcvt.s32.f32 %v717
    %v1230 = vcvt.s32.f32 %v718
    %v1231 = vcvt.s32.f32 %v719
    %v1232 = vcvt.s32.f32 %v720
    %v1233 = vcvt.s32.f32 %v721
    %v1234 = vcvt.s32.f32 %v722
    %v1235 = vcvt.s32.f32 %v723
    %v1236 = vcvt.s32.f32 %v724
    %v1237 = vcvt.s32.f32 %v725
    %v1238 = vcvt.s32.f32 %v726
    %v1239 = vcvt.s32.f32 %v727
    %v1240 = vcvt.s32.f32 %v728
    %v1241 = vcvt.s32.f32 %v729
    %v1242 = vcvt.s32.f32 %v730
    %v1243 = vcvt.s32.f32 %v731
    %v1244 = vcvt.s32.f32 %v732
    %v1245 = vcvt.s32.f32 %v733
    %v1246 = vcvt.s32.f32 %v734
    %v1247 = vcvt.s32.f32 %v735
    %v1248 = vcvt.s32.f32 %v736
    %v1249 = vcvt.s32.f32 %v737
    %v1250 = vcvt.s32.f32 %v738
    %v1251 = vcvt.s32.f32 %v739
    %v1252 = vcvt.s32.f32 %v740
    %v1253 = vcvt.s32.f32 %v741
    %v1254 = vcvt.s32.f32 %v742
    %v1255 = vcvt.s32.f32 %v743
    %v1256 = vcvt.s32.f32 %v744
    %v1257 = vcvt.s32.f32 %v745
    %v1258 = vcvt.s32.f32 %v746
    %v1259 = vcvt.s32.f32 %v747
    %v1260 = vcvt.s32.f32 %v748
    %v1261 = vcvt.s32.f32 %v749
    %v1262 = vcvt.s32.f32 %v750
    %v1263 = vcvt.s32.f32 %v751
    %v1264 = vcvt.s32.f32 %v752
    %v1265 = vcvt.s32.f32 %v753
    %v1266 = vcvt.s32.f32 %v754
    %v1267 = vcvt.s32.f32 %v755
    %v1268 = vcvt.s32.f32 %v756
    %v1269 = vcvt.s32.f32 %v757
    %v1270 = vcvt.s32.f32 %v758
    %v1271 = vcvt.s32.f32 %v759
    %v1272 = vcvt.s32.f32 %v760
    %v1273 = vcvt.s32.f32 %v761
    %v1274 = vcvt.s32.f32 %v762
    %v1275 = vcvt.s32.f32 %v763
    %v1276 = vcvt.s32.f32 %v764
    %v1277 = vcvt.s32.f32 %v765
    %v1278 = vcvt.s32.f32 %v766
    %v1279 = vcvt.s32.f32 %v767
    %v1280 = vcvt.s32.f32 %v768
    %v1281 = vcvt.s32.f32 %v769
    %v1282 = vcvt.s32.f32 %v770
    %v1283 = vcvt.s32.f32 %v771
    %v1284 = vcvt.s32.f32 %v772
    %v1285 = vcvt.s32.f32 %v773
    %v1286 = vcvt.s32.f32 %v774
    %v1287 = vcvt.s32.f32 %v775
    %v1288 = vcvt.s32.f32 %v776
    %v1289 = vcvt.s32.f32 %v777
    %v1290 = vcvt.s32.f32 %v778
    %v1291 = vcvt.s32.f32 %v779
    %v1292 = vcvt.s32.f32 %v780
    %v1293 = vcvt.s32.f32 %v781
    %v1294 = vcvt.s32.f32 %v782
    %v1295 = vcvt.s32.f32 %v783
    %v1296 = vcvt.s32.f32 %v784
    %v1297 = vcvt.s32.f32 %v785
    %v1298 = vcvt.s32.f32 %v786
    %v1299 = vcvt.s32.f32 %v787
    %v1300 = vcvt.s32.f32 %v788
    %v1301 = vcvt.s32.f32 %v789
    %v1302 = vcvt.s32.f32 %v790
    %v1303 = vcvt.s32.f32 %v791
    %v1304 = vcvt.s32.f32 %v792
    %v1305 = vcvt.s32.f32 %v793
    %v1306 = vcvt.s32.f32 %v794
    %v1307 = vcvt.s32.f32 %v795
    %v1308 = vcvt.s32.f32 %v796
    %v1309 = vcvt.s32.f32 %v797
    %v1310 = vcvt.s32.f32 %v798
    %v1311 = vcvt.s32.f32 %v799
    %v1312 = vcvt.s32.f32 %v800
    %v1313 = vcvt.s32.f32 %v801
    %v1314 = vcvt.s32.f32 %v802
    %v1315 = vcvt.s32.f32 %v803
    %v1316 = vcvt.s32.f32 %v804
    %v1317 = vcvt.s32.f32 %v805
    %v1318 = vcvt.s32.f32 %v806
    %v1319 = vcvt.s32.f32 %v807
    %v1320 = vcvt.s32.f32 %v808
    %v1321 = vcvt.s32.f32 %v809
    %v1322 = vcvt.s32.f32 %v810
    %v1323 = vcvt.s32.f32 %v811
    %v1324 = vcvt.s32.f32 %v812
    %v1325 = vcvt.s32.f32 %v813
    %v1326 = vcvt.s32.f32 %v814
    %v1327 = vcvt.s32.f32 %v815
    %v1328 = vcvt.s32.f32 %v816
    %v1329 = vcvt.s32.f32 %v817
    %v1330 = vcvt.s32.f32 %v818
    %v1331 = vcvt.s32.f32 %v819
    %v1332 = vcvt.s32.f32 %v820
    %v1333 = vcvt.s32.f32 %v821
    %v1334 = vcvt.s32.f32 %v822
    %v1335 = vcvt.s32.f32 %v823
    %v1336 = vcvt.s32.f32 %v824
    %v1337 = vcvt.s32.f32 %v825
    %v1338 = vcvt.s32.f32 %v826
    %v1339 = vcvt.s32.f32 %v827
    %v1340 = vcvt.s32.f32 %v828
    %v1341 = vcvt.s32.f32 %v829
    %v1342 = vcvt.s32.f32 %v830
    %v1343 = vcvt.s32.f32 %v831
    %v1344 = vcvt.s32.f32 %v832
    %v1345 = vcvt.s32.f32 %v833
    %v1346 = vcvt.s32.f32 %v834
    %v1347 = vcvt.s32.f32 %v835
    %v1348 = vcvt.s32.f32 %v836
    %v1349 = vcvt.s32.f32 %v837
    %v1350 = vcvt.s32.f32 %v838
    %v1351 = vcvt.s32.f32 %v839
    %v1352 = vcvt.s32.f32 %v840
    %v1353 = vcvt.s32.f32 %v841
    %v1354 = vcvt.s32.f32 %v842
    %v1355 = vcvt.s32.f32 %v843
    %v1356 = vcvt.s32.f32 %v844
    %v1357 = vcvt.s32.f32 %v845
    %v1358 = vcvt.s32.f32 %v846
    %v1359 = vcvt.s32.f32 %v847
    %v1360 = vcvt.s32.f32 %v848
    %v1361 = vcvt.s32.f32 %v849
    %v1362 = vcvt.s32.f32 %v850
    %v1363 = vcvt.s32.f32 %v851
    %v1364 = vcvt.s32.f32 %v852
    %v1365 = vcvt.s32.f32 %v853
    %v1366 = vcvt.s32.f32 %v854
    %v1367 = vcvt.s32.f32 %v855
    %v1368 = vcvt.s32.f32 %v856
    %v1369 = vcvt.s32.f32 %v857
    %v1370 = vcvt.s32.f32 %v858
    %v1371 = vcvt.s32.f32 %v859
    %v1372 = vcvt.s32.f32 %v860
    %v1373 = vcvt.s32.f32 %v861
    %v1374 = vcvt.s32.f32 %v862
    %v1375 = vcvt.s32.f32 %v863
    %v1376 = vcvt.s32.f32 %v864
    %v1377 = vcvt.s32.f32 %v865
    %v1378 = vcvt.s32.f32 %v866
    %v1379 = vcvt.s32.f32 %v867
    %v1380 = vcvt.s32.f32 %v868
    %v1381 = vcvt.s32.f32 %v869
    %v1382 = vcvt.s32.f32 %v870
    %v1383 = vcvt.s32.f32 %v871
    %v1384 = vcvt.s32.f32 %v872
    %v1385 = vcvt.s32.f32 %v873
    %v1386 = vcvt.s32.f32 %v874
    %v1387 = vcvt.s32.f32 %v875
    %v1388 = vcvt.s32.f32 %v876
    %v1389 = vcvt.s32.f32 %v877
    %v1390 = vcvt.s32.f32 %v878
    %v1391 = vcvt.s32.f32 %v879
    %v1392 = vcvt.s32.f32 %v880
    %v1393 = vcvt.s32.f32 %v881
    %v1394 = vcvt.s32.f32 %v882
    %v1395 = vcvt.s32.f32 %v883
    %v1396 = vcvt.s32.f32 %v884
    %v1397 = vcvt.s32.f32 %v885
    %v1398 = vcvt.s32.f32 %v886
    %v1399 = vcvt.s32.f32 %v887
    %v1400 = vcvt.s32.f32 %v888
    %v1401 = vcvt.s32.f32 %v889
    %v1402 = vcvt.s32.f32 %v890
    %v1403 = vcvt.s32.f32 %v891
    %v1404 = vcvt.s32.f32 %v892
    %v1405 = vcvt.s32.f32 %v893
    %v1406 = vcvt.s32.f32 %v894
    %v1407 = vcvt.s32.f32 %v895
    %v1408 = vcvt.s32.f32 %v896
    %v1409 = vcvt.s32.f32 %v897
    %v1410 = vcvt.s32.f32 %v898
    %v1411 = vcvt.s32.f32 %v899
    %v1412 = vcvt.s32.f32 %v900
    %v1413 = vcvt.s32.f32 %v901
    %v1414 = vcvt.s32.f32 %v902
    %v1415 = vcvt.s32.f32 %v903
    %v1416 = vcvt.s32.f32 %v904
    %v1417 = vcvt.s32.f32 %v905
    %v1418 = vcvt.s32.f32 %v906
    %v1419 = vcvt.s32.f32 %v907
    %v1420 = vcvt.s32.f32 %v908
    %v1421 = vcvt.s32.f32 %v909
    %v1422 = vcvt.s32.f32 %v910
    %v1423 = vcvt.s32.f32 %v911
    %v1424 = vcvt.s32.f32 %v912
    %v1425 = vcvt.s32.f32 %v913
    %v1426 = vcvt.s32.f32 %v914
    %v1427 = vcvt.s32.f32 %v915
    %v1428 = vcvt.s32.f32 %v916
    %v1429 = vcvt.s32.f32 %v917
    %v1430 = vcvt.s32.f32 %v918
    %v1431 = vcvt.s32.f32 %v919
    %v1432 = vcvt.s32.f32 %v920
    %v1433 = vcvt.s32.f32 %v921
    %v1434 = vcvt.s32.f32 %v922
    %v1435 = vcvt.s32.f32 %v923
    %v1436 = vcvt.s32.f32 %v924
    %v1437 = vcvt.s32.f32 %v925
    %v1438 = vcvt.s32.f32 %v926
    %v1439 = vcvt.s32.f32 %v927
    %v1440 = vcvt.s32.f32 %v928
    %v1441 = vcvt.s32.f32 %v929
    %v1442 = vcvt.s32.f32 %v930
    %v1443 = vcvt.s32.f32 %v931
    %v1444 = vcvt.s32.f32 %v932
    %v1445 = vcvt.s32.f32 %v933
    %v1446 = vcvt.s32.f32 %v934
    %v1447 = vcvt.s32.f32 %v935
    %v1448 = vcvt.s32.f32 %v936
    %v1449 = vcvt.s32.f32 %v937
    %v1450 = vcvt.s32.f32 %v938
    %v1451 = vcvt.s32.f32 %v939
    %v1452 = vcvt.s32.f32 %v940
    %v1453 = vcvt.s32.f32 %v941
    %v1454 = vcvt.s32.f32 %v942
    %v1455 = vcvt.s32.f32 %v943
    %v1456 = vcvt.s32.f32 %v944
    %v1457 = vcvt.s32.f32 %v945
    %v1458 = vcvt.s32.f32 %v946
    %v1459 = vcvt.s32.f32 %v947
    %v1460 = vcvt.s32.f32 %v948
    %v1461 = vcvt.s32.f32 %v949
    %v1462 = vcvt.s32.f32 %v950
    %v1463 = vcvt.s32.f32 %v951
    %v1464 = vcvt.s32.f32 %v952
    %v1465 = vcvt.s32.f32 %v953
    %v1466 = vcvt.s32.f32 %v954
    %v1467 = vcvt.s32.f32 %v955
    %v1468 = vcvt.s32.f32 %v956
    %v1469 = vcvt.s32.f32 %v957
    %v1470 = vcvt.s32.f32 %v958
    %v1471 = vcvt.s32.f32 %v959
    %v1472 = vcvt.s32.f32 %v960
    %v1473 = vcvt.s32.f32 %v961
    %v1474 = vcvt.s32.f32 %v962
    %v1475 = vcvt.s32.f32 %v963
    %v1476 = vcvt.s32.f32 %v964
    %v1477 = vcvt.s32.f32 %v965
    %v1478 = vcvt.s32.f32 %v966
    %v1479 = vcvt.s32.f32 %v967
    %v1480 = vcvt.s32.f32 %v968
    %v1481 = vcvt.s32.f32 %v969
    %v1482 = vcvt.s32.f32 %v970
    %v1483 = vcvt.s32.f32 %v971
    %v1484 = vcvt.s32.f32 %v972
    %v1485 = vcvt.s32.f32 %v973
    %v1486 = vcvt.s32.f32 %v974
    %v1487 = vcvt.s32.f32 %v975
    %v1488 = vcvt.s32.f32 %v976
    %v1489 = vcvt.s32.f32 %v977
    %v1490 = vcvt.s32.f32 %v978
    %v1491 = vcvt.s32.f32 %v979
    %v1492 = vcvt.s32.f32 %v980
    %v1493 = vcvt.s32.f32 %v981
    %v1494 = vcvt.s32.f32 %v982
    %v1495 = vcvt.s32.f32 %v983
    %v1496 = vcvt.s32.f32 %v984
    %v1497 = vcvt.s32.f32 %v985
    %v1498 = vcvt.s32.f32 %v986
    %v1499 = vcvt.s32.f32 %v987
    %v1500 = vcvt.s32.f32 %v988
    %v1501 = vcvt.s32.f32 %v989
    %v1502 = vcvt.s32.f32 %v990
    %v1503 = vcvt.s32.f32 %v991
    %v1504 = vcvt.s32.f32 %v992
    %v1505 = vcvt.s32.f32 %v993
    %v1506 = vcvt.s32.f32 %v994
    %v1507 = vcvt.s32.f32 %v995
    %v1508 = vcvt.s32.f32 %v996
    %v1509 = vcvt.s32.f32 %v997
    %v1510 = vcvt.s32.f32 %v998
    %v1511 = vcvt.s32.f32 %v999
    %v1512 = vcvt.s32.f32 %v1000
    %v1513 = vcvt.s32.f32 %v1001
    %v1514 = vcvt.s32.f32 %v1002
    %v1515 = vcvt.s32.f32 %v1003
    %v1516 = vcvt.s32.f32 %v1004
    %v1517 = vcvt.s32.f32 %v1005
    %v1518 = vcvt.s32.f32 %v1006
    %v1519 = vcvt.s32.f32 %v1007
    %v1520 = vcvt.s32.f32 %v1008
    %v1521 = vcvt.s32.f32 %v1009
    %v1522 = vcvt.s32.f32 %v1010
    %v1523 = vcvt.s32.f32 %v1011
    %v1524 = vcvt.s32.f32 %v1012
    %v1525 = vcvt.s32.f32 %v1013
    %v1526 = vcvt.s32.f32 %v1014
    %v1527 = vcvt.s32.f32 %v1015
    %v1528 = vcvt.s32.f32 %v1016
    %v1529 = vcvt.s32.f32 %v1017
    %v1530 = vcvt.s32.f32 %v1018
    %v1531 = vcvt.s32.f32 %v1019
    %v1532 = vcvt.s32.f32 %v1020
    %v1533 = vcvt.s32.f32 %v1021
    %v1534 = vcvt.s32.f32 %v1022
    %v1535 = vcvt.s32.f32 %v1023
    %v1536 = vcvt.s32.f32 %v1024
    %v1537 = vcvt.s32.f32 %v1025
    %v1538 = vcvt.s32.f32 %v1026
    %v1539 = vcvt.s32.f32 %v1027
    %v1540 = vcvt.s32.f32 %v1028
    %v1541 = vcvt.s32.f32 %v1029
    %v1542 = vcvt.s32.f32 %v1030
    %v1543 = vcvt.s32.f32 %v1031
    %v1544 = vcvt.s32.f32 %v1032
    %v1545 = vcvt.s32.f32 %v1033
    %v1546 = vcvt.s32.f32 %v1034
    %v1547 = vcvt.s32.f32 %v1035
    %v1548 = vcvt.s32.f32 %v1036
    %v1549 = vcvt.s32.f32 %v1037
    %v1550 = vcvt.s32.f32 %v1038
    %v1551 = vcvt.s32.f32 %v1039
    %v1552 = vcvt.s32.f32 %v1040
    %v1553 = vcvt.s32.f32 %v1041
    %v1554 = vcvt.s32.f32 %v1042
    %v1555 = vcvt.s32.f32 %v1043
    %v1556 = vcvt.s32.f32 %v1044
    %v1557 = vcvt.s32.f32 %v1045
    %v1558 = vcvt.s32.f32 %v1046
    %v1559 = vcvt.s32.f32 %v1047
    %v1560 = vcvt.s32.f32 %v1048
    %v1561 = vcvt.s32.f32 %v1049
    %v1562 = vcvt.s32.f32 %v1050
    %v1563 = vcvt.s32.f32 %v1051
    %v1564 = vcvt.s32.f32 %v1052
    %v1565 = vcvt.s32.f32 %v1053
    %v1566 = vcvt.s32.f32 %v1054
    %v1567 = vcvt.s32.f32 %v1055
    %v1568 = vcvt.s32.f32 %v1056
    %v1569 = vcvt.s32.f32 %v1057
    %v1570 = vcvt.s32.f32 %v1058
    %v1571 = vcvt.s32.f32 %v1059
    %v1572 = vcvt.s32.f32 %v1060
    %v1573 = vcvt.s32.f32 %v1061
    %v1574 = vcvt.s32.f32 %v1062
    %v1575 = vcvt.s32.f32 %v1063
    %v1576 = vcvt.s32.f32 %v1064
    %v1577 = vcvt.s32.f32 %v1065
    %v1578 = vcvt.s32.f32 %v1066
    %v1579 = vcvt.s32.f32 %v1067
    %v1580 = vcvt.s32.f32 %v1068
    %v1581 = vcvt.s32.f32 %v1069
    %v1582 = vcvt.s32.f32 %v1070
    %v1583 = vcvt.s32.f32 %v1071
    %v1584 = vcvt.s32.f32 %v1072
    %v1585 = vcvt.s32.f32 %v1073
    %v1586 = vcvt.s32.f32 %v1074
    %v1587 = vcvt.s32.f32 %v1075
    %v1588 = vcvt.s32.f32 %v1076
    %v1589 = vcvt.s32.f32 %v1077
    %v1590 = vcvt.s32.f32 %v1078
    %v1591 = vcvt.s32.f32 %v1079
    %v1592 = vcvt.s32.f32 %v1080
    %v1593 = vcvt.s32.f32 %v1081
    %v1594 = vcvt.s32.f32 %v1082
    %v1595 = vcvt.s32.f32 %v1083
    %v1596 = vcvt.s32.f32 %v1084
    %v1597 = vcvt.s32.f32 %v1085
    %v1598 = vcvt.s32.f32 %v1086
    %v1599 = vcvt.s32.f32 %v1087
    %v1600 = vcvt.s32.f32 %v1088
    %v1601 = vcvt.s32.f32 %v1089
    %v1602 = vcvt.s32.f32 %v1090
    %v1603 = vcvt.s32.f32 %v1091
    %v1604 = vcvt.s32.f32 %v1092
    %v1605 = vcvt.s32.f32 %v1093
    %v1606 = vcvt.s32.f32 %v1094
    %v1607 = vcvt.s32.f32 %v1095
    %v1608 = vcvt.s32.f32 %v1096
    %v1609 = vcvt.s32.f32 %v1097
    %v1610 = vcvt.s32.f32 %v1098
    %v1611 = vcvt.s32.f32 %v1099
    %v1612 = vcvt.s32.f32 %v1100
    %v1613 = vcvt.s32.f32 %v1101
    %v1614 = vcvt.s32.f32 %v1102
    %v1615 = vcvt.s32.f32 %v1103
    %v1616 = vcvt.s32.f32 %v1104
    %v1617 = vcvt.s32.f32 %v1105
    %v1618 = vcvt.s32.f32 %v1106
    %v1619 = vcvt.s32.f32 %v1107
    %v1620 = vcvt.s32.f32 %v1108
    %v1621 = vcvt.s32.f32 %v1109
    %v1622 = vpack.c.bf16 %v1114, %v1110
    %v1623 = vpack.c.bf16 %v1115, %v1111
    %v1624 = vpack.c.bf16 %v1116, %v1112
    %v1625 = vpack.c.bf16 %v1117, %v1113
    %v1626 = vpack.c.bf16 %v1122, %v1118
    %v1627 = vpack.c.bf16 %v1123, %v1119
    %v1628 = vpack.c.bf16 %v1124, %v1120
    %v1629 = vpack.c.bf16 %v1125, %v1121
    %v1630 = vpack.c.bf16 %v1130, %v1126
    %v1631 = vpack.c.bf16 %v1131, %v1127
    %v1632 = vpack.c.bf16 %v1132, %v1128
    %v1633 = vpack.c.bf16 %v1133, %v1129
    %v1634 = vpack.c.bf16 %v1138, %v1134
    %v1635 = vpack.c.bf16 %v1139, %v1135
    %v1636 = vpack.c.bf16 %v1140, %v1136
    %v1637 = vpack.c.bf16 %v1141, %v1137
    %v1638 = vpack.c.bf16 %v1146, %v1142
    %v1639 = vpack.c.bf16 %v1147, %v1143
    %v1640 = vpack.c.bf16 %v1148, %v1144
    %v1641 = vpack.c.bf16 %v1149, %v1145
    %v1642 = vpack.c.bf16 %v1154, %v1150
    %v1643 = vpack.c.bf16 %v1155, %v1151
    %v1644 = vpack.c.bf16 %v1156, %v1152
    %v1645 = vpack.c.bf16 %v1157, %v1153
    %v1646 = vpack.c.bf16 %v1162, %v1158
    %v1647 = vpack.c.bf16 %v1163, %v1159
    %v1648 = vpack.c.bf16 %v1164, %v1160
    %v1649 = vpack.c.bf16 %v1165, %v1161
    %v1650 = vpack.c.bf16 %v1170, %v1166
    %v1651 = vpack.c.bf16 %v1171, %v1167
    %v1652 = vpack.c.bf16 %v1172, %v1168
    %v1653 = vpack.c.bf16 %v1173, %v1169
    %v1654 = vpack.c.bf16 %v1178, %v1174
    %v1655 = vpack.c.bf16 %v1179, %v1175
    %v1656 = vpack.c.bf16 %v1180, %v1176
    %v1657 = vpack.c.bf16 %v1181, %v1177
    %v1658 = vpack.c.bf16 %v1186, %v1182
    %v1659 = vpack.c.bf16 %v1187, %v1183
    %v1660 = vpack.c.bf16 %v1188, %v1184
    %v1661 = vpack.c.bf16 %v1189, %v1185
    %v1662 = vpack.c.bf16 %v1194, %v1190
    %v1663 = vpack.c.bf16 %v1195, %v1191
    %v1664 = vpack.c.bf16 %v1196, %v1192
    %v1665 = vpack.c.bf16 %v1197, %v1193
    %v1666 = vpack.c.bf16 %v1202, %v1198
    %v1667 = vpack.c.bf16 %v1203, %v1199
    %v1668 = vpack.c.bf16 %v1204, %v1200
    %v1669 = vpack.c.bf16 %v1205, %v1201
    %v1670 = vpack.c.bf16 %v1210, %v1206
    %v1671 = vpack.c.bf16 %v1211, %v1207
    %v1672 = vpack.c.bf16 %v1212, %v1208
    %v1673 = vpack.c.bf16 %v1213, %v1209
    %v1674 = vpack.c.bf16 %v1218, %v1214
    %v1675 = vpack.c.bf16 %v1219, %v1215
    %v1676 = vpack.c.bf16 %v1220, %v1216
    %v1677 = vpack.c.bf16 %v1221, %v1217
    %v1678 = vpack.c.bf16 %v1226, %v1222
    %v1679 = vpack.c.bf16 %v1227, %v1223
    %v1680 = vpack.c.bf16 %v1228, %v1224
    %v1681 = vpack.c.bf16 %v1229, %v1225
    %v1682 = vpack.c.bf16 %v1234, %v1230
    %v1683 = vpack.c.bf16 %v1235, %v1231
    %v1684 = vpack.c.bf16 %v1236, %v1232
    %v1685 = vpack.c.bf16 %v1237, %v1233
    %v1686 = vpack.c.bf16 %v1242, %v1238
    %v1687 = vpack.c.bf16 %v1243, %v1239
    %v1688 = vpack.c.bf16 %v1244, %v1240
    %v1689 = vpack.c.bf16 %v1245, %v1241
    %v1690 = vpack.c.bf16 %v1250, %v1246
    %v1691 = vpack.c.bf16 %v1251, %v1247
    %v1692 = vpack.c.bf16 %v1252, %v1248
    %v1693 = vpack.c.bf16 %v1253, %v1249
    %v1694 = vpack.c.bf16 %v1258, %v1254
    %v1695 = vpack.c.bf16 %v1259, %v1255
    %v1696 = vpack.c.bf16 %v1260, %v1256
    %v1697 = vpack.c.bf16 %v1261, %v1257
    %v1698 = vpack.c.bf16 %v1266, %v1262
    %v1699 = vpack.c.bf16 %v1267, %v1263
    %v1700 = vpack.c.bf16 %v1268, %v1264
    %v1701 = vpack.c.bf16 %v1269, %v1265
    %v1702 = vpack.c.bf16 %v1274, %v1270
    %v1703 = vpack.c.bf16 %v1275, %v1271
    %v1704 = vpack.c.bf16 %v1276, %v1272
    %v1705 = vpack.c.bf16 %v1277, %v1273
    %v1706 = vpack.c.bf16 %v1282, %v1278
    %v1707 = vpack.c.bf16 %v1283, %v1279
    %v1708 = vpack.c.bf16 %v1284, %v1280
    %v1709 = vpack.c.bf16 %v1285, %v1281
    %v1710 = vpack.c.bf16 %v1290, %v1286
    %v1711 = vpack.c.bf16 %v1291, %v1287
    %v1712 = vpack.c.bf16 %v1292, %v1288
    %v1713 = vpack.c.bf16 %v1293, %v1289
    %v1714 = vpack.c.bf16 %v1298, %v1294
    %v1715 = vpack.c.bf16 %v1299, %v1295
    %v1716 = vpack.c.bf16 %v1300, %v1296
    %v1717 = vpack.c.bf16 %v1301, %v1297
    %v1718 = vpack.c.bf16 %v1306, %v1302
    %v1719 = vpack.c.bf16 %v1307, %v1303
    %v1720 = vpack.c.bf16 %v1308, %v1304
    %v1721 = vpack.c.bf16 %v1309, %v1305
    %v1722 = vpack.c.bf16 %v1314, %v1310
    %v1723 = vpack.c.bf16 %v1315, %v1311
    %v1724 = vpack.c.bf16 %v1316, %v1312
    %v1725 = vpack.c.bf16 %v1317, %v1313
    %v1726 = vpack.c.bf16 %v1322, %v1318
    %v1727 = vpack.c.bf16 %v1323, %v1319
    %v1728 = vpack.c.bf16 %v1324, %v1320
    %v1729 = vpack.c.bf16 %v1325, %v1321
    %v1730 = vpack.c.bf16 %v1330, %v1326
    %v1731 = vpack.c.bf16 %v1331, %v1327
    %v1732 = vpack.c.bf16 %v1332, %v1328
    %v1733 = vpack.c.bf16 %v1333, %v1329
    %v1734 = vpack.c.bf16 %v1338, %v1334
    %v1735 = vpack.c.bf16 %v1339, %v1335
    %v1736 = vpack.c.bf16 %v1340, %v1336
    %v1737 = vpack.c.bf16 %v1341, %v1337
    %v1738 = vpack.c.bf16 %v1346, %v1342
    %v1739 = vpack.c.bf16 %v1347, %v1343
    %v1740 = vpack.c.bf16 %v1348, %v1344
    %v1741 = vpack.c.bf16 %v1349, %v1345
    %v1742 = vpack.c.bf16 %v1354, %v1350
    %v1743 = vpack.c.bf16 %v1355, %v1351
    %v1744 = vpack.c.bf16 %v1356, %v1352
    %v1745 = vpack.c.bf16 %v1357, %v1353
    %v1746 = vpack.c.bf16 %v1362, %v1358
    %v1747 = vpack.c.bf16 %v1363, %v1359
    %v1748 = vpack.c.bf16 %v1364, %v1360
    %v1749 = vpack.c.bf16 %v1365, %v1361
    %v1750 = vpack.c.bf16 %v1370, %v1366
    %v1751 = vpack.c.bf16 %v1371, %v1367
    %v1752 = vpack.c.bf16 %v1372, %v1368
    %v1753 = vpack.c.bf16 %v1373, %v1369
    %v1754 = vpack.c.bf16 %v1378, %v1374
    %v1755 = vpack.c.bf16 %v1379, %v1375
    %v1756 = vpack.c.bf16 %v1380, %v1376
    %v1757 = vpack.c.bf16 %v1381, %v1377
    %v1758 = vpack.c.bf16 %v1386, %v1382
    %v1759 = vpack.c.bf16 %v1387, %v1383
    %v1760 = vpack.c.bf16 %v1388, %v1384
    %v1761 = vpack.c.bf16 %v1389, %v1385
    %v1762 = vpack.c.bf16 %v1394, %v1390
    %v1763 = vpack.c.bf16 %v1395, %v1391
    %v1764 = vpack.c.bf16 %v1396, %v1392
    %v1765 = vpack.c.bf16 %v1397, %v1393
    %v1766 = vpack.c.bf16 %v1402, %v1398
    %v1767 = vpack.c.bf16 %v1403, %v1399
    %v1768 = vpack.c.bf16 %v1404, %v1400
    %v1769 = vpack.c.bf16 %v1405, %v1401
    %v1770 = vpack.c.bf16 %v1410, %v1406
    %v1771 = vpack.c.bf16 %v1411, %v1407
    %v1772 = vpack.c.bf16 %v1412, %v1408
    %v1773 = vpack.c.bf16 %v1413, %v1409
    %v1774 = vpack.c.bf16 %v1418, %v1414
    %v1775 = vpack.c.bf16 %v1419, %v1415
    %v1776 = vpack.c.bf16 %v1420, %v1416
    %v1777 = vpack.c.bf16 %v1421, %v1417
    %v1778 = vpack.c.bf16 %v1426, %v1422
    %v1779 = vpack.c.bf16 %v1427, %v1423
    %v1780 = vpack.c.bf16 %v1428, %v1424
    %v1781 = vpack.c.bf16 %v1429, %v1425
    %v1782 = vpack.c.bf16 %v1434, %v1430
    %v1783 = vpack.c.bf16 %v1435, %v1431
    %v1784 = vpack.c.bf16 %v1436, %v1432
    %v1785 = vpack.c.bf16 %v1437, %v1433
    %v1786 = vpack.c.bf16 %v1442, %v1438
    %v1787 = vpack.c.bf16 %v1443, %v1439
    %v1788 = vpack.c.bf16 %v1444, %v1440
    %v1789 = vpack.c.bf16 %v1445, %v1441
    %v1790 = vpack.c.bf16 %v1450, %v1446
    %v1791 = vpack.c.bf16 %v1451, %v1447
    %v1792 = vpack.c.bf16 %v1452, %v1448
    %v1793 = vpack.c.bf16 %v1453, %v1449
    %v1794 = vpack.c.bf16 %v1458, %v1454
    %v1795 = vpack.c.bf16 %v1459, %v1455
    %v1796 = vpack.c.bf16 %v1460, %v1456
    %v1797 = vpack.c.bf16 %v1461, %v1457
    %v1798 = vpack.c.bf16 %v1466, %v1462
    %v1799 = vpack.c.bf16 %v1467, %v1463
    %v1800 = vpack.c.bf16 %v1468, %v1464
    %v1801 = vpack.c.bf16 %v1469, %v1465
    %v1802 = vpack.c.bf16 %v1474, %v1470
    %v1803 = vpack.c.bf16 %v1475, %v1471
    %v1804 = vpack.c.bf16 %v1476, %v1472
    %v1805 = vpack.c.bf16 %v1477, %v1473
    %v1806 = vpack.c.bf16 %v1482, %v1478
    %v1807 = vpack.c.bf16 %v1483, %v1479
    %v1808 = vpack.c.bf16 %v1484, %v1480
    %v1809 = vpack.c.bf16 %v1485, %v1481
    %v1810 = vpack.c.bf16 %v1490, %v1486
    %v1811 = vpack.c.bf16 %v1491, %v1487
    %v1812 = vpack.c.bf16 %v1492, %v1488
    %v1813 = vpack.c.bf16 %v1493, %v1489
    %v1814 = vpack.c.bf16 %v1498, %v1494
    %v1815 = vpack.c.bf16 %v1499, %v1495
    %v1816 = vpack.c.bf16 %v1500, %v1496
    %v1817 = vpack.c.bf16 %v1501, %v1497
    %v1818 = vpack.c.bf16 %v1506, %v1502
    %v1819 = vpack.c.bf16 %v1507, %v1503
    %v1820 = vpack.c.bf16 %v1508, %v1504
    %v1821 = vpack.c.bf16 %v1509, %v1505
    %v1822 = vpack.c.bf16 %v1514, %v1510
    %v1823 = vpack.c.bf16 %v1515, %v1511
    %v1824 = vpack.c.bf16 %v1516, %v1512
    %v1825 = vpack.c.bf16 %v1517, %v1513
    %v1826 = vpack.c.bf16 %v1522, %v1518
    %v1827 = vpack.c.bf16 %v1523, %v1519
    %v1828 = vpack.c.bf16 %v1524, %v1520
    %v1829 = vpack.c.bf16 %v1525, %v1521
    %v1830 = vpack.c.bf16 %v1530, %v1526
    %v1831 = vpack.c.bf16 %v1531, %v1527
    %v1832 = vpack.c.bf16 %v1532, %v1528
    %v1833 = vpack.c.bf16 %v1533, %v1529
    %v1834 = vpack.c.bf16 %v1538, %v1534
    %v1835 = vpack.c.bf16 %v1539, %v1535
    %v1836 = vpack.c.bf16 %v1540, %v1536
    %v1837 = vpack.c.bf16 %v1541, %v1537
    %v1838 = vpack.c.bf16 %v1546, %v1542
    %v1839 = vpack.c.bf16 %v1547, %v1543
    %v1840 = vpack.c.bf16 %v1548, %v1544
    %v1841 = vpack.c.bf16 %v1549, %v1545
    %v1842 = vpack.c.bf16 %v1554, %v1550
    %v1843 = vpack.c.bf16 %v1555, %v1551
    %v1844 = vpack.c.bf16 %v1556, %v1552
    %v1845 = vpack.c.bf16 %v1557, %v1553
    %v1846 = vpack.c.bf16 %v1562, %v1558
    %v1847 = vpack.c.bf16 %v1563, %v1559
    %v1848 = vpack.c.bf16 %v1564, %v1560
    %v1849 = vpack.c.bf16 %v1565, %v1561
    %v1850 = vpack.c.bf16 %v1570, %v1566
    %v1851 = vpack.c.bf16 %v1571, %v1567
    %v1852 = vpack.c.bf16 %v1572, %v1568
    %v1853 = vpack.c.bf16 %v1573, %v1569
    %v1854 = vpack.c.bf16 %v1578, %v1574
    %v1855 = vpack.c.bf16 %v1579, %v1575
    %v1856 = vpack.c.bf16 %v1580, %v1576
    %v1857 = vpack.c.bf16 %v1581, %v1577
    %v1858 = vpack.c.bf16 %v1586, %v1582
    %v1859 = vpack.c.bf16 %v1587, %v1583
    %v1860 = vpack.c.bf16 %v1588, %v1584
    %v1861 = vpack.c.bf16 %v1589, %v1585
    %v1862 = vpack.c.bf16 %v1594, %v1590
    %v1863 = vpack.c.bf16 %v1595, %v1591
    %v1864 = vpack.c.bf16 %v1596, %v1592
    %v1865 = vpack.c.bf16 %v1597, %v1593
    %v1866 = vpack.c.bf16 %v1602, %v1598
    %v1867 = vpack.c.bf16 %v1603, %v1599
    %v1868 = vpack.c.bf16 %v1604, %v1600
    %v1869 = vpack.c.bf16 %v1605, %v1601
    %v1870 = vpack.c.bf16 %v1610, %v1606
    %v1871 = vpack.c.bf16 %v1611, %v1607
    %v1872 = vpack.c.bf16 %v1612, %v1608
    %v1873 = vpack.c.bf16 %v1613, %v1609
    %v1874 = vpack.c.bf16 %v1618, %v1614
    %v1875 = vpack.c.bf16 %v1619, %v1615
    %v1876 = vpack.c.bf16 %v1620, %v1616
    %v1877 = vpack.c.bf16 %v1621, %v1617
    %1878 = vmatpush.bf16.msra.mxu0 %v1650
    %1879 = vmatpush.bf16.msra.mxu0 %v1646
    %1880 = vmatpush.bf16.msra.mxu0 %v1642
    %1881 = vmatpush.bf16.msra.mxu0 %v1638
    %1882 = vmatpush.bf16.msra.mxu0 %v1634
    %1883 = vmatpush.bf16.msra.mxu0 %v1630
    %1884 = vmatpush.bf16.msra.mxu0 %v1626
    %1885 = vmatpush.bf16.msra.mxu0 %v1622
    %1886 = vmatmul.bf16.gmra.mxu0 %v462
    %v1887 = vpop.f32.mrf.mxu0
    %v1888 = vadd.f32 0.0, %v1887
    %v1889 = vpop.f32.mrf.mxu0
    %v1890 = vadd.f32 0.0, %v1889
    %1891 = vdwg.mxu0
    %1892 = vmatpush.bf16.msra.mxu0 %v1682
    %1893 = vmatpush.bf16.msra.mxu0 %v1678
    %1894 = vmatpush.bf16.msra.mxu0 %v1674
    %1895 = vmatpush.bf16.msra.mxu0 %v1670
    %1896 = vmatpush.bf16.msra.mxu0 %v1666
    %1897 = vmatpush.bf16.msra.mxu0 %v1662
    %1898 = vmatpush.bf16.msra.mxu0 %v1658
    %1899 = vmatpush.bf16.msra.mxu0 %v1654
    %1900 = vmatmul.bf16.gmra.mxu0 %v463
    %v1901 = vpop.f32.mrf.mxu0
    %v1902 = vadd.f32 %v1888, %v1901
    %v1903 = vpop.f32.mrf.mxu0
    %v1904 = vadd.f32 %v1890, %v1903
    %1905 = vdwg.mxu0
    %1906 = vmatpush.bf16.msra.mxu0 %v1714
    %1907 = vmatpush.bf16.msra.mxu0 %v1710
    %1908 = vmatpush.bf16.msra.mxu0 %v1706
    %1909 = vmatpush.bf16.msra.mxu0 %v1702
    %1910 = vmatpush.bf16.msra.mxu0 %v1698
    %1911 = vmatpush.bf16.msra.mxu0 %v1694
    %1912 = vmatpush.bf16.msra.mxu0 %v1690
    %1913 = vmatpush.bf16.msra.mxu0 %v1686
    %1914 = vmatmul.bf16.gmra.mxu0 %v464
    %v1915 = vpop.f32.mrf.mxu0
    %v1916 = vadd.f32 %v1902, %v1915
    %v1917 = vpop.f32.mrf.mxu0
    %v1918 = vadd.f32 %v1904, %v1917
    %1919 = vdwg.mxu0
    %1920 = vmatpush.bf16.msra.mxu0 %v1746
    %1921 = vmatpush.bf16.msra.mxu0 %v1742
    %1922 = vmatpush.bf16.msra.mxu0 %v1738
    %1923 = vmatpush.bf16.msra.mxu0 %v1734
    %1924 = vmatpush.bf16.msra.mxu0 %v1730
    %1925 = vmatpush.bf16.msra.mxu0 %v1726
    %1926 = vmatpush.bf16.msra.mxu0 %v1722
    %1927 = vmatpush.bf16.msra.mxu0 %v1718
    %1928 = vmatmul.bf16.gmra.mxu0 %v465
    %v1929 = vpop.f32.mrf.mxu0
    %v1930 = vadd.f32 %v1916, %v1929
    %v1931 = vpop.f32.mrf.mxu0
    %v1932 = vadd.f32 %v1918, %v1931
    %1933 = vdwg.mxu0
    %1934 = vmatpush.bf16.msra.mxu0 %v1778
    %1935 = vmatpush.bf16.msra.mxu0 %v1774
    %1936 = vmatpush.bf16.msra.mxu0 %v1770
    %1937 = vmatpush.bf16.msra.mxu0 %v1766
    %1938 = vmatpush.bf16.msra.mxu0 %v1762
    %1939 = vmatpush.bf16.msra.mxu0 %v1758
    %1940 = vmatpush.bf16.msra.mxu0 %v1754
    %1941 = vmatpush.bf16.msra.mxu0 %v1750
    %1942 = vmatmul.bf16.gmra.mxu0 %v466
    %v1943 = vpop.f32.mrf.mxu0
    %v1944 = vadd.f32 %v1930, %v1943
    %v1945 = vpop.f32.mrf.mxu0
    %v1946 = vadd.f32 %v1932, %v1945
    %1947 = vdwg.mxu0
    %1948 = vmatpush.bf16.msra.mxu0 %v1810
    %1949 = vmatpush.bf16.msra.mxu0 %v1806
    %1950 = vmatpush.bf16.msra.mxu0 %v1802
    %1951 = vmatpush.bf16.msra.mxu0 %v1798
    %1952 = vmatpush.bf16.msra.mxu0 %v1794
    %1953 = vmatpush.bf16.msra.mxu0 %v1790
    %1954 = vmatpush.bf16.msra.mxu0 %v1786
    %1955 = vmatpush.bf16.msra.mxu0 %v1782
    %1956 = vmatmul.bf16.gmra.mxu0 %v467
    %v1957 = vpop.f32.mrf.mxu0
    %v1958 = vadd.f32 %v1944, %v1957
    %v1959 = vpop.f32.mrf.mxu0
    %v1960 = vadd.f32 %v1946, %v1959
    %1961 = vdwg.mxu0
    %1962 = vmatpush.bf16.msra.mxu0 %v1842
    %1963 = vmatpush.bf16.msra.mxu0 %v1838
    %1964 = vmatpush.bf16.msra.mxu0 %v1834
    %1965 = vmatpush.bf16.msra.mxu0 %v1830
    %1966 = vmatpush.bf16.msra.mxu0 %v1826
    %1967 = vmatpush.bf16.msra.mxu0 %v1822
    %1968 = vmatpush.bf16.msra.mxu0 %v1818
    %1969 = vmatpush.bf16.msra.mxu0 %v1814
    %1970 = vmatmul.bf16.gmra.mxu0 %v468
    %v1971 = vpop.f32.mrf.mxu0
    %v1972 = vadd.f32 %v1958, %v1971
    %v1973 = vpop.f32.mrf.mxu0
    %v1974 = vadd.f32 %v1960, %v1973
    %1975 = vdwg.mxu0
    %1976 = vmatpush.bf16.msra.mxu0 %v1874
    %1977 = vmatpush.bf16.msra.mxu0 %v1870
    %1978 = vmatpush.bf16.msra.mxu0 %v1866
    %1979 = vmatpush.bf16.msra.mxu0 %v1862
    %1980 = vmatpush.bf16.msra.mxu0 %v1858
    %1981 = vmatpush.bf16.msra.mxu0 %v1854
    %1982 = vmatpush.bf16.msra.mxu0 %v1850
    %1983 = vmatpush.bf16.msra.mxu0 %v1846
    %1984 = vmatmul.bf16.gmra.mxu0 %v469
    %v1985 = vpop.f32.mrf.mxu0
    %v1986 = vadd.f32 %v1972, %v1985
    %v1987 = vpop.f32.mrf.mxu0
    %v1988 = vadd.f32 %v1974, %v1987
    %1989 = vdwg.mxu0
    %1990 = vmatpush.bf16.msra.mxu0 %v1651
    %1991 = vmatpush.bf16.msra.mxu0 %v1647
    %1992 = vmatpush.bf16.msra.mxu0 %v1643
    %1993 = vmatpush.bf16.msra.mxu0 %v1639
    %1994 = vmatpush.bf16.msra.mxu0 %v1635
    %1995 = vmatpush.bf16.msra.mxu0 %v1631
    %1996 = vmatpush.bf16.msra.mxu0 %v1627
    %1997 = vmatpush.bf16.msra.mxu0 %v1623
    %1998 = vmatmul.bf16.gmra.mxu0 %v462
    %v1999 = vpop.f32.mrf.mxu0
    %v2000 = vadd.f32 0.0, %v1999
    %v2001 = vpop.f32.mrf.mxu0
    %v2002 = vadd.f32 0.0, %v2001
    %2003 = vdwg.mxu0
    %2004 = vmatpush.bf16.msra.mxu0 %v1683
    %2005 = vmatpush.bf16.msra.mxu0 %v1679
    %2006 = vmatpush.bf16.msra.mxu0 %v1675
    %2007 = vmatpush.bf16.msra.mxu0 %v1671
    %2008 = vmatpush.bf16.msra.mxu0 %v1667
    %2009 = vmatpush.bf16.msra.mxu0 %v1663
    %2010 = vmatpush.bf16.msra.mxu0 %v1659
    %2011 = vmatpush.bf16.msra.mxu0 %v1655
    %2012 = vmatmul.bf16.gmra.mxu0 %v463
    %v2013 = vpop.f32.mrf.mxu0
    %v2014 = vadd.f32 %v2000, %v2013
    %v2015 = vpop.f32.mrf.mxu0
    %v2016 = vadd.f32 %v2002, %v2015
    %2017 = vdwg.mxu0
    %2018 = vmatpush.bf16.msra.mxu0 %v1715
    %2019 = vmatpush.bf16.msra.mxu0 %v1711
    %2020 = vmatpush.bf16.msra.mxu0 %v1707
    %2021 = vmatpush.bf16.msra.mxu0 %v1703
    %2022 = vmatpush.bf16.msra.mxu0 %v1699
    %2023 = vmatpush.bf16.msra.mxu0 %v1695
    %2024 = vmatpush.bf16.msra.mxu0 %v1691
    %2025 = vmatpush.bf16.msra.mxu0 %v1687
    %2026 = vmatmul.bf16.gmra.mxu0 %v464
    %v2027 = vpop.f32.mrf.mxu0
    %v2028 = vadd.f32 %v2014, %v2027
    %v2029 = vpop.f32.mrf.mxu0
    %v2030 = vadd.f32 %v2016, %v2029
    %2031 = vdwg.mxu0
    %2032 = vmatpush.bf16.msra.mxu0 %v1747
    %2033 = vmatpush.bf16.msra.mxu0 %v1743
    %2034 = vmatpush.bf16.msra.mxu0 %v1739
    %2035 = vmatpush.bf16.msra.mxu0 %v1735
    %2036 = vmatpush.bf16.msra.mxu0 %v1731
    %2037 = vmatpush.bf16.msra.mxu0 %v1727
    %2038 = vmatpush.bf16.msra.mxu0 %v1723
    %2039 = vmatpush.bf16.msra.mxu0 %v1719
    %2040 = vmatmul.bf16.gmra.mxu0 %v465
    %v2041 = vpop.f32.mrf.mxu0
    %v2042 = vadd.f32 %v2028, %v2041
    %v2043 = vpop.f32.mrf.mxu0
    %v2044 = vadd.f32 %v2030, %v2043
    %2045 = vdwg.mxu0
    %2046 = vmatpush.bf16.msra.mxu0 %v1779
    %2047 = vmatpush.bf16.msra.mxu0 %v1775
    %2048 = vmatpush.bf16.msra.mxu0 %v1771
    %2049 = vmatpush.bf16.msra.mxu0 %v1767
    %2050 = vmatpush.bf16.msra.mxu0 %v1763
    %2051 = vmatpush.bf16.msra.mxu0 %v1759
    %2052 = vmatpush.bf16.msra.mxu0 %v1755
    %2053 = vmatpush.bf16.msra.mxu0 %v1751
    %2054 = vmatmul.bf16.gmra.mxu0 %v466
    %v2055 = vpop.f32.mrf.mxu0
    %v2056 = vadd.f32 %v2042, %v2055
    %v2057 = vpop.f32.mrf.mxu0
    %v2058 = vadd.f32 %v2044, %v2057
    %2059 = vdwg.mxu0
    %2060 = vmatpush.bf16.msra.mxu0 %v1811
    %2061 = vmatpush.bf16.msra.mxu0 %v1807
    %2062 = vmatpush.bf16.msra.mxu0 %v1803
    %2063 = vmatpush.bf16.msra.mxu0 %v1799
    %2064 = vmatpush.bf16.msra.mxu0 %v1795
    %2065 = vmatpush.bf16.msra.mxu0 %v1791
    %2066 = vmatpush.bf16.msra.mxu0 %v1787
    %2067 = vmatpush.bf16.msra.mxu0 %v1783
    %2068 = vmatmul.bf16.gmra.mxu0 %v467
    %v2069 = vpop.f32.mrf.mxu0
    %v2070 = vadd.f32 %v2056, %v2069
    %v2071 = vpop.f32.mrf.mxu0
    %v2072 = vadd.f32 %v2058, %v2071
    %2073 = vdwg.mxu0
    %2074 = vmatpush.bf16.msra.mxu0 %v1843
    %2075 = vmatpush.bf16.msra.mxu0 %v1839
    %2076 = vmatpush.bf16.msra.mxu0 %v1835
    %2077 = vmatpush.bf16.msra.mxu0 %v1831
    %2078 = vmatpush.bf16.msra.mxu0 %v1827
    %2079 = vmatpush.bf16.msra.mxu0 %v1823
    %2080 = vmatpush.bf16.msra.mxu0 %v1819
    %2081 = vmatpush.bf16.msra.mxu0 %v1815
    %2082 = vmatmul.bf16.gmra.mxu0 %v468
    %v2083 = vpop.f32.mrf.mxu0
    %v2084 = vadd.f32 %v2070, %v2083
    %v2085 = vpop.f32.mrf.mxu0
    %v2086 = vadd.f32 %v2072, %v2085
    %2087 = vdwg.mxu0
    %2088 = vmatpush.bf16.msra.mxu0 %v1875
    %2089 = vmatpush.bf16.msra.mxu0 %v1871
    %2090 = vmatpush.bf16.msra.mxu0 %v1867
    %2091 = vmatpush.bf16.msra.mxu0 %v1863
    %2092 = vmatpush.bf16.msra.mxu0 %v1859
    %2093 = vmatpush.bf16.msra.mxu0 %v1855
    %2094 = vmatpush.bf16.msra.mxu0 %v1851
    %2095 = vmatpush.bf16.msra.mxu0 %v1847
    %2096 = vmatmul.bf16.gmra.mxu0 %v469
    %v2097 = vpop.f32.mrf.mxu0
    %v2098 = vadd.f32 %v2084, %v2097
    %v2099 = vpop.f32.mrf.mxu0
    %v2100 = vadd.f32 %v2086, %v2099
    %2101 = vdwg.mxu0
    %2102 = vmatpush.bf16.msra.mxu0 %v1652
    %2103 = vmatpush.bf16.msra.mxu0 %v1648
    %2104 = vmatpush.bf16.msra.mxu0 %v1644
    %2105 = vmatpush.bf16.msra.mxu0 %v1640
    %2106 = vmatpush.bf16.msra.mxu0 %v1636
    %2107 = vmatpush.bf16.msra.mxu0 %v1632
    %2108 = vmatpush.bf16.msra.mxu0 %v1628
    %2109 = vmatpush.bf16.msra.mxu0 %v1624
    %2110 = vmatmul.bf16.gmra.mxu0 %v462
    %v2111 = vpop.f32.mrf.mxu0
    %v2112 = vadd.f32 0.0, %v2111
    %v2113 = vpop.f32.mrf.mxu0
    %v2114 = vadd.f32 0.0, %v2113
    %2115 = vdwg.mxu0
    %2116 = vmatpush.bf16.msra.mxu0 %v1684
    %2117 = vmatpush.bf16.msra.mxu0 %v1680
    %2118 = vmatpush.bf16.msra.mxu0 %v1676
    %2119 = vmatpush.bf16.msra.mxu0 %v1672
    %2120 = vmatpush.bf16.msra.mxu0 %v1668
    %2121 = vmatpush.bf16.msra.mxu0 %v1664
    %2122 = vmatpush.bf16.msra.mxu0 %v1660
    %2123 = vmatpush.bf16.msra.mxu0 %v1656
    %2124 = vmatmul.bf16.gmra.mxu0 %v463
    %v2125 = vpop.f32.mrf.mxu0
    %v2126 = vadd.f32 %v2112, %v2125
    %v2127 = vpop.f32.mrf.mxu0
    %v2128 = vadd.f32 %v2114, %v2127
    %2129 = vdwg.mxu0
    %2130 = vmatpush.bf16.msra.mxu0 %v1716
    %2131 = vmatpush.bf16.msra.mxu0 %v1712
    %2132 = vmatpush.bf16.msra.mxu0 %v1708
    %2133 = vmatpush.bf16.msra.mxu0 %v1704
    %2134 = vmatpush.bf16.msra.mxu0 %v1700
    %2135 = vmatpush.bf16.msra.mxu0 %v1696
    %2136 = vmatpush.bf16.msra.mxu0 %v1692
    %2137 = vmatpush.bf16.msra.mxu0 %v1688
    %2138 = vmatmul.bf16.gmra.mxu0 %v464
    %v2139 = vpop.f32.mrf.mxu0
    %v2140 = vadd.f32 %v2126, %v2139
    %v2141 = vpop.f32.mrf.mxu0
    %v2142 = vadd.f32 %v2128, %v2141
    %2143 = vdwg.mxu0
    %2144 = vmatpush.bf16.msra.mxu0 %v1748
    %2145 = vmatpush.bf16.msra.mxu0 %v1744
    %2146 = vmatpush.bf16.msra.mxu0 %v1740
    %2147 = vmatpush.bf16.msra.mxu0 %v1736
    %2148 = vmatpush.bf16.msra.mxu0 %v1732
    %2149 = vmatpush.bf16.msra.mxu0 %v1728
    %2150 = vmatpush.bf16.msra.mxu0 %v1724
    %2151 = vmatpush.bf16.msra.mxu0 %v1720
    %2152 = vmatmul.bf16.gmra.mxu0 %v465
    %v2153 = vpop.f32.mrf.mxu0
    %v2154 = vadd.f32 %v2140, %v2153
    %v2155 = vpop.f32.mrf.mxu0
    %v2156 = vadd.f32 %v2142, %v2155
    %2157 = vdwg.mxu0
    %2158 = vmatpush.bf16.msra.mxu0 %v1780
    %2159 = vmatpush.bf16.msra.mxu0 %v1776
    %2160 = vmatpush.bf16.msra.mxu0 %v1772
    %2161 = vmatpush.bf16.msra.mxu0 %v1768
    %2162 = vmatpush.bf16.msra.mxu0 %v1764
    %2163 = vmatpush.bf16.msra.mxu0 %v1760
    %2164 = vmatpush.bf16.msra.mxu0 %v1756
    %2165 = vmatpush.bf16.msra.mxu0 %v1752
    %2166 = vmatmul.bf16.gmra.mxu0 %v466
    %v2167 = vpop.f32.mrf.mxu0
    %v2168 = vadd.f32 %v2154, %v2167
    %v2169 = vpop.f32.mrf.mxu0
    %v2170 = vadd.f32 %v2156, %v2169
    %2171 = vdwg.mxu0
    %2172 = vmatpush.bf16.msra.mxu0 %v1812
    %2173 = vmatpush.bf16.msra.mxu0 %v1808
    %2174 = vmatpush.bf16.msra.mxu0 %v1804
    %2175 = vmatpush.bf16.msra.mxu0 %v1800
    %2176 = vmatpush.bf16.msra.mxu0 %v1796
    %2177 = vmatpush.bf16.msra.mxu0 %v1792
    %2178 = vmatpush.bf16.msra.mxu0 %v1788
    %2179 = vmatpush.bf16.msra.mxu0 %v1784
    %2180 = vmatmul.bf16.gmra.mxu0 %v467
    %v2181 = vpop.f32.mrf.mxu0
    %v2182 = vadd.f32 %v2168, %v2181
    %v2183 = vpop.f32.mrf.mxu0
    %v2184 = vadd.f32 %v2170, %v2183
    %2185 = vdwg.mxu0
    %2186 = vmatpush.bf16.msra.mxu0 %v1844
    %2187 = vmatpush.bf16.msra.mxu0 %v1840
    %2188 = vmatpush.bf16.msra.mxu0 %v1836
    %2189 = vmatpush.bf16.msra.mxu0 %v1832
    %2190 = vmatpush.bf16.msra.mxu0 %v1828
    %2191 = vmatpush.bf16.msra.mxu0 %v1824
    %2192 = vmatpush.bf16.msra.mxu0 %v1820
    %2193 = vmatpush.bf16.msra.mxu0 %v1816
    %2194 = vmatmul.bf16.gmra.mxu0 %v468
    %v2195 = vpop.f32.mrf.mxu0
    %v2196 = vadd.f32 %v2182, %v2195
    %v2197 = vpop.f32.mrf.mxu0
    %v2198 = vadd.f32 %v2184, %v2197
    %2199 = vdwg.mxu0
    %2200 = vmatpush.bf16.msra.mxu0 %v1876
    %2201 = vmatpush.bf16.msra.mxu0 %v1872
    %2202 = vmatpush.bf16.msra.mxu0 %v1868
    %2203 = vmatpush.bf16.msra.mxu0 %v1864
    %2204 = vmatpush.bf16.msra.mxu0 %v1860
    %2205 = vmatpush.bf16.msra.mxu0 %v1856
    %2206 = vmatpush.bf16.msra.mxu0 %v1852
    %2207 = vmatpush.bf16.msra.mxu0 %v1848
    %2208 = vmatmul.bf16.gmra.mxu0 %v469
    %v2209 = vpop.f32.mrf.mxu0
    %v2210 = vadd.f32 %v2196, %v2209
    %v2211 = vpop.f32.mrf.mxu0
    %v2212 = vadd.f32 %v2198, %v2211
    %2213 = vdwg.mxu0
    %2214 = vmatpush.bf16.msra.mxu0 %v1653
    %2215 = vmatpush.bf16.msra.mxu0 %v1649
    %2216 = vmatpush.bf16.msra.mxu0 %v1645
    %2217 = vmatpush.bf16.msra.mxu0 %v1641
    %2218 = vmatpush.bf16.msra.mxu0 %v1637
    %2219 = vmatpush.bf16.msra.mxu0 %v1633
    %2220 = vmatpush.bf16.msra.mxu0 %v1629
    %2221 = vmatpush.bf16.msra.mxu0 %v1625
    %2222 = vmatmul.bf16.gmra.mxu0 %v462
    %v2223 = vpop.f32.mrf.mxu0
    %v2224 = vadd.f32 0.0, %v2223
    %v2225 = vpop.f32.mrf.mxu0
    %v2226 = vadd.f32 0.0, %v2225
    %2227 = vdwg.mxu0
    %2228 = vmatpush.bf16.msra.mxu0 %v1685
    %2229 = vmatpush.bf16.msra.mxu0 %v1681
    %2230 = vmatpush.bf16.msra.mxu0 %v1677
    %2231 = vmatpush.bf16.msra.mxu0 %v1673
    %2232 = vmatpush.bf16.msra.mxu0 %v1669
    %2233 = vmatpush.bf16.msra.mxu0 %v1665
    %2234 = vmatpush.bf16.msra.mxu0 %v1661
    %2235 = vmatpush.bf16.msra.mxu0 %v1657
    %2236 = vmatmul.bf16.gmra.mxu0 %v463
    %v2237 = vpop.f32.mrf.mxu0
    %v2238 = vadd.f32 %v2224, %v2237
    %v2239 = vpop.f32.mrf.mxu0
    %v2240 = vadd.f32 %v2226, %v2239
    %2241 = vdwg.mxu0
    %2242 = vmatpush.bf16.msra.mxu0 %v1717
    %2243 = vmatpush.bf16.msra.mxu0 %v1713
    %2244 = vmatpush.bf16.msra.mxu0 %v1709
    %2245 = vmatpush.bf16.msra.mxu0 %v1705
    %2246 = vmatpush.bf16.msra.mxu0 %v1701
    %2247 = vmatpush.bf16.msra.mxu0 %v1697
    %2248 = vmatpush.bf16.msra.mxu0 %v1693
    %2249 = vmatpush.bf16.msra.mxu0 %v1689
    %2250 = vmatmul.bf16.gmra.mxu0 %v464
    %v2251 = vpop.f32.mrf.mxu0
    %v2252 = vadd.f32 %v2238, %v2251
    %v2253 = vpop.f32.mrf.mxu0
    %v2254 = vadd.f32 %v2240, %v2253
    %2255 = vdwg.mxu0
    %2256 = vmatpush.bf16.msra.mxu0 %v1749
    %2257 = vmatpush.bf16.msra.mxu0 %v1745
    %2258 = vmatpush.bf16.msra.mxu0 %v1741
    %2259 = vmatpush.bf16.msra.mxu0 %v1737
    %2260 = vmatpush.bf16.msra.mxu0 %v1733
    %2261 = vmatpush.bf16.msra.mxu0 %v1729
    %2262 = vmatpush.bf16.msra.mxu0 %v1725
    %2263 = vmatpush.bf16.msra.mxu0 %v1721
    %2264 = vmatmul.bf16.gmra.mxu0 %v465
    %v2265 = vpop.f32.mrf.mxu0
    %v2266 = vadd.f32 %v2252, %v2265
    %v2267 = vpop.f32.mrf.mxu0
    %v2268 = vadd.f32 %v2254, %v2267
    %2269 = vdwg.mxu0
    %2270 = vmatpush.bf16.msra.mxu0 %v1781
    %2271 = vmatpush.bf16.msra.mxu0 %v1777
    %2272 = vmatpush.bf16.msra.mxu0 %v1773
    %2273 = vmatpush.bf16.msra.mxu0 %v1769
    %2274 = vmatpush.bf16.msra.mxu0 %v1765
    %2275 = vmatpush.bf16.msra.mxu0 %v1761
    %2276 = vmatpush.bf16.msra.mxu0 %v1757
    %2277 = vmatpush.bf16.msra.mxu0 %v1753
    %2278 = vmatmul.bf16.gmra.mxu0 %v466
    %v2279 = vpop.f32.mrf.mxu0
    %v2280 = vadd.f32 %v2266, %v2279
    %v2281 = vpop.f32.mrf.mxu0
    %v2282 = vadd.f32 %v2268, %v2281
    %2283 = vdwg.mxu0
    %2284 = vmatpush.bf16.msra.mxu0 %v1813
    %2285 = vmatpush.bf16.msra.mxu0 %v1809
    %2286 = vmatpush.bf16.msra.mxu0 %v1805
    %2287 = vmatpush.bf16.msra.mxu0 %v1801
    %2288 = vmatpush.bf16.msra.mxu0 %v1797
    %2289 = vmatpush.bf16.msra.mxu0 %v1793
    %2290 = vmatpush.bf16.msra.mxu0 %v1789
    %2291 = vmatpush.bf16.msra.mxu0 %v1785
    %2292 = vmatmul.bf16.gmra.mxu0 %v467
    %v2293 = vpop.f32.mrf.mxu0
    %v2294 = vadd.f32 %v2280, %v2293
    %v2295 = vpop.f32.mrf.mxu0
    %v2296 = vadd.f32 %v2282, %v2295
    %2297 = vdwg.mxu0
    %2298 = vmatpush.bf16.msra.mxu0 %v1845
    %2299 = vmatpush.bf16.msra.mxu0 %v1841
    %2300 = vmatpush.bf16.msra.mxu0 %v1837
    %2301 = vmatpush.bf16.msra.mxu0 %v1833
    %2302 = vmatpush.bf16.msra.mxu0 %v1829
    %2303 = vmatpush.bf16.msra.mxu0 %v1825
    %2304 = vmatpush.bf16.msra.mxu0 %v1821
    %2305 = vmatpush.bf16.msra.mxu0 %v1817
    %2306 = vmatmul.bf16.gmra.mxu0 %v468
    %v2307 = vpop.f32.mrf.mxu0
    %v2308 = vadd.f32 %v2294, %v2307
    %v2309 = vpop.f32.mrf.mxu0
    %v2310 = vadd.f32 %v2296, %v2309
    %2311 = vdwg.mxu0
    %2312 = vmatpush.bf16.msra.mxu0 %v1877
    %2313 = vmatpush.bf16.msra.mxu0 %v1873
    %2314 = vmatpush.bf16.msra.mxu0 %v1869
    %2315 = vmatpush.bf16.msra.mxu0 %v1865
    %2316 = vmatpush.bf16.msra.mxu0 %v1861
    %2317 = vmatpush.bf16.msra.mxu0 %v1857
    %2318 = vmatpush.bf16.msra.mxu0 %v1853
    %2319 = vmatpush.bf16.msra.mxu0 %v1849
    %2320 = vmatmul.bf16.gmra.mxu0 %v469
    %v2321 = vpop.f32.mrf.mxu0
    %v2322 = vadd.f32 %v2308, %v2321
    %v2323 = vpop.f32.mrf.mxu0
    %v2324 = vadd.f32 %v2310, %v2323
    %2325 = vdwg.mxu0
    %v2326 = vld [vmem:[%s5] sm:$0xf]
    %v2328 = vperm.slane %v2326, 0
    %v2329 = vperm.slane %v2326, 1
    %v2330 = vperm.slane %v2326, 2
    %v2331 = vperm.slane %v2326, 3
    %v2336 = vmul.f32 %v1986, %v2328
    %v2337 = vmul.f32 %v2098, %v2329
    %v2338 = vmul.f32 %v2210, %v2330
    %v2339 = vmul.f32 %v2322, %v2331
    %v2340 = vmul.f32 %v1988, %v2328
    %v2341 = vmul.f32 %v2100, %v2329
    %v2342 = vmul.f32 %v2212, %v2330
    %v2343 = vmul.f32 %v2324, %v2331
    %v2344 = vld [vmem:[#allocation6] sm:$0xf]
    %v2346 = vperm.slane %v2344, 0
    %v2347 = vperm.slane %v2344, 1
    %v2348 = vperm.slane %v2344, 2
    %v2349 = vperm.slane %v2344, 3
    %v2354 = vadd.f32 %v2336, %v2346
    %v2355 = vadd.f32 %v2337, %v2347
    %v2356 = vadd.f32 %v2338, %v2348
    %v2357 = vadd.f32 %v2339, %v2349
    %v2358 = vadd.f32 %v2340, %v2346
    %v2359 = vadd.f32 %v2341, %v2347
    %v2360 = vadd.f32 %v2342, %v2348
    %v2361 = vadd.f32 %v2343, %v2349
    %v2362 = vmax.f32 %v2354, 0.0
    %v2363 = vmax.f32 %v2355, 0.0
    %v2364 = vmax.f32 %v2356, 0.0
    %v2365 = vmax.f32 %v2357, 0.0
    %v2366 = vmax.f32 %v2358, 0.0
    %v2367 = vmax.f32 %v2359, 0.0
    %v2368 = vmax.f32 %v2360, 0.0
    %v2369 = vmax.f32 %v2361, 0.0
    %v2370 = vpack.c.bf16 %v2366, %v2362
    %v2371 = vpack.c.bf16 %v2367, %v2363
    %v2372 = vpack.c.bf16 %v2368, %v2364
    %v2373 = vpack.c.bf16 %v2369, %v2365
    %v2374 = vld [vmem:[#allocation7] sm:$0xff]
    %v2375 = vld [vmem:[#allocation7 + $0x8] sm:$0xff]
    %v2376 = vld [vmem:[#allocation7 + $0x10] sm:$0xff]
    %v2377 = vld [vmem:[#allocation7 + $0x18] sm:$0xff]
    %v2378 = vld [vmem:[#allocation7 + $0x20] sm:$0xff]
    %v2379 = vld [vmem:[#allocation7 + $0x28] sm:$0xff]
    %v2380 = vld [vmem:[#allocation7 + $0x30] sm:$0xff]
    %v2381 = vld [vmem:[#allocation7 + $0x38] sm:$0xff]
    %v2382 = vld [vmem:[#allocation7 + $0x40] sm:$0xff]
    %v2383 = vld [vmem:[#allocation7 + $0x48] sm:$0xff]
    %v2384 = vld [vmem:[#allocation7 + $0x50] sm:$0xff]
    %v2385 = vld [vmem:[#allocation7 + $0x58] sm:$0xff]
    %v2386 = vld [vmem:[#allocation7 + $0x60] sm:$0xff]
    %v2387 = vld [vmem:[#allocation7 + $0x68] sm:$0xff]
    %v2388 = vld [vmem:[#allocation7 + $0x70] sm:$0xff]
    %v2389 = vld [vmem:[#allocation7 + $0x78] sm:$0xff]
    %v2390 = vld [vmem:[#allocation7 + $0x80] sm:$0xff]
    %v2391 = vld [vmem:[#allocation7 + $0x88] sm:$0xff]
    %v2392 = vld [vmem:[#allocation7 + $0x90] sm:$0xff]
    %v2393 = vld [vmem:[#allocation7 + $0x98] sm:$0xff]
    %v2394 = vld [vmem:[#allocation7 + $0xa0] sm:$0xff]
    %v2395 = vld [vmem:[#allocation7 + $0xa8] sm:$0xff]
    %v2396 = vld [vmem:[#allocation7 + $0xb0] sm:$0xff]
    %v2397 = vld [vmem:[#allocation7 + $0xb8] sm:$0xff]
    %v2398 = vld [vmem:[#allocation7 + $0xc0] sm:$0xff]
    %v2399 = vld [vmem:[#allocation7 + $0xc8] sm:$0xff]
    %v2400 = vld [vmem:[#allocation7 + $0xd0] sm:$0xff]
    %v2401 = vld [vmem:[#allocation7 + $0xd8] sm:$0xff]
    %v2402 = vld [vmem:[#allocation7 + $0xe0] sm:$0xff]
    %v2403 = vld [vmem:[#allocation7 + $0xe8] sm:$0xff]
    %v2404 = vld [vmem:[#allocation7 + $0xf0] sm:$0xff]
    %v2405 = vld [vmem:[#allocation7 + $0xf8] sm:$0xff]
    %v2406 = vld [vmem:[#allocation7 + $0x100] sm:$0xff]
    %v2407 = vld [vmem:[#allocation7 + $0x108] sm:$0xff]
    %v2408 = vld [vmem:[#allocation7 + $0x110] sm:$0xff]
    %v2409 = vld [vmem:[#allocation7 + $0x118] sm:$0xff]
    %v2410 = vld [vmem:[#allocation7 + $0x120] sm:$0xff]
    %v2411 = vld [vmem:[#allocation7 + $0x128] sm:$0xff]
    %v2412 = vld [vmem:[#allocation7 + $0x130] sm:$0xff]
    %v2413 = vld [vmem:[#allocation7 + $0x138] sm:$0xff]
    %v2414 = vld [vmem:[#allocation7 + $0x140] sm:$0xff]
    %v2415 = vld [vmem:[#allocation7 + $0x148] sm:$0xff]
    %v2416 = vld [vmem:[#allocation7 + $0x150] sm:$0xff]
    %v2417 = vld [vmem:[#allocation7 + $0x158] sm:$0xff]
    %v2418 = vld [vmem:[#allocation7 + $0x160] sm:$0xff]
    %v2419 = vld [vmem:[#allocation7 + $0x168] sm:$0xff]
    %v2420 = vld [vmem:[#allocation7 + $0x170] sm:$0xff]
    %v2421 = vld [vmem:[#allocation7 + $0x178] sm:$0xff]
    %v2422 = vld [vmem:[#allocation7 + $0x180] sm:$0xff]
    %v2423 = vld [vmem:[#allocation7 + $0x188] sm:$0xff]
    %v2424 = vld [vmem:[#allocation7 + $0x190] sm:$0xff]
    %v2425 = vld [vmem:[#allocation7 + $0x198] sm:$0xff]
    %v2426 = vld [vmem:[#allocation7 + $0x1a0] sm:$0xff]
    %v2427 = vld [vmem:[#allocation7 + $0x1a8] sm:$0xff]
    %v2428 = vld [vmem:[#allocation7 + $0x1b0] sm:$0xff]
    %v2429 = vld [vmem:[#allocation7 + $0x1b8] sm:$0xff]
    %v2430 = vld [vmem:[#allocation7 + $0x1c0] sm:$0xff]
    %v2431 = vld [vmem:[#allocation7 + $0x1c8] sm:$0xff]
    %v2432 = vld [vmem:[#allocation7 + $0x1d0] sm:$0xff]
    %v2433 = vld [vmem:[#allocation7 + $0x1d8] sm:$0xff]
    %v2434 = vld [vmem:[#allocation7 + $0x1e0] sm:$0xff]
    %v2435 = vld [vmem:[#allocation7 + $0x1e8] sm:$0xff]
    %v2436 = vld [vmem:[#allocation7 + $0x1f0] sm:$0xff]
    %v2437 = vld [vmem:[#allocation7 + $0x1f8] sm:$0xff]
    %v2438 = vunpack.c.0.s8 %v2374
    %v2439 = vunpack.c.0.s8 %v2375
    %v2440 = vunpack.c.0.s8 %v2376
    %v2441 = vunpack.c.0.s8 %v2377
    %v2442 = vunpack.c.1.s8 %v2374
    %v2443 = vunpack.c.1.s8 %v2375
    %v2444 = vunpack.c.1.s8 %v2376
    %v2445 = vunpack.c.1.s8 %v2377
    %v2446 = vunpack.c.2.s8 %v2374
    %v2447 = vunpack.c.2.s8 %v2375
    %v2448 = vunpack.c.2.s8 %v2376
    %v2449 = vunpack.c.2.s8 %v2377
    %v2450 = vunpack.c.3.s8 %v2374
    %v2451 = vunpack.c.3.s8 %v2375
    %v2452 = vunpack.c.3.s8 %v2376
    %v2453 = vunpack.c.3.s8 %v2377
    %v2454 = vunpack.c.0.s8 %v2378
    %v2455 = vunpack.c.0.s8 %v2379
    %v2456 = vunpack.c.0.s8 %v2380
    %v2457 = vunpack.c.0.s8 %v2381
    %v2458 = vunpack.c.1.s8 %v2378
    %v2459 = vunpack.c.1.s8 %v2379
    %v2460 = vunpack.c.1.s8 %v2380
    %v2461 = vunpack.c.1.s8 %v2381
    %v2462 = vunpack.c.2.s8 %v2378
    %v2463 = vunpack.c.2.s8 %v2379
    %v2464 = vunpack.c.2.s8 %v2380
    %v2465 = vunpack.c.2.s8 %v2381
    %v2466 = vunpack.c.3.s8 %v2378
    %v2467 = vunpack.c.3.s8 %v2379
    %v2468 = vunpack.c.3.s8 %v2380
    %v2469 = vunpack.c.3.s8 %v2381
    %v2470 = vunpack.c.0.s8 %v2382
    %v2471 = vunpack.c.0.s8 %v2383
    %v2472 = vunpack.c.0.s8 %v2384
    %v2473 = vunpack.c.0.s8 %v2385
    %v2474 = vunpack.c.1.s8 %v2382
    %v2475 = vunpack.c.1.s8 %v2383
    %v2476 = vunpack.c.1.s8 %v2384
    %v2477 = vunpack.c.1.s8 %v2385
    %v2478 = vunpack.c.2.s8 %v2382
    %v2479 = vunpack.c.2.s8 %v2383
    %v2480 = vunpack.c.2.s8 %v2384
    %v2481 = vunpack.c.2.s8 %v2385
    %v2482 = vunpack.c.3.s8 %v2382
    %v2483 = vunpack.c.3.s8 %v2383
    %v2484 = vunpack.c.3.s8 %v2384
    %v2485 = vunpack.c.3.s8 %v2385
    %v2486 = vunpack.c.0.s8 %v2386
    %v2487 = vunpack.c.0.s8 %v2387
    %v2488 = vunpack.c.0.s8 %v2388
    %v2489 = vunpack.c.0.s8 %v2389
    %v2490 = vunpack.c.1.s8 %v2386
    %v2491 = vunpack.c.1.s8 %v2387
    %v2492 = vunpack.c.1.s8 %v2388
    %v2493 = vunpack.c.1.s8 %v2389
    %v2494 = vunpack.c.2.s8 %v2386
    %v2495 = vunpack.c.2.s8 %v2387
    %v2496 = vunpack.c.2.s8 %v2388
    %v2497 = vunpack.c.2.s8 %v2389
    %v2498 = vunpack.c.3.s8 %v2386
    %v2499 = vunpack.c.3.s8 %v2387
    %v2500 = vunpack.c.3.s8 %v2388
    %v2501 = vunpack.c.3.s8 %v2389
    %v2502 = vunpack.c.0.s8 %v2390
    %v2503 = vunpack.c.0.s8 %v2391
    %v2504 = vunpack.c.0.s8 %v2392
    %v2505 = vunpack.c.0.s8 %v2393
    %v2506 = vunpack.c.1.s8 %v2390
    %v2507 = vunpack.c.1.s8 %v2391
    %v2508 = vunpack.c.1.s8 %v2392
    %v2509 = vunpack.c.1.s8 %v2393
    %v2510 = vunpack.c.2.s8 %v2390
    %v2511 = vunpack.c.2.s8 %v2391
    %v2512 = vunpack.c.2.s8 %v2392
    %v2513 = vunpack.c.2.s8 %v2393
    %v2514 = vunpack.c.3.s8 %v2390
    %v2515 = vunpack.c.3.s8 %v2391
    %v2516 = vunpack.c.3.s8 %v2392
    %v2517 = vunpack.c.3.s8 %v2393
    %v2518 = vunpack.c.0.s8 %v2394
    %v2519 = vunpack.c.0.s8 %v2395
    %v2520 = vunpack.c.0.s8 %v2396
    %v2521 = vunpack.c.0.s8 %v2397
    %v2522 = vunpack.c.1.s8 %v2394
    %v2523 = vunpack.c.1.s8 %v2395
    %v2524 = vunpack.c.1.s8 %v2396
    %v2525 = vunpack.c.1.s8 %v2397
    %v2526 = vunpack.c.2.s8 %v2394
    %v2527 = vunpack.c.2.s8 %v2395
    %v2528 = vunpack.c.2.s8 %v2396
    %v2529 = vunpack.c.2.s8 %v2397
    %v2530 = vunpack.c.3.s8 %v2394
    %v2531 = vunpack.c.3.s8 %v2395
    %v2532 = vunpack.c.3.s8 %v2396
    %v2533 = vunpack.c.3.s8 %v2397
    %v2534 = vunpack.c.0.s8 %v2398
    %v2535 = vunpack.c.0.s8 %v2399
    %v2536 = vunpack.c.0.s8 %v2400
    %v2537 = vunpack.c.0.s8 %v2401
    %v2538 = vunpack.c.1.s8 %v2398
    %v2539 = vunpack.c.1.s8 %v2399
    %v2540 = vunpack.c.1.s8 %v2400
    %v2541 = vunpack.c.1.s8 %v2401
    %v2542 = vunpack.c.2.s8 %v2398
    %v2543 = vunpack.c.2.s8 %v2399
    %v2544 = vunpack.c.2.s8 %v2400
    %v2545 = vunpack.c.2.s8 %v2401
    %v2546 = vunpack.c.3.s8 %v2398
    %v2547 = vunpack.c.3.s8 %v2399
    %v2548 = vunpack.c.3.s8 %v2400
    %v2549 = vunpack.c.3.s8 %v2401
    %v2550 = vunpack.c.0.s8 %v2402
    %v2551 = vunpack.c.0.s8 %v2403
    %v2552 = vunpack.c.0.s8 %v2404
    %v2553 = vunpack.c.0.s8 %v2405
    %v2554 = vunpack.c.1.s8 %v2402
    %v2555 = vunpack.c.1.s8 %v2403
    %v2556 = vunpack.c.1.s8 %v2404
    %v2557 = vunpack.c.1.s8 %v2405
    %v2558 = vunpack.c.2.s8 %v2402
    %v2559 = vunpack.c.2.s8 %v2403
    %v2560 = vunpack.c.2.s8 %v2404
    %v2561 = vunpack.c.2.s8 %v2405
    %v2562 = vunpack.c.3.s8 %v2402
    %v2563 = vunpack.c.3.s8 %v2403
    %v2564 = vunpack.c.3.s8 %v2404
    %v2565 = vunpack.c.3.s8 %v2405
    %v2566 = vunpack.c.0.s8 %v2406
    %v2567 = vunpack.c.0.s8 %v2407
    %v2568 = vunpack.c.0.s8 %v2408
    %v2569 = vunpack.c.0.s8 %v2409
    %v2570 = vunpack.c.1.s8 %v2406
    %v2571 = vunpack.c.1.s8 %v2407
    %v2572 = vunpack.c.1.s8 %v2408
    %v2573 = vunpack.c.1.s8 %v2409
    %v2574 = vunpack.c.2.s8 %v2406
    %v2575 = vunpack.c.2.s8 %v2407
    %v2576 = vunpack.c.2.s8 %v2408
    %v2577 = vunpack.c.2.s8 %v2409
    %v2578 = vunpack.c.3.s8 %v2406
    %v2579 = vunpack.c.3.s8 %v2407
    %v2580 = vunpack.c.3.s8 %v2408
    %v2581 = vunpack.c.3.s8 %v2409
    %v2582 = vunpack.c.0.s8 %v2410
    %v2583 = vunpack.c.0.s8 %v2411
    %v2584 = vunpack.c.0.s8 %v2412
    %v2585 = vunpack.c.0.s8 %v2413
    %v2586 = vunpack.c.1.s8 %v2410
    %v2587 = vunpack.c.1.s8 %v2411
    %v2588 = vunpack.c.1.s8 %v2412
    %v2589 = vunpack.c.1.s8 %v2413
    %v2590 = vunpack.c.2.s8 %v2410
    %v2591 = vunpack.c.2.s8 %v2411
    %v2592 = vunpack.c.2.s8 %v2412
    %v2593 = vunpack.c.2.s8 %v2413
    %v2594 = vunpack.c.3.s8 %v2410
    %v2595 = vunpack.c.3.s8 %v2411
    %v2596 = vunpack.c.3.s8 %v2412
    %v2597 = vunpack.c.3.s8 %v2413
    %v2598 = vunpack.c.0.s8 %v2414
    %v2599 = vunpack.c.0.s8 %v2415
    %v2600 = vunpack.c.0.s8 %v2416
    %v2601 = vunpack.c.0.s8 %v2417
    %v2602 = vunpack.c.1.s8 %v2414
    %v2603 = vunpack.c.1.s8 %v2415
    %v2604 = vunpack.c.1.s8 %v2416
    %v2605 = vunpack.c.1.s8 %v2417
    %v2606 = vunpack.c.2.s8 %v2414
    %v2607 = vunpack.c.2.s8 %v2415
    %v2608 = vunpack.c.2.s8 %v2416
    %v2609 = vunpack.c.2.s8 %v2417
    %v2610 = vunpack.c.3.s8 %v2414
    %v2611 = vunpack.c.3.s8 %v2415
    %v2612 = vunpack.c.3.s8 %v2416
    %v2613 = vunpack.c.3.s8 %v2417
    %v2614 = vunpack.c.0.s8 %v2418
    %v2615 = vunpack.c.0.s8 %v2419
    %v2616 = vunpack.c.0.s8 %v2420
    %v2617 = vunpack.c.0.s8 %v2421
    %v2618 = vunpack.c.1.s8 %v2418
    %v2619 = vunpack.c.1.s8 %v2419
    %v2620 = vunpack.c.1.s8 %v2420
    %v2621 = vunpack.c.1.s8 %v2421
    %v2622 = vunpack.c.2.s8 %v2418
    %v2623 = vunpack.c.2.s8 %v2419
    %v2624 = vunpack.c.2.s8 %v2420
    %v2625 = vunpack.c.2.s8 %v2421
    %v2626 = vunpack.c.3.s8 %v2418
    %v2627 = vunpack.c.3.s8 %v2419
    %v2628 = vunpack.c.3.s8 %v2420
    %v2629 = vunpack.c.3.s8 %v2421
    %v2630 = vunpack.c.0.s8 %v2422
    %v2631 = vunpack.c.0.s8 %v2423
    %v2632 = vunpack.c.0.s8 %v2424
    %v2633 = vunpack.c.0.s8 %v2425
    %v2634 = vunpack.c.1.s8 %v2422
    %v2635 = vunpack.c.1.s8 %v2423
    %v2636 = vunpack.c.1.s8 %v2424
    %v2637 = vunpack.c.1.s8 %v2425
    %v2638 = vunpack.c.2.s8 %v2422
    %v2639 = vunpack.c.2.s8 %v2423
    %v2640 = vunpack.c.2.s8 %v2424
    %v2641 = vunpack.c.2.s8 %v2425
    %v2642 = vunpack.c.3.s8 %v2422
    %v2643 = vunpack.c.3.s8 %v2423
    %v2644 = vunpack.c.3.s8 %v2424
    %v2645 = vunpack.c.3.s8 %v2425
    %v2646 = vunpack.c.0.s8 %v2426
    %v2647 = vunpack.c.0.s8 %v2427
    %v2648 = vunpack.c.0.s8 %v2428
    %v2649 = vunpack.c.0.s8 %v2429
    %v2650 = vunpack.c.1.s8 %v2426
    %v2651 = vunpack.c.1.s8 %v2427
    %v2652 = vunpack.c.1.s8 %v2428
    %v2653 = vunpack.c.1.s8 %v2429
    %v2654 = vunpack.c.2.s8 %v2426
    %v2655 = vunpack.c.2.s8 %v2427
    %v2656 = vunpack.c.2.s8 %v2428
    %v2657 = vunpack.c.2.s8 %v2429
    %v2658 = vunpack.c.3.s8 %v2426
    %v2659 = vunpack.c.3.s8 %v2427
    %v2660 = vunpack.c.3.s8 %v2428
    %v2661 = vunpack.c.3.s8 %v2429
    %v2662 = vunpack.c.0.s8 %v2430
    %v2663 = vunpack.c.0.s8 %v2431
    %v2664 = vunpack.c.0.s8 %v2432
    %v2665 = vunpack.c.0.s8 %v2433
    %v2666 = vunpack.c.1.s8 %v2430
    %v2667 = vunpack.c.1.s8 %v2431
    %v2668 = vunpack.c.1.s8 %v2432
    %v2669 = vunpack.c.1.s8 %v2433
    %v2670 = vunpack.c.2.s8 %v2430
    %v2671 = vunpack.c.2.s8 %v2431
    %v2672 = vunpack.c.2.s8 %v2432
    %v2673 = vunpack.c.2.s8 %v2433
    %v2674 = vunpack.c.3.s8 %v2430
    %v2675 = vunpack.c.3.s8 %v2431
    %v2676 = vunpack.c.3.s8 %v2432
    %v2677 = vunpack.c.3.s8 %v2433
    %v2678 = vunpack.c.0.s8 %v2434
    %v2679 = vunpack.c.0.s8 %v2435
    %v2680 = vunpack.c.0.s8 %v2436
    %v2681 = vunpack.c.0.s8 %v2437
    %v2682 = vunpack.c.1.s8 %v2434
    %v2683 = vunpack.c.1.s8 %v2435
    %v2684 = vunpack.c.1.s8 %v2436
    %v2685 = vunpack.c.1.s8 %v2437
    %v2686 = vunpack.c.2.s8 %v2434
    %v2687 = vunpack.c.2.s8 %v2435
    %v2688 = vunpack.c.2.s8 %v2436
    %v2689 = vunpack.c.2.s8 %v2437
    %v2690 = vunpack.c.3.s8 %v2434
    %v2691 = vunpack.c.3.s8 %v2435
    %v2692 = vunpack.c.3.s8 %v2436
    %v2693 = vunpack.c.3.s8 %v2437
    %v2694 = vcvt.s32.f32 %v2438
    %v2695 = vcvt.s32.f32 %v2439
    %v2696 = vcvt.s32.f32 %v2440
    %v2697 = vcvt.s32.f32 %v2441
    %v2698 = vcvt.s32.f32 %v2442
    %v2699 = vcvt.s32.f32 %v2443
    %v2700 = vcvt.s32.f32 %v2444
    %v2701 = vcvt.s32.f32 %v2445
    %v2702 = vcvt.s32.f32 %v2446
    %v2703 = vcvt.s32.f32 %v2447
    %v2704 = vcvt.s32.f32 %v2448
    %v2705 = vcvt.s32.f32 %v2449
    %v2706 = vcvt.s32.f32 %v2450
    %v2707 = vcvt.s32.f32 %v2451
    %v2708 = vcvt.s32.f32 %v2452
    %v2709 = vcvt.s32.f32 %v2453
    %v2710 = vcvt.s32.f32 %v2454
    %v2711 = vcvt.s32.f32 %v2455
    %v2712 = vcvt.s32.f32 %v2456
    %v2713 = vcvt.s32.f32 %v2457
    %v2714 = vcvt.s32.f32 %v2458
    %v2715 = vcvt.s32.f32 %v2459
    %v2716 = vcvt.s32.f32 %v2460
    %v2717 = vcvt.s32.f32 %v2461
    %v2718 = vcvt.s32.f32 %v2462
    %v2719 = vcvt.s32.f32 %v2463
    %v2720 = vcvt.s32.f32 %v2464
    %v2721 = vcvt.s32.f32 %v2465
    %v2722 = vcvt.s32.f32 %v2466
    %v2723 = vcvt.s32.f32 %v2467
    %v2724 = vcvt.s32.f32 %v2468
    %v2725 = vcvt.s32.f32 %v2469
    %v2726 = vcvt.s32.f32 %v2470
    %v2727 = vcvt.s32.f32 %v2471
    %v2728 = vcvt.s32.f32 %v2472
    %v2729 = vcvt.s32.f32 %v2473
    %v2730 = vcvt.s32.f32 %v2474
    %v2731 = vcvt.s32.f32 %v2475
    %v2732 = vcvt.s32.f32 %v2476
    %v2733 = vcvt.s32.f32 %v2477
    %v2734 = vcvt.s32.f32 %v2478
    %v2735 = vcvt.s32.f32 %v2479
    %v2736 = vcvt.s32.f32 %v2480
    %v2737 = vcvt.s32.f32 %v2481
    %v2738 = vcvt.s32.f32 %v2482
    %v2739 = vcvt.s32.f32 %v2483
    %v2740 = vcvt.s32.f32 %v2484
    %v2741 = vcvt.s32.f32 %v2485
    %v2742 = vcvt.s32.f32 %v2486
    %v2743 = vcvt.s32.f32 %v2487
    %v2744 = vcvt.s32.f32 %v2488
    %v2745 = vcvt.s32.f32 %v2489
    %v2746 = vcvt.s32.f32 %v2490
    %v2747 = vcvt.s32.f32 %v2491
    %v2748 = vcvt.s32.f32 %v2492
    %v2749 = vcvt.s32.f32 %v2493
    %v2750 = vcvt.s32.f32 %v2494
    %v2751 = vcvt.s32.f32 %v2495
    %v2752 = vcvt.s32.f32 %v2496
    %v2753 = vcvt.s32.f32 %v2497
    %v2754 = vcvt.s32.f32 %v2498
    %v2755 = vcvt.s32.f32 %v2499
    %v2756 = vcvt.s32.f32 %v2500
    %v2757 = vcvt.s32.f32 %v2501
    %v2758 = vcvt.s32.f32 %v2502
    %v2759 = vcvt.s32.f32 %v2503
    %v2760 = vcvt.s32.f32 %v2504
    %v2761 = vcvt.s32.f32 %v2505
    %v2762 = vcvt.s32.f32 %v2506
    %v2763 = vcvt.s32.f32 %v2507
    %v2764 = vcvt.s32.f32 %v2508
    %v2765 = vcvt.s32.f32 %v2509
    %v2766 = vcvt.s32.f32 %v2510
    %v2767 = vcvt.s32.f32 %v2511
    %v2768 = vcvt.s32.f32 %v2512
    %v2769 = vcvt.s32.f32 %v2513
    %v2770 = vcvt.s32.f32 %v2514
    %v2771 = vcvt.s32.f32 %v2515
    %v2772 = vcvt.s32.f32 %v2516
    %v2773 = vcvt.s32.f32 %v2517
    %v2774 = vcvt.s32.f32 %v2518
    %v2775 = vcvt.s32.f32 %v2519
    %v2776 = vcvt.s32.f32 %v2520
    %v2777 = vcvt.s32.f32 %v2521
    %v2778 = vcvt.s32.f32 %v2522
    %v2779 = vcvt.s32.f32 %v2523
    %v2780 = vcvt.s32.f32 %v2524
    %v2781 = vcvt.s32.f32 %v2525
    %v2782 = vcvt.s32.f32 %v2526
    %v2783 = vcvt.s32.f32 %v2527
    %v2784 = vcvt.s32.f32 %v2528
    %v2785 = vcvt.s32.f32 %v2529
    %v2786 = vcvt.s32.f32 %v2530
    %v2787 = vcvt.s32.f32 %v2531
    %v2788 = vcvt.s32.f32 %v2532
    %v2789 = vcvt.s32.f32 %v2533
    %v2790 = vcvt.s32.f32 %v2534
    %v2791 = vcvt.s32.f32 %v2535
    %v2792 = vcvt.s32.f32 %v2536
    %v2793 = vcvt.s32.f32 %v2537
    %v2794 = vcvt.s32.f32 %v2538
    %v2795 = vcvt.s32.f32 %v2539
    %v2796 = vcvt.s32.f32 %v2540
    %v2797 = vcvt.s32.f32 %v2541
    %v2798 = vcvt.s32.f32 %v2542
    %v2799 = vcvt.s32.f32 %v2543
    %v2800 = vcvt.s32.f32 %v2544
    %v2801 = vcvt.s32.f32 %v2545
    %v2802 = vcvt.s32.f32 %v2546
    %v2803 = vcvt.s32.f32 %v2547
    %v2804 = vcvt.s32.f32 %v2548
    %v2805 = vcvt.s32.f32 %v2549
    %v2806 = vcvt.s32.f32 %v2550
    %v2807 = vcvt.s32.f32 %v2551
    %v2808 = vcvt.s32.f32 %v2552
    %v2809 = vcvt.s32.f32 %v2553
    %v2810 = vcvt.s32.f32 %v2554
    %v2811 = vcvt.s32.f32 %v2555
    %v2812 = vcvt.s32.f32 %v2556
    %v2813 = vcvt.s32.f32 %v2557
    %v2814 = vcvt.s32.f32 %v2558
    %v2815 = vcvt.s32.f32 %v2559
    %v2816 = vcvt.s32.f32 %v2560
    %v2817 = vcvt.s32.f32 %v2561
    %v2818 = vcvt.s32.f32 %v2562
    %v2819 = vcvt.s32.f32 %v2563
    %v2820 = vcvt.s32.f32 %v2564
    %v2821 = vcvt.s32.f32 %v2565
    %v2822 = vcvt.s32.f32 %v2566
    %v2823 = vcvt.s32.f32 %v2567
    %v2824 = vcvt.s32.f32 %v2568
    %v2825 = vcvt.s32.f32 %v2569
    %v2826 = vcvt.s32.f32 %v2570
    %v2827 = vcvt.s32.f32 %v2571
    %v2828 = vcvt.s32.f32 %v2572
    %v2829 = vcvt.s32.f32 %v2573
    %v2830 = vcvt.s32.f32 %v2574
    %v2831 = vcvt.s32.f32 %v2575
    %v2832 = vcvt.s32.f32 %v2576
    %v2833 = vcvt.s32.f32 %v2577
    %v2834 = vcvt.s32.f32 %v2578
    %v2835 = vcvt.s32.f32 %v2579
    %v2836 = vcvt.s32.f32 %v2580
    %v2837 = vcvt.s32.f32 %v2581
    %v2838 = vcvt.s32.f32 %v2582
    %v2839 = vcvt.s32.f32 %v2583
    %v2840 = vcvt.s32.f32 %v2584
    %v2841 = vcvt.s32.f32 %v2585
    %v2842 = vcvt.s32.f32 %v2586
    %v2843 = vcvt.s32.f32 %v2587
    %v2844 = vcvt.s32.f32 %v2588
    %v2845 = vcvt.s32.f32 %v2589
    %v2846 = vcvt.s32.f32 %v2590
    %v2847 = vcvt.s32.f32 %v2591
    %v2848 = vcvt.s32.f32 %v2592
    %v2849 = vcvt.s32.f32 %v2593
    %v2850 = vcvt.s32.f32 %v2594
    %v2851 = vcvt.s32.f32 %v2595
    %v2852 = vcvt.s32.f32 %v2596
    %v2853 = vcvt.s32.f32 %v2597
    %v2854 = vcvt.s32.f32 %v2598
    %v2855 = vcvt.s32.f32 %v2599
    %v2856 = vcvt.s32.f32 %v2600
    %v2857 = vcvt.s32.f32 %v2601
    %v2858 = vcvt.s32.f32 %v2602
    %v2859 = vcvt.s32.f32 %v2603
    %v2860 = vcvt.s32.f32 %v2604
    %v2861 = vcvt.s32.f32 %v2605
    %v2862 = vcvt.s32.f32 %v2606
    %v2863 = vcvt.s32.f32 %v2607
    %v2864 = vcvt.s32.f32 %v2608
    %v2865 = vcvt.s32.f32 %v2609
    %v2866 = vcvt.s32.f32 %v2610
    %v2867 = vcvt.s32.f32 %v2611
    %v2868 = vcvt.s32.f32 %v2612
    %v2869 = vcvt.s32.f32 %v2613
    %v2870 = vcvt.s32.f32 %v2614
    %v2871 = vcvt.s32.f32 %v2615
    %v2872 = vcvt.s32.f32 %v2616
    %v2873 = vcvt.s32.f32 %v2617
    %v2874 = vcvt.s32.f32 %v2618
    %v2875 = vcvt.s32.f32 %v2619
    %v2876 = vcvt.s32.f32 %v2620
    %v2877 = vcvt.s32.f32 %v2621
    %v2878 = vcvt.s32.f32 %v2622
    %v2879 = vcvt.s32.f32 %v2623
    %v2880 = vcvt.s32.f32 %v2624
    %v2881 = vcvt.s32.f32 %v2625
    %v2882 = vcvt.s32.f32 %v2626
    %v2883 = vcvt.s32.f32 %v2627
    %v2884 = vcvt.s32.f32 %v2628
    %v2885 = vcvt.s32.f32 %v2629
    %v2886 = vcvt.s32.f32 %v2630
    %v2887 = vcvt.s32.f32 %v2631
    %v2888 = vcvt.s32.f32 %v2632
    %v2889 = vcvt.s32.f32 %v2633
    %v2890 = vcvt.s32.f32 %v2634
    %v2891 = vcvt.s32.f32 %v2635
    %v2892 = vcvt.s32.f32 %v2636
    %v2893 = vcvt.s32.f32 %v2637
    %v2894 = vcvt.s32.f32 %v2638
    %v2895 = vcvt.s32.f32 %v2639
    %v2896 = vcvt.s32.f32 %v2640
    %v2897 = vcvt.s32.f32 %v2641
    %v2898 = vcvt.s32.f32 %v2642
    %v2899 = vcvt.s32.f32 %v2643
    %v2900 = vcvt.s32.f32 %v2644
    %v2901 = vcvt.s32.f32 %v2645
    %v2902 = vcvt.s32.f32 %v2646
    %v2903 = vcvt.s32.f32 %v2647
    %v2904 = vcvt.s32.f32 %v2648
    %v2905 = vcvt.s32.f32 %v2649
    %v2906 = vcvt.s32.f32 %v2650
    %v2907 = vcvt.s32.f32 %v2651
    %v2908 = vcvt.s32.f32 %v2652
    %v2909 = vcvt.s32.f32 %v2653
    %v2910 = vcvt.s32.f32 %v2654
    %v2911 = vcvt.s32.f32 %v2655
    %v2912 = vcvt.s32.f32 %v2656
    %v2913 = vcvt.s32.f32 %v2657
    %v2914 = vcvt.s32.f32 %v2658
    %v2915 = vcvt.s32.f32 %v2659
    %v2916 = vcvt.s32.f32 %v2660
    %v2917 = vcvt.s32.f32 %v2661
    %v2918 = vcvt.s32.f32 %v2662
    %v2919 = vcvt.s32.f32 %v2663
    %v2920 = vcvt.s32.f32 %v2664
    %v2921 = vcvt.s32.f32 %v2665
    %v2922 = vcvt.s32.f32 %v2666
    %v2923 = vcvt.s32.f32 %v2667
    %v2924 = vcvt.s32.f32 %v2668
    %v2925 = vcvt.s32.f32 %v2669
    %v2926 = vcvt.s32.f32 %v2670
    %v2927 = vcvt.s32.f32 %v2671
    %v2928 = vcvt.s32.f32 %v2672
    %v2929 = vcvt.s32.f32 %v2673
    %v2930 = vcvt.s32.f32 %v2674
    %v2931 = vcvt.s32.f32 %v2675
    %v2932 = vcvt.s32.f32 %v2676
    %v2933 = vcvt.s32.f32 %v2677
    %v2934 = vcvt.s32.f32 %v2678
    %v2935 = vcvt.s32.f32 %v2679
    %v2936 = vcvt.s32.f32 %v2680
    %v2937 = vcvt.s32.f32 %v2681
    %v2938 = vcvt.s32.f32 %v2682
    %v2939 = vcvt.s32.f32 %v2683
    %v2940 = vcvt.s32.f32 %v2684
    %v2941 = vcvt.s32.f32 %v2685
    %v2942 = vcvt.s32.f32 %v2686
    %v2943 = vcvt.s32.f32 %v2687
    %v2944 = vcvt.s32.f32 %v2688
    %v2945 = vcvt.s32.f32 %v2689
    %v2946 = vcvt.s32.f32 %v2690
    %v2947 = vcvt.s32.f32 %v2691
    %v2948 = vcvt.s32.f32 %v2692
    %v2949 = vcvt.s32.f32 %v2693
    %v2950 = vpack.c.bf16 %v2698, %v2694
    %v2951 = vpack.c.bf16 %v2699, %v2695
    %v2952 = vpack.c.bf16 %v2700, %v2696
    %v2953 = vpack.c.bf16 %v2701, %v2697
    %v2954 = vpack.c.bf16 %v2706, %v2702
    %v2955 = vpack.c.bf16 %v2707, %v2703
    %v2956 = vpack.c.bf16 %v2708, %v2704
    %v2957 = vpack.c.bf16 %v2709, %v2705
    %v2958 = vpack.c.bf16 %v2714, %v2710
    %v2959 = vpack.c.bf16 %v2715, %v2711
    %v2960 = vpack.c.bf16 %v2716, %v2712
    %v2961 = vpack.c.bf16 %v2717, %v2713
    %v2962 = vpack.c.bf16 %v2722, %v2718
    %v2963 = vpack.c.bf16 %v2723, %v2719
    %v2964 = vpack.c.bf16 %v2724, %v2720
    %v2965 = vpack.c.bf16 %v2725, %v2721
    %v2966 = vpack.c.bf16 %v2730, %v2726
    %v2967 = vpack.c.bf16 %v2731, %v2727
    %v2968 = vpack.c.bf16 %v2732, %v2728
    %v2969 = vpack.c.bf16 %v2733, %v2729
    %v2970 = vpack.c.bf16 %v2738, %v2734
    %v2971 = vpack.c.bf16 %v2739, %v2735
    %v2972 = vpack.c.bf16 %v2740, %v2736
    %v2973 = vpack.c.bf16 %v2741, %v2737
    %v2974 = vpack.c.bf16 %v2746, %v2742
    %v2975 = vpack.c.bf16 %v2747, %v2743
    %v2976 = vpack.c.bf16 %v2748, %v2744
    %v2977 = vpack.c.bf16 %v2749, %v2745
    %v2978 = vpack.c.bf16 %v2754, %v2750
    %v2979 = vpack.c.bf16 %v2755, %v2751
    %v2980 = vpack.c.bf16 %v2756, %v2752
    %v2981 = vpack.c.bf16 %v2757, %v2753
    %v2982 = vpack.c.bf16 %v2762, %v2758
    %v2983 = vpack.c.bf16 %v2763, %v2759
    %v2984 = vpack.c.bf16 %v2764, %v2760
    %v2985 = vpack.c.bf16 %v2765, %v2761
    %v2986 = vpack.c.bf16 %v2770, %v2766
    %v2987 = vpack.c.bf16 %v2771, %v2767
    %v2988 = vpack.c.bf16 %v2772, %v2768
    %v2989 = vpack.c.bf16 %v2773, %v2769
    %v2990 = vpack.c.bf16 %v2778, %v2774
    %v2991 = vpack.c.bf16 %v2779, %v2775
    %v2992 = vpack.c.bf16 %v2780, %v2776
    %v2993 = vpack.c.bf16 %v2781, %v2777
    %v2994 = vpack.c.bf16 %v2786, %v2782
    %v2995 = vpack.c.bf16 %v2787, %v2783
    %v2996 = vpack.c.bf16 %v2788, %v2784
    %v2997 = vpack.c.bf16 %v2789, %v2785
    %v2998 = vpack.c.bf16 %v2794, %v2790
    %v2999 = vpack.c.bf16 %v2795, %v2791
    %v3000 = vpack.c.bf16 %v2796, %v2792
    %v3001 = vpack.c.bf16 %v2797, %v2793
    %v3002 = vpack.c.bf16 %v2802, %v2798
    %v3003 = vpack.c.bf16 %v2803, %v2799
    %v3004 = vpack.c.bf16 %v2804, %v2800
    %v3005 = vpack.c.bf16 %v2805, %v2801
    %v3006 = vpack.c.bf16 %v2810, %v2806
    %v3007 = vpack.c.bf16 %v2811, %v2807
    %v3008 = vpack.c.bf16 %v2812, %v2808
    %v3009 = vpack.c.bf16 %v2813, %v2809
    %v3010 = vpack.c.bf16 %v2818, %v2814
    %v3011 = vpack.c.bf16 %v2819, %v2815
    %v3012 = vpack.c.bf16 %v2820, %v2816
    %v3013 = vpack.c.bf16 %v2821, %v2817
    %v3014 = vpack.c.bf16 %v2826, %v2822
    %v3015 = vpack.c.bf16 %v2827, %v2823
    %v3016 = vpack.c.bf16 %v2828, %v2824
    %v3017 = vpack.c.bf16 %v2829, %v2825
    %v3018 = vpack.c.bf16 %v2834, %v2830
    %v3019 = vpack.c.bf16 %v2835, %v2831
    %v3020 = vpack.c.bf16 %v2836, %v2832
    %v3021 = vpack.c.bf16 %v2837, %v2833
    %v3022 = vpack.c.bf16 %v2842, %v2838
    %v3023 = vpack.c.bf16 %v2843, %v2839
    %v3024 = vpack.c.bf16 %v2844, %v2840
    %v3025 = vpack.c.bf16 %v2845, %v2841
    %v3026 = vpack.c.bf16 %v2850, %v2846
    %v3027 = vpack.c.bf16 %v2851, %v2847
    %v3028 = vpack.c.bf16 %v2852, %v2848
    %v3029 = vpack.c.bf16 %v2853, %v2849
    %v3030 = vpack.c.bf16 %v2858, %v2854
    %v3031 = vpack.c.bf16 %v2859, %v2855
    %v3032 = vpack.c.bf16 %v2860, %v2856
    %v3033 = vpack.c.bf16 %v2861, %v2857
    %v3034 = vpack.c.bf16 %v2866, %v2862
    %v3035 = vpack.c.bf16 %v2867, %v2863
    %v3036 = vpack.c.bf16 %v2868, %v2864
    %v3037 = vpack.c.bf16 %v2869, %v2865
    %v3038 = vpack.c.bf16 %v2874, %v2870
    %v3039 = vpack.c.bf16 %v2875, %v2871
    %v3040 = vpack.c.bf16 %v2876, %v2872
    %v3041 = vpack.c.bf16 %v2877, %v2873
    %v3042 = vpack.c.bf16 %v2882, %v2878
    %v3043 = vpack.c.bf16 %v2883, %v2879
    %v3044 = vpack.c.bf16 %v2884, %v2880
    %v3045 = vpack.c.bf16 %v2885, %v2881
    %v3046 = vpack.c.bf16 %v2890, %v2886
    %v3047 = vpack.c.bf16 %v2891, %v2887
    %v3048 = vpack.c.bf16 %v2892, %v2888
    %v3049 = vpack.c.bf16 %v2893, %v2889
    %v3050 = vpack.c.bf16 %v2898, %v2894
    %v3051 = vpack.c.bf16 %v2899, %v2895
    %v3052 = vpack.c.bf16 %v2900, %v2896
    %v3053 = vpack.c.bf16 %v2901, %v2897
    %v3054 = vpack.c.bf16 %v2906, %v2902
    %v3055 = vpack.c.bf16 %v2907, %v2903
    %v3056 = vpack.c.bf16 %v2908, %v2904
    %v3057 = vpack.c.bf16 %v2909, %v2905
    %v3058 = vpack.c.bf16 %v2914, %v2910
    %v3059 = vpack.c.bf16 %v2915, %v2911
    %v3060 = vpack.c.bf16 %v2916, %v2912
    %v3061 = vpack.c.bf16 %v2917, %v2913
    %v3062 = vpack.c.bf16 %v2922, %v2918
    %v3063 = vpack.c.bf16 %v2923, %v2919
    %v3064 = vpack.c.bf16 %v2924, %v2920
    %v3065 = vpack.c.bf16 %v2925, %v2921
    %v3066 = vpack.c.bf16 %v2930, %v2926
    %v3067 = vpack.c.bf16 %v2931, %v2927
    %v3068 = vpack.c.bf16 %v2932, %v2928
    %v3069 = vpack.c.bf16 %v2933, %v2929
    %v3070 = vpack.c.bf16 %v2938, %v2934
    %v3071 = vpack.c.bf16 %v2939, %v2935
    %v3072 = vpack.c.bf16 %v2940, %v2936
    %v3073 = vpack.c.bf16 %v2941, %v2937
    %v3074 = vpack.c.bf16 %v2946, %v2942
    %v3075 = vpack.c.bf16 %v2947, %v2943
    %v3076 = vpack.c.bf16 %v2948, %v2944
    %v3077 = vpack.c.bf16 %v2949, %v2945
    %3078 = vmatpush.bf16.msra.mxu0 %v2978
    %3079 = vmatpush.bf16.msra.mxu0 %v2974
    %3080 = vmatpush.bf16.msra.mxu0 %v2970
    %3081 = vmatpush.bf16.msra.mxu0 %v2966
    %3082 = vmatpush.bf16.msra.mxu0 %v2962
    %3083 = vmatpush.bf16.msra.mxu0 %v2958
    %3084 = vmatpush.bf16.msra.mxu0 %v2954
    %3085 = vmatpush.bf16.msra.mxu0 %v2950
    %3086 = vmatmul.bf16.gmra.mxu0 %v2370
    %v3087 = vpop.f32.mrf.mxu0
    %v3088 = vadd.f32 0.0, %v3087
    %v3089 = vpop.f32.mrf.mxu0
    %v3090 = vadd.f32 0.0, %v3089
    %3091 = vdwg.mxu0
    %3092 = vmatpush.bf16.msra.mxu0 %v3010
    %3093 = vmatpush.bf16.msra.mxu0 %v3006
    %3094 = vmatpush.bf16.msra.mxu0 %v3002
    %3095 = vmatpush.bf16.msra.mxu0 %v2998
    %3096 = vmatpush.bf16.msra.mxu0 %v2994
    %3097 = vmatpush.bf16.msra.mxu0 %v2990
    %3098 = vmatpush.bf16.msra.mxu0 %v2986
    %3099 = vmatpush.bf16.msra.mxu0 %v2982
    %3100 = vmatmul.bf16.gmra.mxu0 %v2371
    %v3101 = vpop.f32.mrf.mxu0
    %v3102 = vadd.f32 %v3088, %v3101
    %v3103 = vpop.f32.mrf.mxu0
    %v3104 = vadd.f32 %v3090, %v3103
    %3105 = vdwg.mxu0
    %3106 = vmatpush.bf16.msra.mxu0 %v3042
    %3107 = vmatpush.bf16.msra.mxu0 %v3038
    %3108 = vmatpush.bf16.msra.mxu0 %v3034
    %3109 = vmatpush.bf16.msra.mxu0 %v3030
    %3110 = vmatpush.bf16.msra.mxu0 %v3026
    %3111 = vmatpush.bf16.msra.mxu0 %v3022
    %3112 = vmatpush.bf16.msra.mxu0 %v3018
    %3113 = vmatpush.bf16.msra.mxu0 %v3014
    %3114 = vmatmul.bf16.gmra.mxu0 %v2372
    %v3115 = vpop.f32.mrf.mxu0
    %v3116 = vadd.f32 %v3102, %v3115
    %v3117 = vpop.f32.mrf.mxu0
    %v3118 = vadd.f32 %v3104, %v3117
    %3119 = vdwg.mxu0
    %3120 = vmatpush.bf16.msra.mxu0 %v3074
    %3121 = vmatpush.bf16.msra.mxu0 %v3070
    %3122 = vmatpush.bf16.msra.mxu0 %v3066
    %3123 = vmatpush.bf16.msra.mxu0 %v3062
    %3124 = vmatpush.bf16.msra.mxu0 %v3058
    %3125 = vmatpush.bf16.msra.mxu0 %v3054
    %3126 = vmatpush.bf16.msra.mxu0 %v3050
    %3127 = vmatpush.bf16.msra.mxu0 %v3046
    %3128 = vmatmul.bf16.gmra.mxu0 %v2373
    %v3129 = vpop.f32.mrf.mxu0
    %v3130 = vadd.f32 %v3116, %v3129
    %v3131 = vpop.f32.mrf.mxu0
    %v3132 = vadd.f32 %v3118, %v3131
    %3133 = vdwg.mxu0
    %3134 = vmatpush.bf16.msra.mxu0 %v2979
    %3135 = vmatpush.bf16.msra.mxu0 %v2975
    %3136 = vmatpush.bf16.msra.mxu0 %v2971
    %3137 = vmatpush.bf16.msra.mxu0 %v2967
    %3138 = vmatpush.bf16.msra.mxu0 %v2963
    %3139 = vmatpush.bf16.msra.mxu0 %v2959
    %3140 = vmatpush.bf16.msra.mxu0 %v2955
    %3141 = vmatpush.bf16.msra.mxu0 %v2951
    %3142 = vmatmul.bf16.gmra.mxu0 %v2370
    %v3143 = vpop.f32.mrf.mxu0
    %v3144 = vadd.f32 0.0, %v3143
    %v3145 = vpop.f32.mrf.mxu0
    %v3146 = vadd.f32 0.0, %v3145
    %3147 = vdwg.mxu0
    %3148 = vmatpush.bf16.msra.mxu0 %v3011
    %3149 = vmatpush.bf16.msra.mxu0 %v3007
    %3150 = vmatpush.bf16.msra.mxu0 %v3003
    %3151 = vmatpush.bf16.msra.mxu0 %v2999
    %3152 = vmatpush.bf16.msra.mxu0 %v2995
    %3153 = vmatpush.bf16.msra.mxu0 %v2991
    %3154 = vmatpush.bf16.msra.mxu0 %v2987
    %3155 = vmatpush.bf16.msra.mxu0 %v2983
    %3156 = vmatmul.bf16.gmra.mxu0 %v2371
    %v3157 = vpop.f32.mrf.mxu0
    %v3158 = vadd.f32 %v3144, %v3157
    %v3159 = vpop.f32.mrf.mxu0
    %v3160 = vadd.f32 %v3146, %v3159
    %3161 = vdwg.mxu0
    %3162 = vmatpush.bf16.msra.mxu0 %v3043
    %3163 = vmatpush.bf16.msra.mxu0 %v3039
    %3164 = vmatpush.bf16.msra.mxu0 %v3035
    %3165 = vmatpush.bf16.msra.mxu0 %v3031
    %3166 = vmatpush.bf16.msra.mxu0 %v3027
    %3167 = vmatpush.bf16.msra.mxu0 %v3023
    %3168 = vmatpush.bf16.msra.mxu0 %v3019
    %3169 = vmatpush.bf16.msra.mxu0 %v3015
    %3170 = vmatmul.bf16.gmra.mxu0 %v2372
    %v3171 = vpop.f32.mrf.mxu0
    %v3172 = vadd.f32 %v3158, %v3171
    %v3173 = vpop.f32.mrf.mxu0
    %v3174 = vadd.f32 %v3160, %v3173
    %3175 = vdwg.mxu0
    %3176 = vmatpush.bf16.msra.mxu0 %v3075
    %3177 = vmatpush.bf16.msra.mxu0 %v3071
    %3178 = vmatpush.bf16.msra.mxu0 %v3067
    %3179 = vmatpush.bf16.msra.mxu0 %v3063
    %3180 = vmatpush.bf16.msra.mxu0 %v3059
    %3181 = vmatpush.bf16.msra.mxu0 %v3055
    %3182 = vmatpush.bf16.msra.mxu0 %v3051
    %3183 = vmatpush.bf16.msra.mxu0 %v3047
    %3184 = vmatmul.bf16.gmra.mxu0 %v2373
    %v3185 = vpop.f32.mrf.mxu0
    %v3186 = vadd.f32 %v3172, %v3185
    %v3187 = vpop.f32.mrf.mxu0
    %v3188 = vadd.f32 %v3174, %v3187
    %3189 = vdwg.mxu0
    %3190 = vmatpush.bf16.msra.mxu0 %v2980
    %3191 = vmatpush.bf16.msra.mxu0 %v2976
    %3192 = vmatpush.bf16.msra.mxu0 %v2972
    %3193 = vmatpush.bf16.msra.mxu0 %v2968
    %3194 = vmatpush.bf16.msra.mxu0 %v2964
    %3195 = vmatpush.bf16.msra.mxu0 %v2960
    %3196 = vmatpush.bf16.msra.mxu0 %v2956
    %3197 = vmatpush.bf16.msra.mxu0 %v2952
    %3198 = vmatmul.bf16.gmra.mxu0 %v2370
    %v3199 = vpop.f32.mrf.mxu0
    %v3200 = vadd.f32 0.0, %v3199
    %v3201 = vpop.f32.mrf.mxu0
    %v3202 = vadd.f32 0.0, %v3201
    %3203 = vdwg.mxu0
    %3204 = vmatpush.bf16.msra.mxu0 %v3012
    %3205 = vmatpush.bf16.msra.mxu0 %v3008
    %3206 = vmatpush.bf16.msra.mxu0 %v3004
    %3207 = vmatpush.bf16.msra.mxu0 %v3000
    %3208 = vmatpush.bf16.msra.mxu0 %v2996
    %3209 = vmatpush.bf16.msra.mxu0 %v2992
    %3210 = vmatpush.bf16.msra.mxu0 %v2988
    %3211 = vmatpush.bf16.msra.mxu0 %v2984
    %3212 = vmatmul.bf16.gmra.mxu0 %v2371
    %v3213 = vpop.f32.mrf.mxu0
    %v3214 = vadd.f32 %v3200, %v3213
    %v3215 = vpop.f32.mrf.mxu0
    %v3216 = vadd.f32 %v3202, %v3215
    %3217 = vdwg.mxu0
    %3218 = vmatpush.bf16.msra.mxu0 %v3044
    %3219 = vmatpush.bf16.msra.mxu0 %v3040
    %3220 = vmatpush.bf16.msra.mxu0 %v3036
    %3221 = vmatpush.bf16.msra.mxu0 %v3032
    %3222 = vmatpush.bf16.msra.mxu0 %v3028
    %3223 = vmatpush.bf16.msra.mxu0 %v3024
    %3224 = vmatpush.bf16.msra.mxu0 %v3020
    %3225 = vmatpush.bf16.msra.mxu0 %v3016
    %3226 = vmatmul.bf16.gmra.mxu0 %v2372
    %v3227 = vpop.f32.mrf.mxu0
    %v3228 = vadd.f32 %v3214, %v3227
    %v3229 = vpop.f32.mrf.mxu0
    %v3230 = vadd.f32 %v3216, %v3229
    %3231 = vdwg.mxu0
    %3232 = vmatpush.bf16.msra.mxu0 %v3076
    %3233 = vmatpush.bf16.msra.mxu0 %v3072
    %3234 = vmatpush.bf16.msra.mxu0 %v3068
    %3235 = vmatpush.bf16.msra.mxu0 %v3064
    %3236 = vmatpush.bf16.msra.mxu0 %v3060
    %3237 = vmatpush.bf16.msra.mxu0 %v3056
    %3238 = vmatpush.bf16.msra.mxu0 %v3052
    %3239 = vmatpush.bf16.msra.mxu0 %v3048
    %3240 = vmatmul.bf16.gmra.mxu0 %v2373
    %v3241 = vpop.f32.mrf.mxu0
    %v3242 = vadd.f32 %v3228, %v3241
    %v3243 = vpop.f32.mrf.mxu0
    %v3244 = vadd.f32 %v3230, %v3243
    %3245 = vdwg.mxu0
    %3246 = vmatpush.bf16.msra.mxu0 %v2981
    %3247 = vmatpush.bf16.msra.mxu0 %v2977
    %3248 = vmatpush.bf16.msra.mxu0 %v2973
    %3249 = vmatpush.bf16.msra.mxu0 %v2969
    %3250 = vmatpush.bf16.msra.mxu0 %v2965
    %3251 = vmatpush.bf16.msra.mxu0 %v2961
    %3252 = vmatpush.bf16.msra.mxu0 %v2957
    %3253 = vmatpush.bf16.msra.mxu0 %v2953
    %3254 = vmatmul.bf16.gmra.mxu0 %v2370
    %v3255 = vpop.f32.mrf.mxu0
    %v3256 = vadd.f32 0.0, %v3255
    %v3257 = vpop.f32.mrf.mxu0
    %v3258 = vadd.f32 0.0, %v3257
    %3259 = vdwg.mxu0
    %3260 = vmatpush.bf16.msra.mxu0 %v3013
    %3261 = vmatpush.bf16.msra.mxu0 %v3009
    %3262 = vmatpush.bf16.msra.mxu0 %v3005
    %3263 = vmatpush.bf16.msra.mxu0 %v3001
    %3264 = vmatpush.bf16.msra.mxu0 %v2997
    %3265 = vmatpush.bf16.msra.mxu0 %v2993
    %3266 = vmatpush.bf16.msra.mxu0 %v2989
    %3267 = vmatpush.bf16.msra.mxu0 %v2985
    %3268 = vmatmul.bf16.gmra.mxu0 %v2371
    %v3269 = vpop.f32.mrf.mxu0
    %v3270 = vadd.f32 %v3256, %v3269
    %v3271 = vpop.f32.mrf.mxu0
    %v3272 = vadd.f32 %v3258, %v3271
    %3273 = vdwg.mxu0
    %3274 = vmatpush.bf16.msra.mxu0 %v3045
    %3275 = vmatpush.bf16.msra.mxu0 %v3041
    %3276 = vmatpush.bf16.msra.mxu0 %v3037
    %3277 = vmatpush.bf16.msra.mxu0 %v3033
    %3278 = vmatpush.bf16.msra.mxu0 %v3029
    %3279 = vmatpush.bf16.msra.mxu0 %v3025
    %3280 = vmatpush.bf16.msra.mxu0 %v3021
    %3281 = vmatpush.bf16.msra.mxu0 %v3017
    %3282 = vmatmul.bf16.gmra.mxu0 %v2372
    %v3283 = vpop.f32.mrf.mxu0
    %v3284 = vadd.f32 %v3270, %v3283
    %v3285 = vpop.f32.mrf.mxu0
    %v3286 = vadd.f32 %v3272, %v3285
    %3287 = vdwg.mxu0
    %3288 = vmatpush.bf16.msra.mxu0 %v3077
    %3289 = vmatpush.bf16.msra.mxu0 %v3073
    %3290 = vmatpush.bf16.msra.mxu0 %v3069
    %3291 = vmatpush.bf16.msra.mxu0 %v3065
    %3292 = vmatpush.bf16.msra.mxu0 %v3061
    %3293 = vmatpush.bf16.msra.mxu0 %v3057
    %3294 = vmatpush.bf16.msra.mxu0 %v3053
    %3295 = vmatpush.bf16.msra.mxu0 %v3049
    %3296 = vmatmul.bf16.gmra.mxu0 %v2373
    %v3297 = vpop.f32.mrf.mxu0
    %v3298 = vadd.f32 %v3284, %v3297
    %v3299 = vpop.f32.mrf.mxu0
    %v3300 = vadd.f32 %v3286, %v3299
    %3301 = vdwg.mxu0
    %v3302 = vld [vmem:[%s8] sm:$0xf]
    %v3304 = vperm.slane %v3302, 0
    %v3305 = vperm.slane %v3302, 1
    %v3306 = vperm.slane %v3302, 2
    %v3307 = vperm.slane %v3302, 3
    %v3312 = vmul.f32 %v3130, %v3304
    %v3313 = vmul.f32 %v3186, %v3305
    %v3314 = vmul.f32 %v3242, %v3306
    %v3315 = vmul.f32 %v3298, %v3307
    %v3316 = vmul.f32 %v3132, %v3304
    %v3317 = vmul.f32 %v3188, %v3305
    %v3318 = vmul.f32 %v3244, %v3306
    %v3319 = vmul.f32 %v3300, %v3307
    %v3320 = vld [vmem:[#allocation9] sm:$0xf]
    %v3322 = vperm.slane %v3320, 0
    %v3323 = vperm.slane %v3320, 1
    %v3324 = vperm.slane %v3320, 2
    %v3325 = vperm.slane %v3320, 3
    %v3330 = vadd.f32 %v3312, %v3322
    %v3331 = vadd.f32 %v3313, %v3323
    %v3332 = vadd.f32 %v3314, %v3324
    %v3333 = vadd.f32 %v3315, %v3325
    %v3334 = vadd.f32 %v3316, %v3322
    %v3335 = vadd.f32 %v3317, %v3323
    %v3336 = vadd.f32 %v3318, %v3324
    %v3337 = vadd.f32 %v3319, %v3325
    %v3338 = vmax.f32 %v3330, 0.0
    %v3339 = vmax.f32 %v3331, 0.0
    %v3340 = vmax.f32 %v3332, 0.0
    %v3341 = vmax.f32 %v3333, 0.0
    %v3342 = vmax.f32 %v3334, 0.0
    %v3343 = vmax.f32 %v3335, 0.0
    %v3344 = vmax.f32 %v3336, 0.0
    %v3345 = vmax.f32 %v3337, 0.0
    %v3346 = vpack.c.bf16 %v3342, %v3338
    %v3347 = vpack.c.bf16 %v3343, %v3339
    %v3348 = vpack.c.bf16 %v3344, %v3340
    %v3349 = vpack.c.bf16 %v3345, %v3341
    %v3350 = vld [vmem:[#allocation10] sm:$0xff]
    %v3351 = vld [vmem:[#allocation10 + $0x8] sm:$0xff]
    %v3352 = vld [vmem:[#allocation10 + $0x10] sm:$0xff]
    %v3353 = vld [vmem:[#allocation10 + $0x18] sm:$0xff]
    %v3354 = vld [vmem:[#allocation10 + $0x20] sm:$0xff]
    %v3355 = vld [vmem:[#allocation10 + $0x28] sm:$0xff]
    %v3356 = vld [vmem:[#allocation10 + $0x30] sm:$0xff]
    %v3357 = vld [vmem:[#allocation10 + $0x38] sm:$0xff]
    %v3358 = vld [vmem:[#allocation10 + $0x40] sm:$0xff]
    %v3359 = vld [vmem:[#allocation10 + $0x48] sm:$0xff]
    %v3360 = vld [vmem:[#allocation10 + $0x50] sm:$0xff]
    %v3361 = vld [vmem:[#allocation10 + $0x58] sm:$0xff]
    %v3362 = vld [vmem:[#allocation10 + $0x60] sm:$0xff]
    %v3363 = vld [vmem:[#allocation10 + $0x68] sm:$0xff]
    %v3364 = vld [vmem:[#allocation10 + $0x70] sm:$0xff]
    %v3365 = vld [vmem:[#allocation10 + $0x78] sm:$0xff]
    %v3366 = vld [vmem:[#allocation10 + $0x80] sm:$0xff]
    %v3367 = vld [vmem:[#allocation10 + $0x88] sm:$0xff]
    %v3368 = vld [vmem:[#allocation10 + $0x90] sm:$0xff]
    %v3369 = vld [vmem:[#allocation10 + $0x98] sm:$0xff]
    %v3370 = vld [vmem:[#allocation10 + $0xa0] sm:$0xff]
    %v3371 = vld [vmem:[#allocation10 + $0xa8] sm:$0xff]
    %v3372 = vld [vmem:[#allocation10 + $0xb0] sm:$0xff]
    %v3373 = vld [vmem:[#allocation10 + $0xb8] sm:$0xff]
    %v3374 = vld [vmem:[#allocation10 + $0xc0] sm:$0xff]
    %v3375 = vld [vmem:[#allocation10 + $0xc8] sm:$0xff]
    %v3376 = vld [vmem:[#allocation10 + $0xd0] sm:$0xff]
    %v3377 = vld [vmem:[#allocation10 + $0xd8] sm:$0xff]
    %v3378 = vld [vmem:[#allocation10 + $0xe0] sm:$0xff]
    %v3379 = vld [vmem:[#allocation10 + $0xe8] sm:$0xff]
    %v3380 = vld [vmem:[#allocation10 + $0xf0] sm:$0xff]
    %v3381 = vld [vmem:[#allocation10 + $0xf8] sm:$0xff]
    %v3382 = vld [vmem:[#allocation10 + $0x100] sm:$0xff]
    %v3383 = vld [vmem:[#allocation10 + $0x108] sm:$0xff]
    %v3384 = vld [vmem:[#allocation10 + $0x110] sm:$0xff]
    %v3385 = vld [vmem:[#allocation10 + $0x118] sm:$0xff]
    %v3386 = vld [vmem:[#allocation10 + $0x120] sm:$0xff]
    %v3387 = vld [vmem:[#allocation10 + $0x128] sm:$0xff]
    %v3388 = vld [vmem:[#allocation10 + $0x130] sm:$0xff]
    %v3389 = vld [vmem:[#allocation10 + $0x138] sm:$0xff]
    %v3390 = vld [vmem:[#allocation10 + $0x140] sm:$0xff]
    %v3391 = vld [vmem:[#allocation10 + $0x148] sm:$0xff]
    %v3392 = vld [vmem:[#allocation10 + $0x150] sm:$0xff]
    %v3393 = vld [vmem:[#allocation10 + $0x158] sm:$0xff]
    %v3394 = vld [vmem:[#allocation10 + $0x160] sm:$0xff]
    %v3395 = vld [vmem:[#allocation10 + $0x168] sm:$0xff]
    %v3396 = vld [vmem:[#allocation10 + $0x170] sm:$0xff]
    %v3397 = vld [vmem:[#allocation10 + $0x178] sm:$0xff]
    %v3398 = vld [vmem:[#allocation10 + $0x180] sm:$0xff]
    %v3399 = vld [vmem:[#allocation10 + $0x188] sm:$0xff]
    %v3400 = vld [vmem:[#allocation10 + $0x190] sm:$0xff]
    %v3401 = vld [vmem:[#allocation10 + $0x198] sm:$0xff]
    %v3402 = vld [vmem:[#allocation10 + $0x1a0] sm:$0xff]
    %v3403 = vld [vmem:[#allocation10 + $0x1a8] sm:$0xff]
    %v3404 = vld [vmem:[#allocation10 + $0x1b0] sm:$0xff]
    %v3405 = vld [vmem:[#allocation10 + $0x1b8] sm:$0xff]
    %v3406 = vld [vmem:[#allocation10 + $0x1c0] sm:$0xff]
    %v3407 = vld [vmem:[#allocation10 + $0x1c8] sm:$0xff]
    %v3408 = vld [vmem:[#allocation10 + $0x1d0] sm:$0xff]
    %v3409 = vld [vmem:[#allocation10 + $0x1d8] sm:$0xff]
    %v3410 = vld [vmem:[#allocation10 + $0x1e0] sm:$0xff]
    %v3411 = vld [vmem:[#allocation10 + $0x1e8] sm:$0xff]
    %v3412 = vld [vmem:[#allocation10 + $0x1f0] sm:$0xff]
    %v3413 = vld [vmem:[#allocation10 + $0x1f8] sm:$0xff]
    %v3414 = vunpack.c.0.s8 %v3350
    %v3415 = vunpack.c.0.s8 %v3351
    %v3416 = vunpack.c.0.s8 %v3352
    %v3417 = vunpack.c.0.s8 %v3353
    %v3418 = vunpack.c.1.s8 %v3350
    %v3419 = vunpack.c.1.s8 %v3351
    %v3420 = vunpack.c.1.s8 %v3352
    %v3421 = vunpack.c.1.s8 %v3353
    %v3422 = vunpack.c.2.s8 %v3350
    %v3423 = vunpack.c.2.s8 %v3351
    %v3424 = vunpack.c.2.s8 %v3352
    %v3425 = vunpack.c.2.s8 %v3353
    %v3426 = vunpack.c.3.s8 %v3350
    %v3427 = vunpack.c.3.s8 %v3351
    %v3428 = vunpack.c.3.s8 %v3352
    %v3429 = vunpack.c.3.s8 %v3353
    %v3430 = vunpack.c.0.s8 %v3354
    %v3431 = vunpack.c.0.s8 %v3355
    %v3432 = vunpack.c.0.s8 %v3356
    %v3433 = vunpack.c.0.s8 %v3357
    %v3434 = vunpack.c.1.s8 %v3354
    %v3435 = vunpack.c.1.s8 %v3355
    %v3436 = vunpack.c.1.s8 %v3356
    %v3437 = vunpack.c.1.s8 %v3357
    %v3438 = vunpack.c.2.s8 %v3354
    %v3439 = vunpack.c.2.s8 %v3355
    %v3440 = vunpack.c.2.s8 %v3356
    %v3441 = vunpack.c.2.s8 %v3357
    %v3442 = vunpack.c.3.s8 %v3354
    %v3443 = vunpack.c.3.s8 %v3355
    %v3444 = vunpack.c.3.s8 %v3356
    %v3445 = vunpack.c.3.s8 %v3357
    %v3446 = vunpack.c.0.s8 %v3358
    %v3447 = vunpack.c.0.s8 %v3359
    %v3448 = vunpack.c.0.s8 %v3360
    %v3449 = vunpack.c.0.s8 %v3361
    %v3450 = vunpack.c.1.s8 %v3358
    %v3451 = vunpack.c.1.s8 %v3359
    %v3452 = vunpack.c.1.s8 %v3360
    %v3453 = vunpack.c.1.s8 %v3361
    %v3454 = vunpack.c.2.s8 %v3358
    %v3455 = vunpack.c.2.s8 %v3359
    %v3456 = vunpack.c.2.s8 %v3360
    %v3457 = vunpack.c.2.s8 %v3361
    %v3458 = vunpack.c.3.s8 %v3358
    %v3459 = vunpack.c.3.s8 %v3359
    %v3460 = vunpack.c.3.s8 %v3360
    %v3461 = vunpack.c.3.s8 %v3361
    %v3462 = vunpack.c.0.s8 %v3362
    %v3463 = vunpack.c.0.s8 %v3363
    %v3464 = vunpack.c.0.s8 %v3364
    %v3465 = vunpack.c.0.s8 %v3365
    %v3466 = vunpack.c.1.s8 %v3362
    %v3467 = vunpack.c.1.s8 %v3363
    %v3468 = vunpack.c.1.s8 %v3364
    %v3469 = vunpack.c.1.s8 %v3365
    %v3470 = vunpack.c.2.s8 %v3362
    %v3471 = vunpack.c.2.s8 %v3363
    %v3472 = vunpack.c.2.s8 %v3364
    %v3473 = vunpack.c.2.s8 %v3365
    %v3474 = vunpack.c.3.s8 %v3362
    %v3475 = vunpack.c.3.s8 %v3363
    %v3476 = vunpack.c.3.s8 %v3364
    %v3477 = vunpack.c.3.s8 %v3365
    %v3478 = vunpack.c.0.s8 %v3366
    %v3479 = vunpack.c.0.s8 %v3367
    %v3480 = vunpack.c.0.s8 %v3368
    %v3481 = vunpack.c.0.s8 %v3369
    %v3482 = vunpack.c.1.s8 %v3366
    %v3483 = vunpack.c.1.s8 %v3367
    %v3484 = vunpack.c.1.s8 %v3368
    %v3485 = vunpack.c.1.s8 %v3369
    %v3486 = vunpack.c.2.s8 %v3366
    %v3487 = vunpack.c.2.s8 %v3367
    %v3488 = vunpack.c.2.s8 %v3368
    %v3489 = vunpack.c.2.s8 %v3369
    %v3490 = vunpack.c.3.s8 %v3366
    %v3491 = vunpack.c.3.s8 %v3367
    %v3492 = vunpack.c.3.s8 %v3368
    %v3493 = vunpack.c.3.s8 %v3369
    %v3494 = vunpack.c.0.s8 %v3370
    %v3495 = vunpack.c.0.s8 %v3371
    %v3496 = vunpack.c.0.s8 %v3372
    %v3497 = vunpack.c.0.s8 %v3373
    %v3498 = vunpack.c.1.s8 %v3370
    %v3499 = vunpack.c.1.s8 %v3371
    %v3500 = vunpack.c.1.s8 %v3372
    %v3501 = vunpack.c.1.s8 %v3373
    %v3502 = vunpack.c.2.s8 %v3370
    %v3503 = vunpack.c.2.s8 %v3371
    %v3504 = vunpack.c.2.s8 %v3372
    %v3505 = vunpack.c.2.s8 %v3373
    %v3506 = vunpack.c.3.s8 %v3370
    %v3507 = vunpack.c.3.s8 %v3371
    %v3508 = vunpack.c.3.s8 %v3372
    %v3509 = vunpack.c.3.s8 %v3373
    %v3510 = vunpack.c.0.s8 %v3374
    %v3511 = vunpack.c.0.s8 %v3375
    %v3512 = vunpack.c.0.s8 %v3376
    %v3513 = vunpack.c.0.s8 %v3377
    %v3514 = vunpack.c.1.s8 %v3374
    %v3515 = vunpack.c.1.s8 %v3375
    %v3516 = vunpack.c.1.s8 %v3376
    %v3517 = vunpack.c.1.s8 %v3377
    %v3518 = vunpack.c.2.s8 %v3374
    %v3519 = vunpack.c.2.s8 %v3375
    %v3520 = vunpack.c.2.s8 %v3376
    %v3521 = vunpack.c.2.s8 %v3377
    %v3522 = vunpack.c.3.s8 %v3374
    %v3523 = vunpack.c.3.s8 %v3375
    %v3524 = vunpack.c.3.s8 %v3376
    %v3525 = vunpack.c.3.s8 %v3377
    %v3526 = vunpack.c.0.s8 %v3378
    %v3527 = vunpack.c.0.s8 %v3379
    %v3528 = vunpack.c.0.s8 %v3380
    %v3529 = vunpack.c.0.s8 %v3381
    %v3530 = vunpack.c.1.s8 %v3378
    %v3531 = vunpack.c.1.s8 %v3379
    %v3532 = vunpack.c.1.s8 %v3380
    %v3533 = vunpack.c.1.s8 %v3381
    %v3534 = vunpack.c.2.s8 %v3378
    %v3535 = vunpack.c.2.s8 %v3379
    %v3536 = vunpack.c.2.s8 %v3380
    %v3537 = vunpack.c.2.s8 %v3381
    %v3538 = vunpack.c.3.s8 %v3378
    %v3539 = vunpack.c.3.s8 %v3379
    %v3540 = vunpack.c.3.s8 %v3380
    %v3541 = vunpack.c.3.s8 %v3381
    %v3542 = vunpack.c.0.s8 %v3382
    %v3543 = vunpack.c.0.s8 %v3383
    %v3544 = vunpack.c.0.s8 %v3384
    %v3545 = vunpack.c.0.s8 %v3385
    %v3546 = vunpack.c.1.s8 %v3382
    %v3547 = vunpack.c.1.s8 %v3383
    %v3548 = vunpack.c.1.s8 %v3384
    %v3549 = vunpack.c.1.s8 %v3385
    %v3550 = vunpack.c.2.s8 %v3382
    %v3551 = vunpack.c.2.s8 %v3383
    %v3552 = vunpack.c.2.s8 %v3384
    %v3553 = vunpack.c.2.s8 %v3385
    %v3554 = vunpack.c.3.s8 %v3382
    %v3555 = vunpack.c.3.s8 %v3383
    %v3556 = vunpack.c.3.s8 %v3384
    %v3557 = vunpack.c.3.s8 %v3385
    %v3558 = vunpack.c.0.s8 %v3386
    %v3559 = vunpack.c.0.s8 %v3387
    %v3560 = vunpack.c.0.s8 %v3388
    %v3561 = vunpack.c.0.s8 %v3389
    %v3562 = vunpack.c.1.s8 %v3386
    %v3563 = vunpack.c.1.s8 %v3387
    %v3564 = vunpack.c.1.s8 %v3388
    %v3565 = vunpack.c.1.s8 %v3389
    %v3566 = vunpack.c.2.s8 %v3386
    %v3567 = vunpack.c.2.s8 %v3387
    %v3568 = vunpack.c.2.s8 %v3388
    %v3569 = vunpack.c.2.s8 %v3389
    %v3570 = vunpack.c.3.s8 %v3386
    %v3571 = vunpack.c.3.s8 %v3387
    %v3572 = vunpack.c.3.s8 %v3388
    %v3573 = vunpack.c.3.s8 %v3389
    %v3574 = vunpack.c.0.s8 %v3390
    %v3575 = vunpack.c.0.s8 %v3391
    %v3576 = vunpack.c.0.s8 %v3392
    %v3577 = vunpack.c.0.s8 %v3393
    %v3578 = vunpack.c.1.s8 %v3390
    %v3579 = vunpack.c.1.s8 %v3391
    %v3580 = vunpack.c.1.s8 %v3392
    %v3581 = vunpack.c.1.s8 %v3393
    %v3582 = vunpack.c.2.s8 %v3390
    %v3583 = vunpack.c.2.s8 %v3391
    %v3584 = vunpack.c.2.s8 %v3392
    %v3585 = vunpack.c.2.s8 %v3393
    %v3586 = vunpack.c.3.s8 %v3390
    %v3587 = vunpack.c.3.s8 %v3391
    %v3588 = vunpack.c.3.s8 %v3392
    %v3589 = vunpack.c.3.s8 %v3393
    %v3590 = vunpack.c.0.s8 %v3394
    %v3591 = vunpack.c.0.s8 %v3395
    %v3592 = vunpack.c.0.s8 %v3396
    %v3593 = vunpack.c.0.s8 %v3397
    %v3594 = vunpack.c.1.s8 %v3394
    %v3595 = vunpack.c.1.s8 %v3395
    %v3596 = vunpack.c.1.s8 %v3396
    %v3597 = vunpack.c.1.s8 %v3397
    %v3598 = vunpack.c.2.s8 %v3394
    %v3599 = vunpack.c.2.s8 %v3395
    %v3600 = vunpack.c.2.s8 %v3396
    %v3601 = vunpack.c.2.s8 %v3397
    %v3602 = vunpack.c.3.s8 %v3394
    %v3603 = vunpack.c.3.s8 %v3395
    %v3604 = vunpack.c.3.s8 %v3396
    %v3605 = vunpack.c.3.s8 %v3397
    %v3606 = vunpack.c.0.s8 %v3398
    %v3607 = vunpack.c.0.s8 %v3399
    %v3608 = vunpack.c.0.s8 %v3400
    %v3609 = vunpack.c.0.s8 %v3401
    %v3610 = vunpack.c.1.s8 %v3398
    %v3611 = vunpack.c.1.s8 %v3399
    %v3612 = vunpack.c.1.s8 %v3400
    %v3613 = vunpack.c.1.s8 %v3401
    %v3614 = vunpack.c.2.s8 %v3398
    %v3615 = vunpack.c.2.s8 %v3399
    %v3616 = vunpack.c.2.s8 %v3400
    %v3617 = vunpack.c.2.s8 %v3401
    %v3618 = vunpack.c.3.s8 %v3398
    %v3619 = vunpack.c.3.s8 %v3399
    %v3620 = vunpack.c.3.s8 %v3400
    %v3621 = vunpack.c.3.s8 %v3401
    %v3622 = vunpack.c.0.s8 %v3402
    %v3623 = vunpack.c.0.s8 %v3403
    %v3624 = vunpack.c.0.s8 %v3404
    %v3625 = vunpack.c.0.s8 %v3405
    %v3626 = vunpack.c.1.s8 %v3402
    %v3627 = vunpack.c.1.s8 %v3403
    %v3628 = vunpack.c.1.s8 %v3404
    %v3629 = vunpack.c.1.s8 %v3405
    %v3630 = vunpack.c.2.s8 %v3402
    %v3631 = vunpack.c.2.s8 %v3403
    %v3632 = vunpack.c.2.s8 %v3404
    %v3633 = vunpack.c.2.s8 %v3405
    %v3634 = vunpack.c.3.s8 %v3402
    %v3635 = vunpack.c.3.s8 %v3403
    %v3636 = vunpack.c.3.s8 %v3404
    %v3637 = vunpack.c.3.s8 %v3405
    %v3638 = vunpack.c.0.s8 %v3406
    %v3639 = vunpack.c.0.s8 %v3407
    %v3640 = vunpack.c.0.s8 %v3408
    %v3641 = vunpack.c.0.s8 %v3409
    %v3642 = vunpack.c.1.s8 %v3406
    %v3643 = vunpack.c.1.s8 %v3407
    %v3644 = vunpack.c.1.s8 %v3408
    %v3645 = vunpack.c.1.s8 %v3409
    %v3646 = vunpack.c.2.s8 %v3406
    %v3647 = vunpack.c.2.s8 %v3407
    %v3648 = vunpack.c.2.s8 %v3408
    %v3649 = vunpack.c.2.s8 %v3409
    %v3650 = vunpack.c.3.s8 %v3406
    %v3651 = vunpack.c.3.s8 %v3407
    %v3652 = vunpack.c.3.s8 %v3408
    %v3653 = vunpack.c.3.s8 %v3409
    %v3654 = vunpack.c.0.s8 %v3410
    %v3655 = vunpack.c.0.s8 %v3411
    %v3656 = vunpack.c.0.s8 %v3412
    %v3657 = vunpack.c.0.s8 %v3413
    %v3658 = vunpack.c.1.s8 %v3410
    %v3659 = vunpack.c.1.s8 %v3411
    %v3660 = vunpack.c.1.s8 %v3412
    %v3661 = vunpack.c.1.s8 %v3413
    %v3662 = vunpack.c.2.s8 %v3410
    %v3663 = vunpack.c.2.s8 %v3411
    %v3664 = vunpack.c.2.s8 %v3412
    %v3665 = vunpack.c.2.s8 %v3413
    %v3666 = vunpack.c.3.s8 %v3410
    %v3667 = vunpack.c.3.s8 %v3411
    %v3668 = vunpack.c.3.s8 %v3412
    %v3669 = vunpack.c.3.s8 %v3413
    %v3670 = vcvt.s32.f32 %v3414
    %v3671 = vcvt.s32.f32 %v3415
    %v3672 = vcvt.s32.f32 %v3416
    %v3673 = vcvt.s32.f32 %v3417
    %v3674 = vcvt.s32.f32 %v3418
    %v3675 = vcvt.s32.f32 %v3419
    %v3676 = vcvt.s32.f32 %v3420
    %v3677 = vcvt.s32.f32 %v3421
    %v3678 = vcvt.s32.f32 %v3422
    %v3679 = vcvt.s32.f32 %v3423
    %v3680 = vcvt.s32.f32 %v3424
    %v3681 = vcvt.s32.f32 %v3425
    %v3682 = vcvt.s32.f32 %v3426
    %v3683 = vcvt.s32.f32 %v3427
    %v3684 = vcvt.s32.f32 %v3428
    %v3685 = vcvt.s32.f32 %v3429
    %v3686 = vcvt.s32.f32 %v3430
    %v3687 = vcvt.s32.f32 %v3431
    %v3688 = vcvt.s32.f32 %v3432
    %v3689 = vcvt.s32.f32 %v3433
    %v3690 = vcvt.s32.f32 %v3434
    %v3691 = vcvt.s32.f32 %v3435
    %v3692 = vcvt.s32.f32 %v3436
    %v3693 = vcvt.s32.f32 %v3437
    %v3694 = vcvt.s32.f32 %v3438
    %v3695 = vcvt.s32.f32 %v3439
    %v3696 = vcvt.s32.f32 %v3440
    %v3697 = vcvt.s32.f32 %v3441
    %v3698 = vcvt.s32.f32 %v3442
    %v3699 = vcvt.s32.f32 %v3443
    %v3700 = vcvt.s32.f32 %v3444
    %v3701 = vcvt.s32.f32 %v3445
    %v3702 = vcvt.s32.f32 %v3446
    %v3703 = vcvt.s32.f32 %v3447
    %v3704 = vcvt.s32.f32 %v3448
    %v3705 = vcvt.s32.f32 %v3449
    %v3706 = vcvt.s32.f32 %v3450
    %v3707 = vcvt.s32.f32 %v3451
    %v3708 = vcvt.s32.f32 %v3452
    %v3709 = vcvt.s32.f32 %v3453
    %v3710 = vcvt.s32.f32 %v3454
    %v3711 = vcvt.s32.f32 %v3455
    %v3712 = vcvt.s32.f32 %v3456
    %v3713 = vcvt.s32.f32 %v3457
    %v3714 = vcvt.s32.f32 %v3458
    %v3715 = vcvt.s32.f32 %v3459
    %v3716 = vcvt.s32.f32 %v3460
    %v3717 = vcvt.s32.f32 %v3461
    %v3718 = vcvt.s32.f32 %v3462
    %v3719 = vcvt.s32.f32 %v3463
    %v3720 = vcvt.s32.f32 %v3464
    %v3721 = vcvt.s32.f32 %v3465
    %v3722 = vcvt.s32.f32 %v3466
    %v3723 = vcvt.s32.f32 %v3467
    %v3724 = vcvt.s32.f32 %v3468
    %v3725 = vcvt.s32.f32 %v3469
    %v3726 = vcvt.s32.f32 %v3470
    %v3727 = vcvt.s32.f32 %v3471
    %v3728 = vcvt.s32.f32 %v3472
    %v3729 = vcvt.s32.f32 %v3473
    %v3730 = vcvt.s32.f32 %v3474
    %v3731 = vcvt.s32.f32 %v3475
    %v3732 = vcvt.s32.f32 %v3476
    %v3733 = vcvt.s32.f32 %v3477
    %v3734 = vcvt.s32.f32 %v3478
    %v3735 = vcvt.s32.f32 %v3479
    %v3736 = vcvt.s32.f32 %v3480
    %v3737 = vcvt.s32.f32 %v3481
    %v3738 = vcvt.s32.f32 %v3482
    %v3739 = vcvt.s32.f32 %v3483
    %v3740 = vcvt.s32.f32 %v3484
    %v3741 = vcvt.s32.f32 %v3485
    %v3742 = vcvt.s32.f32 %v3486
    %v3743 = vcvt.s32.f32 %v3487
    %v3744 = vcvt.s32.f32 %v3488
    %v3745 = vcvt.s32.f32 %v3489
    %v3746 = vcvt.s32.f32 %v3490
    %v3747 = vcvt.s32.f32 %v3491
    %v3748 = vcvt.s32.f32 %v3492
    %v3749 = vcvt.s32.f32 %v3493
    %v3750 = vcvt.s32.f32 %v3494
    %v3751 = vcvt.s32.f32 %v3495
    %v3752 = vcvt.s32.f32 %v3496
    %v3753 = vcvt.s32.f32 %v3497
    %v3754 = vcvt.s32.f32 %v3498
    %v3755 = vcvt.s32.f32 %v3499
    %v3756 = vcvt.s32.f32 %v3500
    %v3757 = vcvt.s32.f32 %v3501
    %v3758 = vcvt.s32.f32 %v3502
    %v3759 = vcvt.s32.f32 %v3503
    %v3760 = vcvt.s32.f32 %v3504
    %v3761 = vcvt.s32.f32 %v3505
    %v3762 = vcvt.s32.f32 %v3506
    %v3763 = vcvt.s32.f32 %v3507
    %v3764 = vcvt.s32.f32 %v3508
    %v3765 = vcvt.s32.f32 %v3509
    %v3766 = vcvt.s32.f32 %v3510
    %v3767 = vcvt.s32.f32 %v3511
    %v3768 = vcvt.s32.f32 %v3512
    %v3769 = vcvt.s32.f32 %v3513
    %v3770 = vcvt.s32.f32 %v3514
    %v3771 = vcvt.s32.f32 %v3515
    %v3772 = vcvt.s32.f32 %v3516
    %v3773 = vcvt.s32.f32 %v3517
    %v3774 = vcvt.s32.f32 %v3518
    %v3775 = vcvt.s32.f32 %v3519
    %v3776 = vcvt.s32.f32 %v3520
    %v3777 = vcvt.s32.f32 %v3521
    %v3778 = vcvt.s32.f32 %v3522
    %v3779 = vcvt.s32.f32 %v3523
    %v3780 = vcvt.s32.f32 %v3524
    %v3781 = vcvt.s32.f32 %v3525
    %v3782 = vcvt.s32.f32 %v3526
    %v3783 = vcvt.s32.f32 %v3527
    %v3784 = vcvt.s32.f32 %v3528
    %v3785 = vcvt.s32.f32 %v3529
    %v3786 = vcvt.s32.f32 %v3530
    %v3787 = vcvt.s32.f32 %v3531
    %v3788 = vcvt.s32.f32 %v3532
    %v3789 = vcvt.s32.f32 %v3533
    %v3790 = vcvt.s32.f32 %v3534
    %v3791 = vcvt.s32.f32 %v3535
    %v3792 = vcvt.s32.f32 %v3536
    %v3793 = vcvt.s32.f32 %v3537
    %v3794 = vcvt.s32.f32 %v3538
    %v3795 = vcvt.s32.f32 %v3539
    %v3796 = vcvt.s32.f32 %v3540
    %v3797 = vcvt.s32.f32 %v3541
    %v3798 = vcvt.s32.f32 %v3542
    %v3799 = vcvt.s32.f32 %v3543
    %v3800 = vcvt.s32.f32 %v3544
    %v3801 = vcvt.s32.f32 %v3545
    %v3802 = vcvt.s32.f32 %v3546
    %v3803 = vcvt.s32.f32 %v3547
    %v3804 = vcvt.s32.f32 %v3548
    %v3805 = vcvt.s32.f32 %v3549
    %v3806 = vcvt.s32.f32 %v3550
    %v3807 = vcvt.s32.f32 %v3551
    %v3808 = vcvt.s32.f32 %v3552
    %v3809 = vcvt.s32.f32 %v3553
    %v3810 = vcvt.s32.f32 %v3554
    %v3811 = vcvt.s32.f32 %v3555
    %v3812 = vcvt.s32.f32 %v3556
    %v3813 = vcvt.s32.f32 %v3557
    %v3814 = vcvt.s32.f32 %v3558
    %v3815 = vcvt.s32.f32 %v3559
    %v3816 = vcvt.s32.f32 %v3560
    %v3817 = vcvt.s32.f32 %v3561
    %v3818 = vcvt.s32.f32 %v3562
    %v3819 = vcvt.s32.f32 %v3563
    %v3820 = vcvt.s32.f32 %v3564
    %v3821 = vcvt.s32.f32 %v3565
    %v3822 = vcvt.s32.f32 %v3566
    %v3823 = vcvt.s32.f32 %v3567
    %v3824 = vcvt.s32.f32 %v3568
    %v3825 = vcvt.s32.f32 %v3569
    %v3826 = vcvt.s32.f32 %v3570
    %v3827 = vcvt.s32.f32 %v3571
    %v3828 = vcvt.s32.f32 %v3572
    %v3829 = vcvt.s32.f32 %v3573
    %v3830 = vcvt.s32.f32 %v3574
    %v3831 = vcvt.s32.f32 %v3575
    %v3832 = vcvt.s32.f32 %v3576
    %v3833 = vcvt.s32.f32 %v3577
    %v3834 = vcvt.s32.f32 %v3578
    %v3835 = vcvt.s32.f32 %v3579
    %v3836 = vcvt.s32.f32 %v3580
    %v3837 = vcvt.s32.f32 %v3581
    %v3838 = vcvt.s32.f32 %v3582
    %v3839 = vcvt.s32.f32 %v3583
    %v3840 = vcvt.s32.f32 %v3584
    %v3841 = vcvt.s32.f32 %v3585
    %v3842 = vcvt.s32.f32 %v3586
    %v3843 = vcvt.s32.f32 %v3587
    %v3844 = vcvt.s32.f32 %v3588
    %v3845 = vcvt.s32.f32 %v3589
    %v3846 = vcvt.s32.f32 %v3590
    %v3847 = vcvt.s32.f32 %v3591
    %v3848 = vcvt.s32.f32 %v3592
    %v3849 = vcvt.s32.f32 %v3593
    %v3850 = vcvt.s32.f32 %v3594
    %v3851 = vcvt.s32.f32 %v3595
    %v3852 = vcvt.s32.f32 %v3596
    %v3853 = vcvt.s32.f32 %v3597
    %v3854 = vcvt.s32.f32 %v3598
    %v3855 = vcvt.s32.f32 %v3599
    %v3856 = vcvt.s32.f32 %v3600
    %v3857 = vcvt.s32.f32 %v3601
    %v3858 = vcvt.s32.f32 %v3602
    %v3859 = vcvt.s32.f32 %v3603
    %v3860 = vcvt.s32.f32 %v3604
    %v3861 = vcvt.s32.f32 %v3605
    %v3862 = vcvt.s32.f32 %v3606
    %v3863 = vcvt.s32.f32 %v3607
    %v3864 = vcvt.s32.f32 %v3608
    %v3865 = vcvt.s32.f32 %v3609
    %v3866 = vcvt.s32.f32 %v3610
    %v3867 = vcvt.s32.f32 %v3611
    %v3868 = vcvt.s32.f32 %v3612
    %v3869 = vcvt.s32.f32 %v3613
    %v3870 = vcvt.s32.f32 %v3614
    %v3871 = vcvt.s32.f32 %v3615
    %v3872 = vcvt.s32.f32 %v3616
    %v3873 = vcvt.s32.f32 %v3617
    %v3874 = vcvt.s32.f32 %v3618
    %v3875 = vcvt.s32.f32 %v3619
    %v3876 = vcvt.s32.f32 %v3620
    %v3877 = vcvt.s32.f32 %v3621
    %v3878 = vcvt.s32.f32 %v3622
    %v3879 = vcvt.s32.f32 %v3623
    %v3880 = vcvt.s32.f32 %v3624
    %v3881 = vcvt.s32.f32 %v3625
    %v3882 = vcvt.s32.f32 %v3626
    %v3883 = vcvt.s32.f32 %v3627
    %v3884 = vcvt.s32.f32 %v3628
    %v3885 = vcvt.s32.f32 %v3629
    %v3886 = vcvt.s32.f32 %v3630
    %v3887 = vcvt.s32.f32 %v3631
    %v3888 = vcvt.s32.f32 %v3632
    %v3889 = vcvt.s32.f32 %v3633
    %v3890 = vcvt.s32.f32 %v3634
    %v3891 = vcvt.s32.f32 %v3635
    %v3892 = vcvt.s32.f32 %v3636
    %v3893 = vcvt.s32.f32 %v3637
    %v3894 = vcvt.s32.f32 %v3638
    %v3895 = vcvt.s32.f32 %v3639
    %v3896 = vcvt.s32.f32 %v3640
    %v3897 = vcvt.s32.f32 %v3641
    %v3898 = vcvt.s32.f32 %v3642
    %v3899 = vcvt.s32.f32 %v3643
    %v3900 = vcvt.s32.f32 %v3644
    %v3901 = vcvt.s32.f32 %v3645
    %v3902 = vcvt.s32.f32 %v3646
    %v3903 = vcvt.s32.f32 %v3647
    %v3904 = vcvt.s32.f32 %v3648
    %v3905 = vcvt.s32.f32 %v3649
    %v3906 = vcvt.s32.f32 %v3650
    %v3907 = vcvt.s32.f32 %v3651
    %v3908 = vcvt.s32.f32 %v3652
    %v3909 = vcvt.s32.f32 %v3653
    %v3910 = vcvt.s32.f32 %v3654
    %v3911 = vcvt.s32.f32 %v3655
    %v3912 = vcvt.s32.f32 %v3656
    %v3913 = vcvt.s32.f32 %v3657
    %v3914 = vcvt.s32.f32 %v3658
    %v3915 = vcvt.s32.f32 %v3659
    %v3916 = vcvt.s32.f32 %v3660
    %v3917 = vcvt.s32.f32 %v3661
    %v3918 = vcvt.s32.f32 %v3662
    %v3919 = vcvt.s32.f32 %v3663
    %v3920 = vcvt.s32.f32 %v3664
    %v3921 = vcvt.s32.f32 %v3665
    %v3922 = vcvt.s32.f32 %v3666
    %v3923 = vcvt.s32.f32 %v3667
    %v3924 = vcvt.s32.f32 %v3668
    %v3925 = vcvt.s32.f32 %v3669
    %v3926 = vpack.c.bf16 %v3674, %v3670
    %v3927 = vpack.c.bf16 %v3675, %v3671
    %v3928 = vpack.c.bf16 %v3676, %v3672
    %v3929 = vpack.c.bf16 %v3677, %v3673
    %v3930 = vpack.c.bf16 %v3682, %v3678
    %v3931 = vpack.c.bf16 %v3683, %v3679
    %v3932 = vpack.c.bf16 %v3684, %v3680
    %v3933 = vpack.c.bf16 %v3685, %v3681
    %v3934 = vpack.c.bf16 %v3690, %v3686
    %v3935 = vpack.c.bf16 %v3691, %v3687
    %v3936 = vpack.c.bf16 %v3692, %v3688
    %v3937 = vpack.c.bf16 %v3693, %v3689
    %v3938 = vpack.c.bf16 %v3698, %v3694
    %v3939 = vpack.c.bf16 %v3699, %v3695
    %v3940 = vpack.c.bf16 %v3700, %v3696
    %v3941 = vpack.c.bf16 %v3701, %v3697
    %v3942 = vpack.c.bf16 %v3706, %v3702
    %v3943 = vpack.c.bf16 %v3707, %v3703
    %v3944 = vpack.c.bf16 %v3708, %v3704
    %v3945 = vpack.c.bf16 %v3709, %v3705
    %v3946 = vpack.c.bf16 %v3714, %v3710
    %v3947 = vpack.c.bf16 %v3715, %v3711
    %v3948 = vpack.c.bf16 %v3716, %v3712
    %v3949 = vpack.c.bf16 %v3717, %v3713
    %v3950 = vpack.c.bf16 %v3722, %v3718
    %v3951 = vpack.c.bf16 %v3723, %v3719
    %v3952 = vpack.c.bf16 %v3724, %v3720
    %v3953 = vpack.c.bf16 %v3725, %v3721
    %v3954 = vpack.c.bf16 %v3730, %v3726
    %v3955 = vpack.c.bf16 %v3731, %v3727
    %v3956 = vpack.c.bf16 %v3732, %v3728
    %v3957 = vpack.c.bf16 %v3733, %v3729
    %v3958 = vpack.c.bf16 %v3738, %v3734
    %v3959 = vpack.c.bf16 %v3739, %v3735
    %v3960 = vpack.c.bf16 %v3740, %v3736
    %v3961 = vpack.c.bf16 %v3741, %v3737
    %v3962 = vpack.c.bf16 %v3746, %v3742
    %v3963 = vpack.c.bf16 %v3747, %v3743
    %v3964 = vpack.c.bf16 %v3748, %v3744
    %v3965 = vpack.c.bf16 %v3749, %v3745
    %v3966 = vpack.c.bf16 %v3754, %v3750
    %v3967 = vpack.c.bf16 %v3755, %v3751
    %v3968 = vpack.c.bf16 %v3756, %v3752
    %v3969 = vpack.c.bf16 %v3757, %v3753
    %v3970 = vpack.c.bf16 %v3762, %v3758
    %v3971 = vpack.c.bf16 %v3763, %v3759
    %v3972 = vpack.c.bf16 %v3764, %v3760
    %v3973 = vpack.c.bf16 %v3765, %v3761
    %v3974 = vpack.c.bf16 %v3770, %v3766
    %v3975 = vpack.c.bf16 %v3771, %v3767
    %v3976 = vpack.c.bf16 %v3772, %v3768
    %v3977 = vpack.c.bf16 %v3773, %v3769
    %v3978 = vpack.c.bf16 %v3778, %v3774
    %v3979 = vpack.c.bf16 %v3779, %v3775
    %v3980 = vpack.c.bf16 %v3780, %v3776
    %v3981 = vpack.c.bf16 %v3781, %v3777
    %v3982 = vpack.c.bf16 %v3786, %v3782
    %v3983 = vpack.c.bf16 %v3787, %v3783
    %v3984 = vpack.c.bf16 %v3788, %v3784
    %v3985 = vpack.c.bf16 %v3789, %v3785
    %v3986 = vpack.c.bf16 %v3794, %v3790
    %v3987 = vpack.c.bf16 %v3795, %v3791
    %v3988 = vpack.c.bf16 %v3796, %v3792
    %v3989 = vpack.c.bf16 %v3797, %v3793
    %v3990 = vpack.c.bf16 %v3802, %v3798
    %v3991 = vpack.c.bf16 %v3803, %v3799
    %v3992 = vpack.c.bf16 %v3804, %v3800
    %v3993 = vpack.c.bf16 %v3805, %v3801
    %v3994 = vpack.c.bf16 %v3810, %v3806
    %v3995 = vpack.c.bf16 %v3811, %v3807
    %v3996 = vpack.c.bf16 %v3812, %v3808
    %v3997 = vpack.c.bf16 %v3813, %v3809
    %v3998 = vpack.c.bf16 %v3818, %v3814
    %v3999 = vpack.c.bf16 %v3819, %v3815
    %v4000 = vpack.c.bf16 %v3820, %v3816
    %v4001 = vpack.c.bf16 %v3821, %v3817
    %v4002 = vpack.c.bf16 %v3826, %v3822
    %v4003 = vpack.c.bf16 %v3827, %v3823
    %v4004 = vpack.c.bf16 %v3828, %v3824
    %v4005 = vpack.c.bf16 %v3829, %v3825
    %v4006 = vpack.c.bf16 %v3834, %v3830
    %v4007 = vpack.c.bf16 %v3835, %v3831
    %v4008 = vpack.c.bf16 %v3836, %v3832
    %v4009 = vpack.c.bf16 %v3837, %v3833
    %v4010 = vpack.c.bf16 %v3842, %v3838
    %v4011 = vpack.c.bf16 %v3843, %v3839
    %v4012 = vpack.c.bf16 %v3844, %v3840
    %v4013 = vpack.c.bf16 %v3845, %v3841
    %v4014 = vpack.c.bf16 %v3850, %v3846
    %v4015 = vpack.c.bf16 %v3851, %v3847
    %v4016 = vpack.c.bf16 %v3852, %v3848
    %v4017 = vpack.c.bf16 %v3853, %v3849
    %v4018 = vpack.c.bf16 %v3858, %v3854
    %v4019 = vpack.c.bf16 %v3859, %v3855
    %v4020 = vpack.c.bf16 %v3860, %v3856
    %v4021 = vpack.c.bf16 %v3861, %v3857
    %v4022 = vpack.c.bf16 %v3866, %v3862
    %v4023 = vpack.c.bf16 %v3867, %v3863
    %v4024 = vpack.c.bf16 %v3868, %v3864
    %v4025 = vpack.c.bf16 %v3869, %v3865
    %v4026 = vpack.c.bf16 %v3874, %v3870
    %v4027 = vpack.c.bf16 %v3875, %v3871
    %v4028 = vpack.c.bf16 %v3876, %v3872
    %v4029 = vpack.c.bf16 %v3877, %v3873
    %v4030 = vpack.c.bf16 %v3882, %v3878
    %v4031 = vpack.c.bf16 %v3883, %v3879
    %v4032 = vpack.c.bf16 %v3884, %v3880
    %v4033 = vpack.c.bf16 %v3885, %v3881
    %v4034 = vpack.c.bf16 %v3890, %v3886
    %v4035 = vpack.c.bf16 %v3891, %v3887
    %v4036 = vpack.c.bf16 %v3892, %v3888
    %v4037 = vpack.c.bf16 %v3893, %v3889
    %v4038 = vpack.c.bf16 %v3898, %v3894
    %v4039 = vpack.c.bf16 %v3899, %v3895
    %v4040 = vpack.c.bf16 %v3900, %v3896
    %v4041 = vpack.c.bf16 %v3901, %v3897
    %v4042 = vpack.c.bf16 %v3906, %v3902
    %v4043 = vpack.c.bf16 %v3907, %v3903
    %v4044 = vpack.c.bf16 %v3908, %v3904
    %v4045 = vpack.c.bf16 %v3909, %v3905
    %v4046 = vpack.c.bf16 %v3914, %v3910
    %v4047 = vpack.c.bf16 %v3915, %v3911
    %v4048 = vpack.c.bf16 %v3916, %v3912
    %v4049 = vpack.c.bf16 %v3917, %v3913
    %v4050 = vpack.c.bf16 %v3922, %v3918
    %v4051 = vpack.c.bf16 %v3923, %v3919
    %v4052 = vpack.c.bf16 %v3924, %v3920
    %v4053 = vpack.c.bf16 %v3925, %v3921
    %4054 = vmatpush.bf16.msra.mxu0 %v3954
    %4055 = vmatpush.bf16.msra.mxu0 %v3950
    %4056 = vmatpush.bf16.msra.mxu0 %v3946
    %4057 = vmatpush.bf16.msra.mxu0 %v3942
    %4058 = vmatpush.bf16.msra.mxu0 %v3938
    %4059 = vmatpush.bf16.msra.mxu0 %v3934
    %4060 = vmatpush.bf16.msra.mxu0 %v3930
    %4061 = vmatpush.bf16.msra.mxu0 %v3926
    %4062 = vmatmul.bf16.gmra.mxu0 %v3346
    %v4063 = vpop.f32.mrf.mxu0
    %v4064 = vadd.f32 0.0, %v4063
    %v4065 = vpop.f32.mrf.mxu0
    %v4066 = vadd.f32 0.0, %v4065
    %4067 = vdwg.mxu0
    %4068 = vmatpush.bf16.msra.mxu0 %v3986
    %4069 = vmatpush.bf16.msra.mxu0 %v3982
    %4070 = vmatpush.bf16.msra.mxu0 %v3978
    %4071 = vmatpush.bf16.msra.mxu0 %v3974
    %4072 = vmatpush.bf16.msra.mxu0 %v3970
    %4073 = vmatpush.bf16.msra.mxu0 %v3966
    %4074 = vmatpush.bf16.msra.mxu0 %v3962
    %4075 = vmatpush.bf16.msra.mxu0 %v3958
    %4076 = vmatmul.bf16.gmra.mxu0 %v3347
    %v4077 = vpop.f32.mrf.mxu0
    %v4078 = vadd.f32 %v4064, %v4077
    %v4079 = vpop.f32.mrf.mxu0
    %v4080 = vadd.f32 %v4066, %v4079
    %4081 = vdwg.mxu0
    %4082 = vmatpush.bf16.msra.mxu0 %v4018
    %4083 = vmatpush.bf16.msra.mxu0 %v4014
    %4084 = vmatpush.bf16.msra.mxu0 %v4010
    %4085 = vmatpush.bf16.msra.mxu0 %v4006
    %4086 = vmatpush.bf16.msra.mxu0 %v4002
    %4087 = vmatpush.bf16.msra.mxu0 %v3998
    %4088 = vmatpush.bf16.msra.mxu0 %v3994
    %4089 = vmatpush.bf16.msra.mxu0 %v3990
    %4090 = vmatmul.bf16.gmra.mxu0 %v3348
    %v4091 = vpop.f32.mrf.mxu0
    %v4092 = vadd.f32 %v4078, %v4091
    %v4093 = vpop.f32.mrf.mxu0
    %v4094 = vadd.f32 %v4080, %v4093
    %4095 = vdwg.mxu0
    %4096 = vmatpush.bf16.msra.mxu0 %v4050
    %4097 = vmatpush.bf16.msra.mxu0 %v4046
    %4098 = vmatpush.bf16.msra.mxu0 %v4042
    %4099 = vmatpush.bf16.msra.mxu0 %v4038
    %4100 = vmatpush.bf16.msra.mxu0 %v4034
    %4101 = vmatpush.bf16.msra.mxu0 %v4030
    %4102 = vmatpush.bf16.msra.mxu0 %v4026
    %4103 = vmatpush.bf16.msra.mxu0 %v4022
    %4104 = vmatmul.bf16.gmra.mxu0 %v3349
    %v4105 = vpop.f32.mrf.mxu0
    %v4106 = vadd.f32 %v4092, %v4105
    %v4107 = vpop.f32.mrf.mxu0
    %v4108 = vadd.f32 %v4094, %v4107
    %4109 = vdwg.mxu0
    %4110 = vmatpush.bf16.msra.mxu0 %v3955
    %4111 = vmatpush.bf16.msra.mxu0 %v3951
    %4112 = vmatpush.bf16.msra.mxu0 %v3947
    %4113 = vmatpush.bf16.msra.mxu0 %v3943
    %4114 = vmatpush.bf16.msra.mxu0 %v3939
    %4115 = vmatpush.bf16.msra.mxu0 %v3935
    %4116 = vmatpush.bf16.msra.mxu0 %v3931
    %4117 = vmatpush.bf16.msra.mxu0 %v3927
    %4118 = vmatmul.bf16.gmra.mxu0 %v3346
    %v4119 = vpop.f32.mrf.mxu0
    %v4120 = vadd.f32 0.0, %v4119
    %v4121 = vpop.f32.mrf.mxu0
    %v4122 = vadd.f32 0.0, %v4121
    %4123 = vdwg.mxu0
    %4124 = vmatpush.bf16.msra.mxu0 %v3987
    %4125 = vmatpush.bf16.msra.mxu0 %v3983
    %4126 = vmatpush.bf16.msra.mxu0 %v3979
    %4127 = vmatpush.bf16.msra.mxu0 %v3975
    %4128 = vmatpush.bf16.msra.mxu0 %v3971
    %4129 = vmatpush.bf16.msra.mxu0 %v3967
    %4130 = vmatpush.bf16.msra.mxu0 %v3963
    %4131 = vmatpush.bf16.msra.mxu0 %v3959
    %4132 = vmatmul.bf16.gmra.mxu0 %v3347
    %v4133 = vpop.f32.mrf.mxu0
    %v4134 = vadd.f32 %v4120, %v4133
    %v4135 = vpop.f32.mrf.mxu0
    %v4136 = vadd.f32 %v4122, %v4135
    %4137 = vdwg.mxu0
    %4138 = vmatpush.bf16.msra.mxu0 %v4019
    %4139 = vmatpush.bf16.msra.mxu0 %v4015
    %4140 = vmatpush.bf16.msra.mxu0 %v4011
    %4141 = vmatpush.bf16.msra.mxu0 %v4007
    %4142 = vmatpush.bf16.msra.mxu0 %v4003
    %4143 = vmatpush.bf16.msra.mxu0 %v3999
    %4144 = vmatpush.bf16.msra.mxu0 %v3995
    %4145 = vmatpush.bf16.msra.mxu0 %v3991
    %4146 = vmatmul.bf16.gmra.mxu0 %v3348
    %v4147 = vpop.f32.mrf.mxu0
    %v4148 = vadd.f32 %v4134, %v4147
    %v4149 = vpop.f32.mrf.mxu0
    %v4150 = vadd.f32 %v4136, %v4149
    %4151 = vdwg.mxu0
    %4152 = vmatpush.bf16.msra.mxu0 %v4051
    %4153 = vmatpush.bf16.msra.mxu0 %v4047
    %4154 = vmatpush.bf16.msra.mxu0 %v4043
    %4155 = vmatpush.bf16.msra.mxu0 %v4039
    %4156 = vmatpush.bf16.msra.mxu0 %v4035
    %4157 = vmatpush.bf16.msra.mxu0 %v4031
    %4158 = vmatpush.bf16.msra.mxu0 %v4027
    %4159 = vmatpush.bf16.msra.mxu0 %v4023
    %4160 = vmatmul.bf16.gmra.mxu0 %v3349
    %v4161 = vpop.f32.mrf.mxu0
    %v4162 = vadd.f32 %v4148, %v4161
    %v4163 = vpop.f32.mrf.mxu0
    %v4164 = vadd.f32 %v4150, %v4163
    %4165 = vdwg.mxu0
    %4166 = vmatpush.bf16.msra.mxu0 %v3956
    %4167 = vmatpush.bf16.msra.mxu0 %v3952
    %4168 = vmatpush.bf16.msra.mxu0 %v3948
    %4169 = vmatpush.bf16.msra.mxu0 %v3944
    %4170 = vmatpush.bf16.msra.mxu0 %v3940
    %4171 = vmatpush.bf16.msra.mxu0 %v3936
    %4172 = vmatpush.bf16.msra.mxu0 %v3932
    %4173 = vmatpush.bf16.msra.mxu0 %v3928
    %4174 = vmatmul.bf16.gmra.mxu0 %v3346
    %v4175 = vpop.f32.mrf.mxu0
    %v4176 = vadd.f32 0.0, %v4175
    %v4177 = vpop.f32.mrf.mxu0
    %v4178 = vadd.f32 0.0, %v4177
    %4179 = vdwg.mxu0
    %4180 = vmatpush.bf16.msra.mxu0 %v3988
    %4181 = vmatpush.bf16.msra.mxu0 %v3984
    %4182 = vmatpush.bf16.msra.mxu0 %v3980
    %4183 = vmatpush.bf16.msra.mxu0 %v3976
    %4184 = vmatpush.bf16.msra.mxu0 %v3972
    %4185 = vmatpush.bf16.msra.mxu0 %v3968
    %4186 = vmatpush.bf16.msra.mxu0 %v3964
    %4187 = vmatpush.bf16.msra.mxu0 %v3960
    %4188 = vmatmul.bf16.gmra.mxu0 %v3347
    %v4189 = vpop.f32.mrf.mxu0
    %v4190 = vadd.f32 %v4176, %v4189
    %v4191 = vpop.f32.mrf.mxu0
    %v4192 = vadd.f32 %v4178, %v4191
    %4193 = vdwg.mxu0
    %4194 = vmatpush.bf16.msra.mxu0 %v4020
    %4195 = vmatpush.bf16.msra.mxu0 %v4016
    %4196 = vmatpush.bf16.msra.mxu0 %v4012
    %4197 = vmatpush.bf16.msra.mxu0 %v4008
    %4198 = vmatpush.bf16.msra.mxu0 %v4004
    %4199 = vmatpush.bf16.msra.mxu0 %v4000
    %4200 = vmatpush.bf16.msra.mxu0 %v3996
    %4201 = vmatpush.bf16.msra.mxu0 %v3992
    %4202 = vmatmul.bf16.gmra.mxu0 %v3348
    %v4203 = vpop.f32.mrf.mxu0
    %v4204 = vadd.f32 %v4190, %v4203
    %v4205 = vpop.f32.mrf.mxu0
    %v4206 = vadd.f32 %v4192, %v4205
    %4207 = vdwg.mxu0
    %4208 = vmatpush.bf16.msra.mxu0 %v4052
    %4209 = vmatpush.bf16.msra.mxu0 %v4048
    %4210 = vmatpush.bf16.msra.mxu0 %v4044
    %4211 = vmatpush.bf16.msra.mxu0 %v4040
    %4212 = vmatpush.bf16.msra.mxu0 %v4036
    %4213 = vmatpush.bf16.msra.mxu0 %v4032
    %4214 = vmatpush.bf16.msra.mxu0 %v4028
    %4215 = vmatpush.bf16.msra.mxu0 %v4024
    %4216 = vmatmul.bf16.gmra.mxu0 %v3349
    %v4217 = vpop.f32.mrf.mxu0
    %v4218 = vadd.f32 %v4204, %v4217
    %v4219 = vpop.f32.mrf.mxu0
    %v4220 = vadd.f32 %v4206, %v4219
    %4221 = vdwg.mxu0
    %4222 = vmatpush.bf16.msra.mxu0 %v3957
    %4223 = vmatpush.bf16.msra.mxu0 %v3953
    %4224 = vmatpush.bf16.msra.mxu0 %v3949
    %4225 = vmatpush.bf16.msra.mxu0 %v3945
    %4226 = vmatpush.bf16.msra.mxu0 %v3941
    %4227 = vmatpush.bf16.msra.mxu0 %v3937
    %4228 = vmatpush.bf16.msra.mxu0 %v3933
    %4229 = vmatpush.bf16.msra.mxu0 %v3929
    %4230 = vmatmul.bf16.gmra.mxu0 %v3346
    %v4231 = vpop.f32.mrf.mxu0
    %v4232 = vadd.f32 0.0, %v4231
    %v4233 = vpop.f32.mrf.mxu0
    %v4234 = vadd.f32 0.0, %v4233
    %4235 = vdwg.mxu0
    %4236 = vmatpush.bf16.msra.mxu0 %v3989
    %4237 = vmatpush.bf16.msra.mxu0 %v3985
    %4238 = vmatpush.bf16.msra.mxu0 %v3981
    %4239 = vmatpush.bf16.msra.mxu0 %v3977
    %4240 = vmatpush.bf16.msra.mxu0 %v3973
    %4241 = vmatpush.bf16.msra.mxu0 %v3969
    %4242 = vmatpush.bf16.msra.mxu0 %v3965
    %4243 = vmatpush.bf16.msra.mxu0 %v3961
    %4244 = vmatmul.bf16.gmra.mxu0 %v3347
    %v4245 = vpop.f32.mrf.mxu0
    %v4246 = vadd.f32 %v4232, %v4245
    %v4247 = vpop.f32.mrf.mxu0
    %v4248 = vadd.f32 %v4234, %v4247
    %4249 = vdwg.mxu0
    %4250 = vmatpush.bf16.msra.mxu0 %v4021
    %4251 = vmatpush.bf16.msra.mxu0 %v4017
    %4252 = vmatpush.bf16.msra.mxu0 %v4013
    %4253 = vmatpush.bf16.msra.mxu0 %v4009
    %4254 = vmatpush.bf16.msra.mxu0 %v4005
    %4255 = vmatpush.bf16.msra.mxu0 %v4001
    %4256 = vmatpush.bf16.msra.mxu0 %v3997
    %4257 = vmatpush.bf16.msra.mxu0 %v3993
    %4258 = vmatmul.bf16.gmra.mxu0 %v3348
    %v4259 = vpop.f32.mrf.mxu0
    %v4260 = vadd.f32 %v4246, %v4259
    %v4261 = vpop.f32.mrf.mxu0
    %v4262 = vadd.f32 %v4248, %v4261
    %4263 = vdwg.mxu0
    %4264 = vmatpush.bf16.msra.mxu0 %v4053
    %4265 = vmatpush.bf16.msra.mxu0 %v4049
    %4266 = vmatpush.bf16.msra.mxu0 %v4045
    %4267 = vmatpush.bf16.msra.mxu0 %v4041
    %4268 = vmatpush.bf16.msra.mxu0 %v4037
    %4269 = vmatpush.bf16.msra.mxu0 %v4033
    %4270 = vmatpush.bf16.msra.mxu0 %v4029
    %4271 = vmatpush.bf16.msra.mxu0 %v4025
    %4272 = vmatmul.bf16.gmra.mxu0 %v3349
    %v4273 = vpop.f32.mrf.mxu0
    %v4274 = vadd.f32 %v4260, %v4273
    %v4275 = vpop.f32.mrf.mxu0
    %v4276 = vadd.f32 %v4262, %v4275
    %4277 = vdwg.mxu0
    %v4278 = vld [vmem:[%s11] sm:$0xf]
    %v4280 = vperm.slane %v4278, 0
    %v4281 = vperm.slane %v4278, 1
    %v4282 = vperm.slane %v4278, 2
    %v4283 = vperm.slane %v4278, 3
    %v4288 = vmul.f32 %v4106, %v4280
    %v4289 = vmul.f32 %v4162, %v4281
    %v4290 = vmul.f32 %v4218, %v4282
    %v4291 = vmul.f32 %v4274, %v4283
    %v4292 = vmul.f32 %v4108, %v4280
    %v4293 = vmul.f32 %v4164, %v4281
    %v4294 = vmul.f32 %v4220, %v4282
    %v4295 = vmul.f32 %v4276, %v4283
    %v4296 = vld [vmem:[#allocation12] sm:$0xf]
    %v4298 = vperm.slane %v4296, 0
    %v4299 = vperm.slane %v4296, 1
    %v4300 = vperm.slane %v4296, 2
    %v4301 = vperm.slane %v4296, 3
    %v4306 = vadd.f32 %v4288, %v4298
    %v4307 = vadd.f32 %v4289, %v4299
    %v4308 = vadd.f32 %v4290, %v4300
    %v4309 = vadd.f32 %v4291, %v4301
    %v4310 = vadd.f32 %v4292, %v4298
    %v4311 = vadd.f32 %v4293, %v4299
    %v4312 = vadd.f32 %v4294, %v4300
    %v4313 = vadd.f32 %v4295, %v4301
    %v4314 = vmax.f32 %v4306, 0.0
    %v4315 = vmax.f32 %v4307, 0.0
    %v4316 = vmax.f32 %v4308, 0.0
    %v4317 = vmax.f32 %v4309, 0.0
    %v4318 = vmax.f32 %v4310, 0.0
    %v4319 = vmax.f32 %v4311, 0.0
    %v4320 = vmax.f32 %v4312, 0.0
    %v4321 = vmax.f32 %v4313, 0.0
    %v4322 = vpack.c.bf16 %v4318, %v4314
    %v4323 = vpack.c.bf16 %v4319, %v4315
    %v4324 = vpack.c.bf16 %v4320, %v4316
    %v4325 = vpack.c.bf16 %v4321, %v4317
    %v4326 = vld [vmem:[#allocation13] sm:$0xff]
    %v4327 = vld [vmem:[#allocation13 + $0x8] sm:$0xff]
    %v4328 = vld [vmem:[#allocation13 + $0x10] sm:$0xff]
    %v4329 = vld [vmem:[#allocation13 + $0x18] sm:$0xff]
    %v4330 = vld [vmem:[#allocation13 + $0x20] sm:$0xff]
    %v4331 = vld [vmem:[#allocation13 + $0x28] sm:$0xff]
    %v4332 = vld [vmem:[#allocation13 + $0x30] sm:$0xff]
    %v4333 = vld [vmem:[#allocation13 + $0x38] sm:$0xff]
    %v4334 = vld [vmem:[#allocation13 + $0x40] sm:$0xff]
    %v4335 = vld [vmem:[#allocation13 + $0x48] sm:$0xff]
    %v4336 = vld [vmem:[#allocation13 + $0x50] sm:$0xff]
    %v4337 = vld [vmem:[#allocation13 + $0x58] sm:$0xff]
    %v4338 = vld [vmem:[#allocation13 + $0x60] sm:$0xff]
    %v4339 = vld [vmem:[#allocation13 + $0x68] sm:$0xff]
    %v4340 = vld [vmem:[#allocation13 + $0x70] sm:$0xff]
    %v4341 = vld [vmem:[#allocation13 + $0x78] sm:$0xff]
    %v4342 = vunpack.c.0.s8 %v4326
    %v4343 = vunpack.c.1.s8 %v4326
    %v4344 = vunpack.c.2.s8 %v4326
    %v4345 = vunpack.c.3.s8 %v4326
    %v4346 = vunpack.c.0.s8 %v4327
    %v4347 = vunpack.c.1.s8 %v4327
    %v4348 = vunpack.c.2.s8 %v4327
    %v4349 = vunpack.c.3.s8 %v4327
    %v4350 = vunpack.c.0.s8 %v4328
    %v4351 = vunpack.c.1.s8 %v4328
    %v4352 = vunpack.c.2.s8 %v4328
    %v4353 = vunpack.c.3.s8 %v4328
    %v4354 = vunpack.c.0.s8 %v4329
    %v4355 = vunpack.c.1.s8 %v4329
    %v4356 = vunpack.c.2.s8 %v4329
    %v4357 = vunpack.c.3.s8 %v4329
    %v4358 = vunpack.c.0.s8 %v4330
    %v4359 = vunpack.c.1.s8 %v4330
    %v4360 = vunpack.c.2.s8 %v4330
    %v4361 = vunpack.c.3.s8 %v4330
    %v4362 = vunpack.c.0.s8 %v4331
    %v4363 = vunpack.c.1.s8 %v4331
    %v4364 = vunpack.c.2.s8 %v4331
    %v4365 = vunpack.c.3.s8 %v4331
    %v4366 = vunpack.c.0.s8 %v4332
    %v4367 = vunpack.c.1.s8 %v4332
    %v4368 = vunpack.c.2.s8 %v4332
    %v4369 = vunpack.c.3.s8 %v4332
    %v4370 = vunpack.c.0.s8 %v4333
    %v4371 = vunpack.c.1.s8 %v4333
    %v4372 = vunpack.c.2.s8 %v4333
    %v4373 = vunpack.c.3.s8 %v4333
    %v4374 = vunpack.c.0.s8 %v4334
    %v4375 = vunpack.c.1.s8 %v4334
    %v4376 = vunpack.c.2.s8 %v4334
    %v4377 = vunpack.c.3.s8 %v4334
    %v4378 = vunpack.c.0.s8 %v4335
    %v4379 = vunpack.c.1.s8 %v4335
    %v4380 = vunpack.c.2.s8 %v4335
    %v4381 = vunpack.c.3.s8 %v4335
    %v4382 = vunpack.c.0.s8 %v4336
    %v4383 = vunpack.c.1.s8 %v4336
    %v4384 = vunpack.c.2.s8 %v4336
    %v4385 = vunpack.c.3.s8 %v4336
    %v4386 = vunpack.c.0.s8 %v4337
    %v4387 = vunpack.c.1.s8 %v4337
    %v4388 = vunpack.c.2.s8 %v4337
    %v4389 = vunpack.c.3.s8 %v4337
    %v4390 = vunpack.c.0.s8 %v4338
    %v4391 = vunpack.c.1.s8 %v4338
    %v4392 = vunpack.c.2.s8 %v4338
    %v4393 = vunpack.c.3.s8 %v4338
    %v4394 = vunpack.c.0.s8 %v4339
    %v4395 = vunpack.c.1.s8 %v4339
    %v4396 = vunpack.c.2.s8 %v4339
    %v4397 = vunpack.c.3.s8 %v4339
    %v4398 = vunpack.c.0.s8 %v4340
    %v4399 = vunpack.c.1.s8 %v4340
    %v4400 = vunpack.c.2.s8 %v4340
    %v4401 = vunpack.c.3.s8 %v4340
    %v4402 = vunpack.c.0.s8 %v4341
    %v4403 = vunpack.c.1.s8 %v4341
    %v4404 = vunpack.c.2.s8 %v4341
    %v4405 = vunpack.c.3.s8 %v4341
    %v4406 = vcvt.s32.f32 %v4342
    %v4407 = vcvt.s32.f32 %v4343
    %v4408 = vcvt.s32.f32 %v4344
    %v4409 = vcvt.s32.f32 %v4345
    %v4410 = vcvt.s32.f32 %v4346
    %v4411 = vcvt.s32.f32 %v4347
    %v4412 = vcvt.s32.f32 %v4348
    %v4413 = vcvt.s32.f32 %v4349
    %v4414 = vcvt.s32.f32 %v4350
    %v4415 = vcvt.s32.f32 %v4351
    %v4416 = vcvt.s32.f32 %v4352
    %v4417 = vcvt.s32.f32 %v4353
    %v4418 = vcvt.s32.f32 %v4354
    %v4419 = vcvt.s32.f32 %v4355
    %v4420 = vcvt.s32.f32 %v4356
    %v4421 = vcvt.s32.f32 %v4357
    %v4422 = vcvt.s32.f32 %v4358
    %v4423 = vcvt.s32.f32 %v4359
    %v4424 = vcvt.s32.f32 %v4360
    %v4425 = vcvt.s32.f32 %v4361
    %v4426 = vcvt.s32.f32 %v4362
    %v4427 = vcvt.s32.f32 %v4363
    %v4428 = vcvt.s32.f32 %v4364
    %v4429 = vcvt.s32.f32 %v4365
    %v4430 = vcvt.s32.f32 %v4366
    %v4431 = vcvt.s32.f32 %v4367
    %v4432 = vcvt.s32.f32 %v4368
    %v4433 = vcvt.s32.f32 %v4369
    %v4434 = vcvt.s32.f32 %v4370
    %v4435 = vcvt.s32.f32 %v4371
    %v4436 = vcvt.s32.f32 %v4372
    %v4437 = vcvt.s32.f32 %v4373
    %v4438 = vcvt.s32.f32 %v4374
    %v4439 = vcvt.s32.f32 %v4375
    %v4440 = vcvt.s32.f32 %v4376
    %v4441 = vcvt.s32.f32 %v4377
    %v4442 = vcvt.s32.f32 %v4378
    %v4443 = vcvt.s32.f32 %v4379
    %v4444 = vcvt.s32.f32 %v4380
    %v4445 = vcvt.s32.f32 %v4381
    %v4446 = vcvt.s32.f32 %v4382
    %v4447 = vcvt.s32.f32 %v4383
    %v4448 = vcvt.s32.f32 %v4384
    %v4449 = vcvt.s32.f32 %v4385
    %v4450 = vcvt.s32.f32 %v4386
    %v4451 = vcvt.s32.f32 %v4387
    %v4452 = vcvt.s32.f32 %v4388
    %v4453 = vcvt.s32.f32 %v4389
    %v4454 = vcvt.s32.f32 %v4390
    %v4455 = vcvt.s32.f32 %v4391
    %v4456 = vcvt.s32.f32 %v4392
    %v4457 = vcvt.s32.f32 %v4393
    %v4458 = vcvt.s32.f32 %v4394
    %v4459 = vcvt.s32.f32 %v4395
    %v4460 = vcvt.s32.f32 %v4396
    %v4461 = vcvt.s32.f32 %v4397
    %v4462 = vcvt.s32.f32 %v4398
    %v4463 = vcvt.s32.f32 %v4399
    %v4464 = vcvt.s32.f32 %v4400
    %v4465 = vcvt.s32.f32 %v4401
    %v4466 = vcvt.s32.f32 %v4402
    %v4467 = vcvt.s32.f32 %v4403
    %v4468 = vcvt.s32.f32 %v4404
    %v4469 = vcvt.s32.f32 %v4405
    %v4470 = vpack.c.bf16 %v4407, %v4406
    %v4471 = vpack.c.bf16 %v4409, %v4408
    %v4472 = vpack.c.bf16 %v4411, %v4410
    %v4473 = vpack.c.bf16 %v4413, %v4412
    %v4474 = vpack.c.bf16 %v4415, %v4414
    %v4475 = vpack.c.bf16 %v4417, %v4416
    %v4476 = vpack.c.bf16 %v4419, %v4418
    %v4477 = vpack.c.bf16 %v4421, %v4420
    %v4478 = vpack.c.bf16 %v4423, %v4422
    %v4479 = vpack.c.bf16 %v4425, %v4424
    %v4480 = vpack.c.bf16 %v4427, %v4426
    %v4481 = vpack.c.bf16 %v4429, %v4428
    %v4482 = vpack.c.bf16 %v4431, %v4430
    %v4483 = vpack.c.bf16 %v4433, %v4432
    %v4484 = vpack.c.bf16 %v4435, %v4434
    %v4485 = vpack.c.bf16 %v4437, %v4436
    %v4486 = vpack.c.bf16 %v4439, %v4438
    %v4487 = vpack.c.bf16 %v4441, %v4440
    %v4488 = vpack.c.bf16 %v4443, %v4442
    %v4489 = vpack.c.bf16 %v4445, %v4444
    %v4490 = vpack.c.bf16 %v4447, %v4446
    %v4491 = vpack.c.bf16 %v4449, %v4448
    %v4492 = vpack.c.bf16 %v4451, %v4450
    %v4493 = vpack.c.bf16 %v4453, %v4452
    %v4494 = vpack.c.bf16 %v4455, %v4454
    %v4495 = vpack.c.bf16 %v4457, %v4456
    %v4496 = vpack.c.bf16 %v4459, %v4458
    %v4497 = vpack.c.bf16 %v4461, %v4460
    %v4498 = vpack.c.bf16 %v4463, %v4462
    %v4499 = vpack.c.bf16 %v4465, %v4464
    %v4500 = vpack.c.bf16 %v4467, %v4466
    %v4501 = vpack.c.bf16 %v4469, %v4468
    %4502 = vmatpush.bf16.msra.mxu0 %v4477
    %4503 = vmatpush.bf16.msra.mxu0 %v4476
    %4504 = vmatpush.bf16.msra.mxu0 %v4475
    %4505 = vmatpush.bf16.msra.mxu0 %v4474
    %4506 = vmatpush.bf16.msra.mxu0 %v4473
    %4507 = vmatpush.bf16.msra.mxu0 %v4472
    %4508 = vmatpush.bf16.msra.mxu0 %v4471
    %4509 = vmatpush.bf16.msra.mxu0 %v4470
    %4510 = vmatmul.bf16.gmra.mxu0 %v4322
    %v4511 = vpop.f32.mrf.mxu0
    %v4512 = vadd.f32 0.0, %v4511
    %v4513 = vpop.f32.mrf.mxu0
    %v4514 = vadd.f32 0.0, %v4513
    %4515 = vdwg.mxu0
    %4516 = vmatpush.bf16.msra.mxu0 %v4485
    %4517 = vmatpush.bf16.msra.mxu0 %v4484
    %4518 = vmatpush.bf16.msra.mxu0 %v4483
    %4519 = vmatpush.bf16.msra.mxu0 %v4482
    %4520 = vmatpush.bf16.msra.mxu0 %v4481
    %4521 = vmatpush.bf16.msra.mxu0 %v4480
    %4522 = vmatpush.bf16.msra.mxu0 %v4479
    %4523 = vmatpush.bf16.msra.mxu0 %v4478
    %4524 = vmatmul.bf16.gmra.mxu0 %v4323
    %v4525 = vpop.f32.mrf.mxu0
    %v4526 = vadd.f32 %v4512, %v4525
    %v4527 = vpop.f32.mrf.mxu0
    %v4528 = vadd.f32 %v4514, %v4527
    %4529 = vdwg.mxu0
    %4530 = vmatpush.bf16.msra.mxu0 %v4493
    %4531 = vmatpush.bf16.msra.mxu0 %v4492
    %4532 = vmatpush.bf16.msra.mxu0 %v4491
    %4533 = vmatpush.bf16.msra.mxu0 %v4490
    %4534 = vmatpush.bf16.msra.mxu0 %v4489
    %4535 = vmatpush.bf16.msra.mxu0 %v4488
    %4536 = vmatpush.bf16.msra.mxu0 %v4487
    %4537 = vmatpush.bf16.msra.mxu0 %v4486
    %4538 = vmatmul.bf16.gmra.mxu0 %v4324
    %v4539 = vpop.f32.mrf.mxu0
    %v4540 = vadd.f32 %v4526, %v4539
    %v4541 = vpop.f32.mrf.mxu0
    %v4542 = vadd.f32 %v4528, %v4541
    %4543 = vdwg.mxu0
    %4544 = vmatpush.bf16.msra.mxu0 %v4501
    %4545 = vmatpush.bf16.msra.mxu0 %v4500
    %4546 = vmatpush.bf16.msra.mxu0 %v4499
    %4547 = vmatpush.bf16.msra.mxu0 %v4498
    %4548 = vmatpush.bf16.msra.mxu0 %v4497
    %4549 = vmatpush.bf16.msra.mxu0 %v4496
    %4550 = vmatpush.bf16.msra.mxu0 %v4495
    %4551 = vmatpush.bf16.msra.mxu0 %v4494
    %4552 = vmatmul.bf16.gmra.mxu0 %v4325
    %v4553 = vpop.f32.mrf.mxu0
    %v4554 = vadd.f32 %v4540, %v4553
    %v4555 = vpop.f32.mrf.mxu0
    %v4556 = vadd.f32 %v4542, %v4555
    %4557 = vdwg.mxu0
    %v4558 = vld [vmem:[%s14] sm:$0x1]
    %v4560 = vperm.slane %v4558, 0
    %v4562 = vmul.f32 %v4554, %v4560
    %v4563 = vmul.f32 %v4556, %v4560
    %v4564 = vld [vmem:[%s15] sm:$0x1]
    %v4566 = vperm.slane %v4564, 0
    %v4568 = vadd.f32 %v4562, %v4566
    %v4569 = vadd.f32 %v4563, %v4566
    %4570 = vst [vmem:[%s16] sm:$0xff] %v4568
    %4571 = vst [vmem:[%s16 + $0x8] sm:$0xff] %v4569
    // Predicated region
    $region98: #{actor_forward.1} parent=1 // pred_check
      _
    $region99: #{actor_forward.1} parent=1 // pred_check_branch
      %4573 = sbr.rel (0) target = $region101
    $region100: #{actor_forward.1} parent=1 // pred_region
      _
    $region101: #{actor_forward.1} parent=1 // pred_fallthru
      _
    // Predicated region
    $region102: #{actor_forward.1} parent=1 // pred_check
      _
    $region103: #{actor_forward.1} parent=1 // pred_check_branch
      %4575 = sbr.rel (0) target = $region105
    $region104: #{actor_forward.1} parent=1 // pred_region
      _
    $region105: #{actor_forward.1} parent=1 // pred_fallthru
      _
    %4576 = vsyncpa [#allocation3], 1
    %4577 = vsyncpa [#allocation5], 1
    %4578 = vsyncpa [#allocation8], 1
    %4579 = vsyncpa [#allocation11], 1
    %4580 = vsyncpa [#allocation14], 1

</llo_original>
